<compile_context>
chip_gen: v5e
topology: v5e:2x2
jax: 0.10.0
libtpu: 0.0.40
codegen_flags: <defaults>
</compile_context>

<pallas_src>
import jax
import jax.numpy as jnp
import numpy as np
from jax import lax
from jax.experimental import pallas as pl
from jax.experimental.pallas import tpu as pltpu

VOCAB = 30000
EMB = 256            # DEFALT_EMB_DIM
HID = 256
NCLS = 2
OUT_LANES = 128      # lane-dense padded width of the final layer / output
BN_EPS = 1e-5        # torch BatchNorm1d default
BLOCK_B = 8          # batch rows per grid step (full sublane tile)
MAX_SLOTS = 4        # wave slots -> up to MAX_SLOTS * BLOCK_B = 32 gathers in flight


# ---------------------------------------------------------------------------
# Fused kernel: embedding gather + mean pool + MLP head + softmax.
# grid=(B_pad // BLOCK_B,), one block of 8 batch rows per step.
# ---------------------------------------------------------------------------
def _make_fused_kernel(seq, nslots):
    inv_seq = 1.0 / float(seq)
    n_super = seq // nslots          # full supersteps of `nslots` waves
    rem = seq - n_super * nslots     # static epilogue waves
    n_prime = min(nslots, seq)

    def kernel(ids_ref,              # SMEM  (B_pad*S,) int32   [scalar prefetch]
               emb_hbm,              # ANY   (VOCAB, EMB) f32, stays in HBM
               w1_ref, b1_ref,       # VMEM  (256,256), (1,256)  BN-folded
               w2_ref, b2_ref,       # VMEM  (256,256), (1,256)
               w3_ref, b3_ref,       # VMEM  (256,128), (1,128)  lane-padded
               out_ref,              # VMEM  (BLOCK_B, 128) probabilities (lanes 0..1 real)
               buf,                  # VMEM  (nslots, BLOCK_B, EMB) gather wave buffers
               sem):                 # DMA semaphores (nslots, BLOCK_B)
        b = pl.program_id(0)
        base = b * (BLOCK_B * seq)   # offset of this block in the flattened ids

        def start_row(row_id, slot, r):
            pltpu.make_async_copy(
                emb_hbm.at[pl.ds(row_id, 1), :],
                buf.at[slot, pl.ds(r, 1), :],
                sem.at[slot, r],
            ).start()

        def wait_row(slot, r):
            # Shape-only reconstruction for the wait: byte count matches the
            # (1, EMB) start above; the src index is a dummy.
            pltpu.make_async_copy(
                emb_hbm.at[pl.ds(0, 1), :],
                buf.at[slot, pl.ds(r, 1), :],
                sem.at[slot, r],
            ).wait()

        def start_wave(s, slot):
            # One token (index s) from each of the BLOCK_B rows of this block.
            for r in range(BLOCK_B):                     # static unroll
                start_row(ids_ref[base + r * seq + s], slot, r)

        # ---- prime the pipeline: up to nslots waves (<=32 DMAs) in flight ----
        for s in range(n_prime):                         # static
            start_wave(s, s)

        acc0 = jnp.zeros((BLOCK_B, EMB), jnp.float32)

        # ---- main loop: supersteps of `nslots` waves; slot index is static ---
        def superstep(ws, acc):
            s0 = ws * nslots
            for j in range(nslots):                      # static unroll
                s = s0 + j
                refill = s + nslots
                # Hoist the SMEM reads of the refill ids above the waits
                # (.wait() breaks sst->sld forwarding).  Clamp keeps the reads
                # in-bounds; the DMA start below is guarded on `refill < seq`.
                tok = jnp.minimum(refill, seq - 1)
                refill_ids = [ids_ref[base + r * seq + tok] for r in range(BLOCK_B)]

                for r in range(BLOCK_B):
                    wait_row(j, r)
                acc = acc + buf[j]                       # full (8, EMB) tile add

                @pl.when(refill < seq)
                def _():
                    for r in range(BLOCK_B):
                        start_row(refill_ids[r], j, r)
            return acc

        acc = lax.fori_loop(0, n_super, superstep, acc0)

        # ---- static epilogue: last seq % nslots waves (already started) ------
        for j in range(rem):
            s = n_super * nslots + j
            slot = s % nslots                            # static
            for r in range(BLOCK_B):
                wait_row(slot, r)
            acc = acc + buf[slot]

        pooled = acc * inv_seq                           # torch.mean(x_emb, dim=1)

        # ---- fused MLP head (eval-mode BN folded into Linears) + softmax -----
        h = jnp.dot(pooled, w1_ref[...], preferred_element_type=jnp.float32) + b1_ref[...]
        h = jnp.maximum(h, 0.0)
        h = jnp.dot(h, w2_ref[...], preferred_element_type=jnp.float32) + b2_ref[...]
        h = jnp.maximum(h, 0.0)
        z = jnp.dot(h, w3_ref[...], preferred_element_type=jnp.float32) + b3_ref[...]
        z = jnp.maximum(z, 0.0)
        lane = lax.broadcasted_iota(jnp.int32, z.shape, 1)
        z = jnp.where(lane < NCLS, z, -1e30)             # mask padded class lanes
        z = z - jnp.max(z, axis=-1, keepdims=True)       # softmax over dim=1
        e = jnp.exp(z)
        out_ref[...] = e / jnp.sum(e, axis=-1, keepdims=True)

    return kernel


# ---------------------------------------------------------------------------
# Wrapper: fold eval-mode BN into the Linear layers, pad layer 3 to 128 lanes,
# pad the batch to a multiple of BLOCK_B, run the fused kernel, slice output.
# ---------------------------------------------------------------------------
def _fold_bn(w, b, gamma, beta, mean, var):
    scale = gamma * lax.rsqrt(var + BN_EPS)              # (1, out)
    return w * scale, (b - mean) * scale + beta


def snp_dnn_2_layer_forward(ids, p):
    B, S = ids.shape
    nb = -(-B // BLOCK_B)
    B_pad = nb * BLOCK_B
    if B_pad != B:
        ids = jnp.pad(ids, ((0, B_pad - B), (0, 0)))     # padded rows are discarded
    ids_flat = ids.reshape(-1).astype(jnp.int32)

    w1f, b1f = _fold_bn(p["w1"], p["b1"], p["g1"], p["bt1"], p["m1"], p["v1"])
    w2f, b2f = _fold_bn(p["w2"], p["b2"], p["g2"], p["bt2"], p["m2"], p["v2"])
    w3f, b3f = _fold_bn(p["w3"], p["b3"], p["g3"], p["bt3"], p["m3"], p["v3"])
    # Lane-dense padding of the 2-class layer to 128 output lanes.
    w3p = jnp.zeros((HID, OUT_LANES), jnp.float32).at[:, :NCLS].set(w3f)
    b3p = jnp.zeros((1, OUT_LANES), jnp.float32).at[:, :NCLS].set(b3f)

    nslots = max(1, min(MAX_SLOTS, S))

    grid_spec = pltpu.PrefetchScalarGridSpec(
        num_scalar_prefetch=1,                           # flattened ids -> SMEM
        grid=(nb,),
        in_specs=[
            pl.BlockSpec(memory_space=pl.ANY),           # embedding table stays in HBM
            pl.BlockSpec((EMB, HID), lambda b, ids: (0, 0)),        # resident weights
            pl.BlockSpec((1, HID), lambda b, ids: (0, 0)),
            pl.BlockSpec((HID, HID), lambda b, ids: (0, 0)),
            pl.BlockSpec((1, HID), lambda b, ids: (0, 0)),
            pl.BlockSpec((HID, OUT_LANES), lambda b, ids: (0, 0)),
            pl.BlockSpec((1, OUT_LANES), lambda b, ids: (0, 0)),
        ],
        out_specs=pl.BlockSpec((BLOCK_B, OUT_LANES), lambda b, ids: (b, 0)),
        scratch_shapes=[
            pltpu.VMEM((nslots, BLOCK_B, EMB), jnp.float32),
            pltpu.SemaphoreType.DMA((nslots, BLOCK_B)),
        ],
    )

    out = pl.pallas_call(
        _make_fused_kernel(S, nslots),
        out_shape=jax.ShapeDtypeStruct((B_pad, OUT_LANES), jnp.float32),
        grid_spec=grid_spec,
        compiler_params=pltpu.CompilerParams(
            dimension_semantics=("parallel",)),          # batch blocks are independent
    )(ids_flat, p["emb"], w1f, b1f, w2f, b2f, w3p, b3p)

    return out[:B, :NCLS]


# ---------------------------------------------------------------------------
# Parameter init matching the torch module (eval-mode BN defaults).
# ---------------------------------------------------------------------------
def init_params(key):
    ks = jax.random.split(key, 7)

    # nn.Embedding(30000, 256, padding_idx=0): N(0,1) init, padding row zeroed.
    emb = jax.random.normal(ks[0], (VOCAB, EMB), jnp.float32)
    emb = emb.at[0].set(0.0)

    def xavier(k, fan_in, fan_out):
        std = float(np.sqrt(2.0 / (fan_in + fan_out)))
        return jax.random.normal(k, (fan_in, fan_out), jnp.float32) * std

    def lin_bias(k, fan_in, fan_out):
        bound = 1.0 / float(np.sqrt(fan_in))
        return (jax.random.uniform(k, (1, fan_out), jnp.float32) * 2.0 - 1.0) * bound

    def bn(feat):
        return (jnp.ones((1, feat), jnp.float32), jnp.zeros((1, feat), jnp.float32),
                jnp.zeros((1, feat), jnp.float32), jnp.ones((1, feat), jnp.float32))

    g1, bt1, m1, v1 = bn(HID)
    g2, bt2, m2, v2 = bn(HID)
    g3, bt3, m3, v3 = bn(NCLS)

    return dict(
        emb=emb,
        w1=xavier(ks[1], EMB, HID), b1=lin_bias(ks[2], EMB, HID),
        g1=g1, bt1=bt1, m1=m1, v1=v1,
        w2=xavier(ks[3], HID, HID), b2=lin_bias(ks[4], HID, HID),
        g2=g2, bt2=bt2, m2=m2, v2=v2,
        w3=xavier(ks[5], HID, NCLS), b3=lin_bias(ks[6], HID, NCLS),
        g3=g3, bt3=bt3, m3=m3, v3=v3,
    )


def reference_forward(ids, p):
    """Pure-JAX reference matching the torch forward (eval-mode BN)."""
    def block(x, w, b, g, bt, m, v):
        h = x @ w + b
        h = (h - m) * g / jnp.sqrt(v + BN_EPS) + bt
        return jnp.maximum(h, 0.0)

    x_emb = p["emb"][ids]                                # (B, S, EMB)
    pooled = jnp.mean(x_emb, axis=1)                     # (B, EMB)
    h = block(pooled, p["w1"], p["b1"], p["g1"], p["bt1"], p["m1"], p["v1"])
    h = block(h, p["w2"], p["b2"], p["g2"], p["bt2"], p["m2"], p["v2"])
    z = block(h, p["w3"], p["b3"], p["g3"], p["bt3"], p["m3"], p["v3"])
    return jax.nn.softmax(z, axis=1)


if __name__ == "__main__":
    key = jax.random.PRNGKey(0)
    kp, kd = jax.random.split(key)
    params = init_params(kp)

    B, S = 16, 8                                         # grid = 2 blocks of 8 rows
    ids = jax.random.randint(kd, (B, S), 0, VOCAB, dtype=jnp.int32)
    ids = ids.at[:, -1].set(0)                           # include some padding tokens
    ids = ids.at[0, -2].set(0)

    out = jax.block_until_ready(snp_dnn_2_layer_forward(ids, params))
    ref = jax.block_until_ready(reference_forward(ids, params))

    assert out.shape == (B, NCLS) and out.dtype == jnp.float32
    assert bool(jnp.all(jnp.isfinite(out)))
    assert np.allclose(np.asarray(out), np.asarray(ref), atol=1e-2, rtol=1e-2), (
        "mismatch vs reference:\n%s\n%s" % (np.asarray(out), np.asarray(ref)))
    assert np.allclose(np.asarray(out).sum(axis=1), 1.0, atol=1e-3)

    print("KERNEL_OK")
</pallas_src>

<mosaic_0001>
module attributes {stable_mosaic.version = 11 : i64} {
  func.func @kernel(%arg0: i32, %arg1: memref<128xi32, #tpu.memory_space<smem>>, %arg2: memref<30000x256xf32, #tpu.memory_space<any>>, %arg3: memref<256x256xf32, #tpu.memory_space<vmem>>, %arg4: memref<1x256xf32, #tpu.memory_space<vmem>>, %arg5: memref<256x256xf32, #tpu.memory_space<vmem>>, %arg6: memref<1x256xf32, #tpu.memory_space<vmem>>, %arg7: memref<256x128xf32, #tpu.memory_space<vmem>>, %arg8: memref<1x128xf32, #tpu.memory_space<vmem>>, %arg9: memref<8x128xf32, #tpu.memory_space<vmem>>, %arg10: memref<4x8x256xf32, #tpu.memory_space<vmem>>, %arg11: memref<4x8x!tpu.dma_semaphore, #tpu.memory_space<semaphore_mem>>) attributes {dimension_semantics = [#tpu.dimension_semantics<parallel>], iteration_bounds = array<i64: 2>, scalar_prefetch = 1 : i64, scratch_operands = 2 : i64, tpu.core_type = #tpu.core_type<tc>, window_params = [{}, {pipeline_mode = #tpu.pipeline_mode<synchronous>, transform_indices = @transform_1, window_bounds = array<i64: 256, 256>}, {pipeline_mode = #tpu.pipeline_mode<synchronous>, transform_indices = @transform_2, window_bounds = array<i64: 1, 256>}, {pipeline_mode = #tpu.pipeline_mode<synchronous>, transform_indices = @transform_3, window_bounds = array<i64: 256, 256>}, {pipeline_mode = #tpu.pipeline_mode<synchronous>, transform_indices = @transform_4, window_bounds = array<i64: 1, 256>}, {pipeline_mode = #tpu.pipeline_mode<synchronous>, transform_indices = @transform_5, window_bounds = array<i64: 256, 128>}, {pipeline_mode = #tpu.pipeline_mode<synchronous>, transform_indices = @transform_6, window_bounds = array<i64: 1, 128>}, {transform_indices = @transform_7, window_bounds = array<i64: 8, 128>}]} {
    %c64_i32 = arith.constant 64 : i32
    %0 = arith.muli %arg0, %c64_i32 : i32
    %c0_i32 = arith.constant 0 : i32
    %1 = arith.addi %0, %c0_i32 : i32
    %c0_i32_0 = arith.constant 0 : i32
    %2 = arith.addi %1, %c0_i32_0 : i32
    %3 = arith.index_cast %2 : i32 to index
    %4 = memref.load %arg1[%3] : memref<128xi32, #tpu.memory_space<smem>>
    %c0_i32_1 = arith.constant 0 : i32
    %c0_i32_2 = arith.constant 0 : i32
    %c0_i32_3 = arith.constant 0 : i32
    %c0_i32_4 = arith.constant 0 : i32
    %5 = tpu.memref_slice %arg2[%4, %c0_i32_4] : memref<30000x256xf32, #tpu.memory_space<any>> -> memref<1x256xf32, #tpu.memory_space<any>>
    %c0_i32_5 = arith.constant 0 : i32
    %c0_i32_6 = arith.constant 0 : i32
    %6 = tpu.memref_slice %arg10[%c0_i32_1, %c0_i32_5, %c0_i32_6] : memref<4x8x256xf32, #tpu.memory_space<vmem>> -> memref<1x1x256xf32, #tpu.memory_space<vmem>>
    %7 = tpu.memref_squeeze %6 : memref<1x1x256xf32, #tpu.memory_space<vmem>> -> memref<1x256xf32, #tpu.memory_space<vmem>>
    %8 = tpu.memref_slice %arg11[%c0_i32_2, %c0_i32_3] : memref<4x8x!tpu.dma_semaphore, #tpu.memory_space<semaphore_mem>> -> memref<1x1x!tpu.dma_semaphore, #tpu.memory_space<semaphore_mem>>
    %9 = tpu.memref_squeeze %8 : memref<1x1x!tpu.dma_semaphore, #tpu.memory_space<semaphore_mem>> -> memref<!tpu.dma_semaphore, #tpu.memory_space<semaphore_mem>>
    tpu.enqueue_dma source(%5 : memref<1x256xf32, #tpu.memory_space<any>>) target(%7 : memref<1x256xf32, #tpu.memory_space<vmem>>) target_semaphore(%9 : memref<!tpu.dma_semaphore, #tpu.memory_space<semaphore_mem>>)
    %c8_i32 = arith.constant 8 : i32
    %10 = arith.addi %0, %c8_i32 : i32
    %c0_i32_7 = arith.constant 0 : i32
    %11 = arith.addi %10, %c0_i32_7 : i32
    %12 = arith.index_cast %11 : i32 to index
    %13 = memref.load %arg1[%12] : memref<128xi32, #tpu.memory_space<smem>>
    %c0_i32_8 = arith.constant 0 : i32
    %c0_i32_9 = arith.constant 0 : i32
    %c1_i32 = arith.constant 1 : i32
    %c0_i32_10 = arith.constant 0 : i32
    %14 = tpu.memref_slice %arg2[%13, %c0_i32_10] : memref<30000x256xf32, #tpu.memory_space<any>> -> memref<1x256xf32, #tpu.memory_space<any>>
    %c1_i32_11 = arith.constant 1 : i32
    %c0_i32_12 = arith.constant 0 : i32
    %15 = tpu.memref_slice %arg10[%c0_i32_8, %c1_i32_11, %c0_i32_12] : memref<4x8x256xf32, #tpu.memory_space<vmem>> -> memref<1x1x256xf32, #tpu.memory_space<vmem>>
    %16 = tpu.memref_squeeze %15 : memref<1x1x256xf32, #tpu.memory_space<vmem>> -> memref<1x256xf32, #tpu.memory_space<vmem>>
    %17 = tpu.memref_slice %arg11[%c0_i32_9, %c1_i32] : memref<4x8x!tpu.dma_semaphore, #tpu.memory_space<semaphore_mem>> -> memref<1x1x!tpu.dma_semaphore, #tpu.memory_space<semaphore_mem>>
    %18 = tpu.memref_squeeze %17 : memref<1x1x!tpu.dma_semaphore, #tpu.memory_space<semaphore_mem>> -> memref<!tpu.dma_semaphore, #tpu.memory_space<semaphore_mem>>
    tpu.enqueue_dma source(%14 : memref<1x256xf32, #tpu.memory_space<any>>) target(%16 : memref<1x256xf32, #tpu.memory_space<vmem>>) target_semaphore(%18 : memref<!tpu.dma_semaphore, #tpu.memory_space<semaphore_mem>>)
    %c16_i32 = arith.constant 16 : i32
    %19 = arith.addi %0, %c16_i32 : i32
    %c0_i32_13 = arith.constant 0 : i32
    %20 = arith.addi %19, %c0_i32_13 : i32
    %21 = arith.index_cast %20 : i32 to index
    %22 = memref.load %arg1[%21] : memref<128xi32, #tpu.memory_space<smem>>
    %c0_i32_14 = arith.constant 0 : i32
    %c0_i32_15 = arith.constant 0 : i32
    %c2_i32 = arith.constant 2 : i32
    %c0_i32_16 = arith.constant 0 : i32
    %23 = tpu.memref_slice %arg2[%22, %c0_i32_16] : memref<30000x256xf32, #tpu.memory_space<any>> -> memref<1x256xf32, #tpu.memory_space<any>>
    %c2_i32_17 = arith.constant 2 : i32
    %c0_i32_18 = arith.constant 0 : i32
    %24 = tpu.memref_slice %arg10[%c0_i32_14, %c2_i32_17, %c0_i32_18] : memref<4x8x256xf32, #tpu.memory_space<vmem>> -> memref<1x1x256xf32, #tpu.memory_space<vmem>>
    %25 = tpu.memref_squeeze %24 : memref<1x1x256xf32, #tpu.memory_space<vmem>> -> memref<1x256xf32, #tpu.memory_space<vmem>>
    %26 = tpu.memref_slice %arg11[%c0_i32_15, %c2_i32] : memref<4x8x!tpu.dma_semaphore, #tpu.memory_space<semaphore_mem>> -> memref<1x1x!tpu.dma_semaphore, #tpu.memory_space<semaphore_mem>>
    %27 = tpu.memref_squeeze %26 : memref<1x1x!tpu.dma_semaphore, #tpu.memory_space<semaphore_mem>> -> memref<!tpu.dma_semaphore, #tpu.memory_space<semaphore_mem>>
    tpu.enqueue_dma source(%23 : memref<1x256xf32, #tpu.memory_space<any>>) target(%25 : memref<1x256xf32, #tpu.memory_space<vmem>>) target_semaphore(%27 : memref<!tpu.dma_semaphore, #tpu.memory_space<semaphore_mem>>)
    %c24_i32 = arith.constant 24 : i32
    %28 = arith.addi %0, %c24_i32 : i32
    %c0_i32_19 = arith.constant 0 : i32
    %29 = arith.addi %28, %c0_i32_19 : i32
    %30 = arith.index_cast %29 : i32 to index
    %31 = memref.load %arg1[%30] : memref<128xi32, #tpu.memory_space<smem>>
    %c0_i32_20 = arith.constant 0 : i32
    %c0_i32_21 = arith.constant 0 : i32
    %c3_i32 = arith.constant 3 : i32
    %c0_i32_22 = arith.constant 0 : i32
    %32 = tpu.memref_slice %arg2[%31, %c0_i32_22] : memref<30000x256xf32, #tpu.memory_space<any>> -> memref<1x256xf32, #tpu.memory_space<any>>
    %c3_i32_23 = arith.constant 3 : i32
    %c0_i32_24 = arith.constant 0 : i32
    %33 = tpu.memref_slice %arg10[%c0_i32_20, %c3_i32_23, %c0_i32_24] : memref<4x8x256xf32, #tpu.memory_space<vmem>> -> memref<1x1x256xf32, #tpu.memory_space<vmem>>
    %34 = tpu.memref_squeeze %33 : memref<1x1x256xf32, #tpu.memory_space<vmem>> -> memref<1x256xf32, #tpu.memory_space<vmem>>
    %35 = tpu.memref_slice %arg11[%c0_i32_21, %c3_i32] : memref<4x8x!tpu.dma_semaphore, #tpu.memory_space<semaphore_mem>> -> memref<1x1x!tpu.dma_semaphore, #tpu.memory_space<semaphore_mem>>
    %36 = tpu.memref_squeeze %35 : memref<1x1x!tpu.dma_semaphore, #tpu.memory_space<semaphore_mem>> -> memref<!tpu.dma_semaphore, #tpu.memory_space<semaphore_mem>>
    tpu.enqueue_dma source(%32 : memref<1x256xf32, #tpu.memory_space<any>>) target(%34 : memref<1x256xf32, #tpu.memory_space<vmem>>) target_semaphore(%36 : memref<!tpu.dma_semaphore, #tpu.memory_space<semaphore_mem>>)
    %c32_i32 = arith.constant 32 : i32
    %37 = arith.addi %0, %c32_i32 : i32
    %c0_i32_25 = arith.constant 0 : i32
    %38 = arith.addi %37, %c0_i32_25 : i32
    %39 = arith.index_cast %38 : i32 to index
    %40 = memref.load %arg1[%39] : memref<128xi32, #tpu.memory_space<smem>>
    %c0_i32_26 = arith.constant 0 : i32
    %c0_i32_27 = arith.constant 0 : i32
    %c4_i32 = arith.constant 4 : i32
    %c0_i32_28 = arith.constant 0 : i32
    %41 = tpu.memref_slice %arg2[%40, %c0_i32_28] : memref<30000x256xf32, #tpu.memory_space<any>> -> memref<1x256xf32, #tpu.memory_space<any>>
    %c4_i32_29 = arith.constant 4 : i32
    %c0_i32_30 = arith.constant 0 : i32
    %42 = tpu.memref_slice %arg10[%c0_i32_26, %c4_i32_29, %c0_i32_30] : memref<4x8x256xf32, #tpu.memory_space<vmem>> -> memref<1x1x256xf32, #tpu.memory_space<vmem>>
    %43 = tpu.memref_squeeze %42 : memref<1x1x256xf32, #tpu.memory_space<vmem>> -> memref<1x256xf32, #tpu.memory_space<vmem>>
    %44 = tpu.memref_slice %arg11[%c0_i32_27, %c4_i32] : memref<4x8x!tpu.dma_semaphore, #tpu.memory_space<semaphore_mem>> -> memref<1x1x!tpu.dma_semaphore, #tpu.memory_space<semaphore_mem>>
    %45 = tpu.memref_squeeze %44 : memref<1x1x!tpu.dma_semaphore, #tpu.memory_space<semaphore_mem>> -> memref<!tpu.dma_semaphore, #tpu.memory_space<semaphore_mem>>
    tpu.enqueue_dma source(%41 : memref<1x256xf32, #tpu.memory_space<any>>) target(%43 : memref<1x256xf32, #tpu.memory_space<vmem>>) target_semaphore(%45 : memref<!tpu.dma_semaphore, #tpu.memory_space<semaphore_mem>>)
    %c40_i32 = arith.constant 40 : i32
    %46 = arith.addi %0, %c40_i32 : i32
    %c0_i32_31 = arith.constant 0 : i32
    %47 = arith.addi %46, %c0_i32_31 : i32
    %48 = arith.index_cast %47 : i32 to index
    %49 = memref.load %arg1[%48] : memref<128xi32, #tpu.memory_space<smem>>
    %c0_i32_32 = arith.constant 0 : i32
    %c0_i32_33 = arith.constant 0 : i32
    %c5_i32 = arith.constant 5 : i32
    %c0_i32_34 = arith.constant 0 : i32
    %50 = tpu.memref_slice %arg2[%49, %c0_i32_34] : memref<30000x256xf32, #tpu.memory_space<any>> -> memref<1x256xf32, #tpu.memory_space<any>>
    %c5_i32_35 = arith.constant 5 : i32
    %c0_i32_36 = arith.constant 0 : i32
    %51 = tpu.memref_slice %arg10[%c0_i32_32, %c5_i32_35, %c0_i32_36] : memref<4x8x256xf32, #tpu.memory_space<vmem>> -> memref<1x1x256xf32, #tpu.memory_space<vmem>>
    %52 = tpu.memref_squeeze %51 : memref<1x1x256xf32, #tpu.memory_space<vmem>> -> memref<1x256xf32, #tpu.memory_space<vmem>>
    %53 = tpu.memref_slice %arg11[%c0_i32_33, %c5_i32] : memref<4x8x!tpu.dma_semaphore, #tpu.memory_space<semaphore_mem>> -> memref<1x1x!tpu.dma_semaphore, #tpu.memory_space<semaphore_mem>>
    %54 = tpu.memref_squeeze %53 : memref<1x1x!tpu.dma_semaphore, #tpu.memory_space<semaphore_mem>> -> memref<!tpu.dma_semaphore, #tpu.memory_space<semaphore_mem>>
    tpu.enqueue_dma source(%50 : memref<1x256xf32, #tpu.memory_space<any>>) target(%52 : memref<1x256xf32, #tpu.memory_space<vmem>>) target_semaphore(%54 : memref<!tpu.dma_semaphore, #tpu.memory_space<semaphore_mem>>)
    %c48_i32 = arith.constant 48 : i32
    %55 = arith.addi %0, %c48_i32 : i32
    %c0_i32_37 = arith.constant 0 : i32
    %56 = arith.addi %55, %c0_i32_37 : i32
    %57 = arith.index_cast %56 : i32 to index
    %58 = memref.load %arg1[%57] : memref<128xi32, #tpu.memory_space<smem>>
    %c0_i32_38 = arith.constant 0 : i32
    %c0_i32_39 = arith.constant 0 : i32
    %c6_i32 = arith.constant 6 : i32
    %c0_i32_40 = arith.constant 0 : i32
    %59 = tpu.memref_slice %arg2[%58, %c0_i32_40] : memref<30000x256xf32, #tpu.memory_space<any>> -> memref<1x256xf32, #tpu.memory_space<any>>
    %c6_i32_41 = arith.constant 6 : i32
    %c0_i32_42 = arith.constant 0 : i32
    %60 = tpu.memref_slice %arg10[%c0_i32_38, %c6_i32_41, %c0_i32_42] : memref<4x8x256xf32, #tpu.memory_space<vmem>> -> memref<1x1x256xf32, #tpu.memory_space<vmem>>
    %61 = tpu.memref_squeeze %60 : memref<1x1x256xf32, #tpu.memory_space<vmem>> -> memref<1x256xf32, #tpu.memory_space<vmem>>
    %62 = tpu.memref_slice %arg11[%c0_i32_39, %c6_i32] : memref<4x8x!tpu.dma_semaphore, #tpu.memory_space<semaphore_mem>> -> memref<1x1x!tpu.dma_semaphore, #tpu.memory_space<semaphore_mem>>
    %63 = tpu.memref_squeeze %62 : memref<1x1x!tpu.dma_semaphore, #tpu.memory_space<semaphore_mem>> -> memref<!tpu.dma_semaphore, #tpu.memory_space<semaphore_mem>>
    tpu.enqueue_dma source(%59 : memref<1x256xf32, #tpu.memory_space<any>>) target(%61 : memref<1x256xf32, #tpu.memory_space<vmem>>) target_semaphore(%63 : memref<!tpu.dma_semaphore, #tpu.memory_space<semaphore_mem>>)
    %c56_i32 = arith.constant 56 : i32
    %64 = arith.addi %0, %c56_i32 : i32
    %c0_i32_43 = arith.constant 0 : i32
    %65 = arith.addi %64, %c0_i32_43 : i32
    %66 = arith.index_cast %65 : i32 to index
    %67 = memref.load %arg1[%66] : memref<128xi32, #tpu.memory_space<smem>>
    %c0_i32_44 = arith.constant 0 : i32
    %c0_i32_45 = arith.constant 0 : i32
    %c7_i32 = arith.constant 7 : i32
    %c0_i32_46 = arith.constant 0 : i32
    %68 = tpu.memref_slice %arg2[%67, %c0_i32_46] : memref<30000x256xf32, #tpu.memory_space<any>> -> memref<1x256xf32, #tpu.memory_space<any>>
    %c7_i32_47 = arith.constant 7 : i32
    %c0_i32_48 = arith.constant 0 : i32
    %69 = tpu.memref_slice %arg10[%c0_i32_44, %c7_i32_47, %c0_i32_48] : memref<4x8x256xf32, #tpu.memory_space<vmem>> -> memref<1x1x256xf32, #tpu.memory_space<vmem>>
    %70 = tpu.memref_squeeze %69 : memref<1x1x256xf32, #tpu.memory_space<vmem>> -> memref<1x256xf32, #tpu.memory_space<vmem>>
    %71 = tpu.memref_slice %arg11[%c0_i32_45, %c7_i32] : memref<4x8x!tpu.dma_semaphore, #tpu.memory_space<semaphore_mem>> -> memref<1x1x!tpu.dma_semaphore, #tpu.memory_space<semaphore_mem>>
    %72 = tpu.memref_squeeze %71 : memref<1x1x!tpu.dma_semaphore, #tpu.memory_space<semaphore_mem>> -> memref<!tpu.dma_semaphore, #tpu.memory_space<semaphore_mem>>
    tpu.enqueue_dma source(%68 : memref<1x256xf32, #tpu.memory_space<any>>) target(%70 : memref<1x256xf32, #tpu.memory_space<vmem>>) target_semaphore(%72 : memref<!tpu.dma_semaphore, #tpu.memory_space<semaphore_mem>>)
    %c0_i32_49 = arith.constant 0 : i32
    %73 = arith.addi %0, %c0_i32_49 : i32
    %c1_i32_50 = arith.constant 1 : i32
    %74 = arith.addi %73, %c1_i32_50 : i32
    %75 = arith.index_cast %74 : i32 to index
    %76 = memref.load %arg1[%75] : memref<128xi32, #tpu.memory_space<smem>>
    %c1_i32_51 = arith.constant 1 : i32
    %c1_i32_52 = arith.constant 1 : i32
    %c0_i32_53 = arith.constant 0 : i32
    %c0_i32_54 = arith.constant 0 : i32
    %77 = tpu.memref_slice %arg2[%76, %c0_i32_54] : memref<30000x256xf32, #tpu.memory_space<any>> -> memref<1x256xf32, #tpu.memory_space<any>>
    %c0_i32_55 = arith.constant 0 : i32
    %c0_i32_56 = arith.constant 0 : i32
    %78 = tpu.memref_slice %arg10[%c1_i32_51, %c0_i32_55, %c0_i32_56] : memref<4x8x256xf32, #tpu.memory_space<vmem>> -> memref<1x1x256xf32, #tpu.memory_space<vmem>>
    %79 = tpu.memref_squeeze %78 : memref<1x1x256xf32, #tpu.memory_space<vmem>> -> memref<1x256xf32, #tpu.memory_space<vmem>>
    %80 = tpu.memref_slice %arg11[%c1_i32_52, %c0_i32_53] : memref<4x8x!tpu.dma_semaphore, #tpu.memory_space<semaphore_mem>> -> memref<1x1x!tpu.dma_semaphore, #tpu.memory_space<semaphore_mem>>
    %81 = tpu.memref_squeeze %80 : memref<1x1x!tpu.dma_semaphore, #tpu.memory_space<semaphore_mem>> -> memref<!tpu.dma_semaphore, #tpu.memory_space<semaphore_mem>>
    tpu.enqueue_dma source(%77 : memref<1x256xf32, #tpu.memory_space<any>>) target(%79 : memref<1x256xf32, #tpu.memory_space<vmem>>) target_semaphore(%81 : memref<!tpu.dma_semaphore, #tpu.memory_space<semaphore_mem>>)
    %c8_i32_57 = arith.constant 8 : i32
    %82 = arith.addi %0, %c8_i32_57 : i32
    %c1_i32_58 = arith.constant 1 : i32
    %83 = arith.addi %82, %c1_i32_58 : i32
    %84 = arith.index_cast %83 : i32 to index
    %85 = memref.load %arg1[%84] : memref<128xi32, #tpu.memory_space<smem>>
    %c1_i32_59 = arith.constant 1 : i32
    %c1_i32_60 = arith.constant 1 : i32
    %c1_i32_61 = arith.constant 1 : i32
    %c0_i32_62 = arith.constant 0 : i32
    %86 = tpu.memref_slice %arg2[%85, %c0_i32_62] : memref<30000x256xf32, #tpu.memory_space<any>> -> memref<1x256xf32, #tpu.memory_space<any>>
    %c1_i32_63 = arith.constant 1 : i32
    %c0_i32_64 = arith.constant 0 : i32
    %87 = tpu.memref_slice %arg10[%c1_i32_59, %c1_i32_63, %c0_i32_64] : memref<4x8x256xf32, #tpu.memory_space<vmem>> -> memref<1x1x256xf32, #tpu.memory_space<vmem>>
    %88 = tpu.memref_squeeze %87 : memref<1x1x256xf32, #tpu.memory_space<vmem>> -> memref<1x256xf32, #tpu.memory_space<vmem>>
    %89 = tpu.memref_slice %arg11[%c1_i32_60, %c1_i32_61] : memref<4x8x!tpu.dma_semaphore, #tpu.memory_space<semaphore_mem>> -> memref<1x1x!tpu.dma_semaphore, #tpu.memory_space<semaphore_mem>>
    %90 = tpu.memref_squeeze %89 : memref<1x1x!tpu.dma_semaphore, #tpu.memory_space<semaphore_mem>> -> memref<!tpu.dma_semaphore, #tpu.memory_space<semaphore_mem>>
    tpu.enqueue_dma source(%86 : memref<1x256xf32, #tpu.memory_space<any>>) target(%88 : memref<1x256xf32, #tpu.memory_space<vmem>>) target_semaphore(%90 : memref<!tpu.dma_semaphore, #tpu.memory_space<semaphore_mem>>)
    %c16_i32_65 = arith.constant 16 : i32
    %91 = arith.addi %0, %c16_i32_65 : i32
    %c1_i32_66 = arith.constant 1 : i32
    %92 = arith.addi %91, %c1_i32_66 : i32
    %93 = arith.index_cast %92 : i32 to index
    %94 = memref.load %arg1[%93] : memref<128xi32, #tpu.memory_space<smem>>
    %c1_i32_67 = arith.constant 1 : i32
    %c1_i32_68 = arith.constant 1 : i32
    %c2_i32_69 = arith.constant 2 : i32
    %c0_i32_70 = arith.constant 0 : i32
    %95 = tpu.memref_slice %arg2[%94, %c0_i32_70] : memref<30000x256xf32, #tpu.memory_space<any>> -> memref<1x256xf32, #tpu.memory_space<any>>
    %c2_i32_71 = arith.constant 2 : i32
    %c0_i32_72 = arith.constant 0 : i32
    %96 = tpu.memref_slice %arg10[%c1_i32_67, %c2_i32_71, %c0_i32_72] : memref<4x8x256xf32, #tpu.memory_space<vmem>> -> memref<1x1x256xf32, #tpu.memory_space<vmem>>
    %97 = tpu.memref_squeeze %96 : memref<1x1x256xf32, #tpu.memory_space<vmem>> -> memref<1x256xf32, #tpu.memory_space<vmem>>
    %98 = tpu.memref_slice %arg11[%c1_i32_68, %c2_i32_69] : memref<4x8x!tpu.dma_semaphore, #tpu.memory_space<semaphore_mem>> -> memref<1x1x!tpu.dma_semaphore, #tpu.memory_space<semaphore_mem>>
    %99 = tpu.memref_squeeze %98 : memref<1x1x!tpu.dma_semaphore, #tpu.memory_space<semaphore_mem>> -> memref<!tpu.dma_semaphore, #tpu.memory_space<semaphore_mem>>
    tpu.enqueue_dma source(%95 : memref<1x256xf32, #tpu.memory_space<any>>) target(%97 : memref<1x256xf32, #tpu.memory_space<vmem>>) target_semaphore(%99 : memref<!tpu.dma_semaphore, #tpu.memory_space<semaphore_mem>>)
    %c24_i32_73 = arith.constant 24 : i32
    %100 = arith.addi %0, %c24_i32_73 : i32
    %c1_i32_74 = arith.constant 1 : i32
    %101 = arith.addi %100, %c1_i32_74 : i32
    %102 = arith.index_cast %101 : i32 to index
    %103 = memref.load %arg1[%102] : memref<128xi32, #tpu.memory_space<smem>>
    %c1_i32_75 = arith.constant 1 : i32
    %c1_i32_76 = arith.constant 1 : i32
    %c3_i32_77 = arith.constant 3 : i32
    %c0_i32_78 = arith.constant 0 : i32
    %104 = tpu.memref_slice %arg2[%103, %c0_i32_78] : memref<30000x256xf32, #tpu.memory_space<any>> -> memref<1x256xf32, #tpu.memory_space<any>>
    %c3_i32_79 = arith.constant 3 : i32
    %c0_i32_80 = arith.constant 0 : i32
    %105 = tpu.memref_slice %arg10[%c1_i32_75, %c3_i32_79, %c0_i32_80] : memref<4x8x256xf32, #tpu.memory_space<vmem>> -> memref<1x1x256xf32, #tpu.memory_space<vmem>>
    %106 = tpu.memref_squeeze %105 : memref<1x1x256xf32, #tpu.memory_space<vmem>> -> memref<1x256xf32, #tpu.memory_space<vmem>>
    %107 = tpu.memref_slice %arg11[%c1_i32_76, %c3_i32_77] : memref<4x8x!tpu.dma_semaphore, #tpu.memory_space<semaphore_mem>> -> memref<1x1x!tpu.dma_semaphore, #tpu.memory_space<semaphore_mem>>
    %108 = tpu.memref_squeeze %107 : memref<1x1x!tpu.dma_semaphore, #tpu.memory_space<semaphore_mem>> -> memref<!tpu.dma_semaphore, #tpu.memory_space<semaphore_mem>>
    tpu.enqueue_dma source(%104 : memref<1x256xf32, #tpu.memory_space<any>>) target(%106 : memref<1x256xf32, #tpu.memory_space<vmem>>) target_semaphore(%108 : memref<!tpu.dma_semaphore, #tpu.memory_space<semaphore_mem>>)
    %c32_i32_81 = arith.constant 32 : i32
    %109 = arith.addi %0, %c32_i32_81 : i32
    %c1_i32_82 = arith.constant 1 : i32
    %110 = arith.addi %109, %c1_i32_82 : i32
    %111 = arith.index_cast %110 : i32 to index
    %112 = memref.load %arg1[%111] : memref<128xi32, #tpu.memory_space<smem>>
    %c1_i32_83 = arith.constant 1 : i32
    %c1_i32_84 = arith.constant 1 : i32
    %c4_i32_85 = arith.constant 4 : i32
    %c0_i32_86 = arith.constant 0 : i32
    %113 = tpu.memref_slice %arg2[%112, %c0_i32_86] : memref<30000x256xf32, #tpu.memory_space<any>> -> memref<1x256xf32, #tpu.memory_space<any>>
    %c4_i32_87 = arith.constant 4 : i32
    %c0_i32_88 = arith.constant 0 : i32
    %114 = tpu.memref_slice %arg10[%c1_i32_83, %c4_i32_87, %c0_i32_88] : memref<4x8x256xf32, #tpu.memory_space<vmem>> -> memref<1x1x256xf32, #tpu.memory_space<vmem>>
    %115 = tpu.memref_squeeze %114 : memref<1x1x256xf32, #tpu.memory_space<vmem>> -> memref<1x256xf32, #tpu.memory_space<vmem>>
    %116 = tpu.memref_slice %arg11[%c1_i32_84, %c4_i32_85] : memref<4x8x!tpu.dma_semaphore, #tpu.memory_space<semaphore_mem>> -> memref<1x1x!tpu.dma_semaphore, #tpu.memory_space<semaphore_mem>>
    %117 = tpu.memref_squeeze %116 : memref<1x1x!tpu.dma_semaphore, #tpu.memory_space<semaphore_mem>> -> memref<!tpu.dma_semaphore, #tpu.memory_space<semaphore_mem>>
    tpu.enqueue_dma source(%113 : memref<1x256xf32, #tpu.memory_space<any>>) target(%115 : memref<1x256xf32, #tpu.memory_space<vmem>>) target_semaphore(%117 : memref<!tpu.dma_semaphore, #tpu.memory_space<semaphore_mem>>)
    %c40_i32_89 = arith.constant 40 : i32
    %118 = arith.addi %0, %c40_i32_89 : i32
    %c1_i32_90 = arith.constant 1 : i32
    %119 = arith.addi %118, %c1_i32_90 : i32
    %120 = arith.index_cast %119 : i32 to index
    %121 = memref.load %arg1[%120] : memref<128xi32, #tpu.memory_space<smem>>
    %c1_i32_91 = arith.constant 1 : i32
    %c1_i32_92 = arith.constant 1 : i32
    %c5_i32_93 = arith.constant 5 : i32
    %c0_i32_94 = arith.constant 0 : i32
    %122 = tpu.memref_slice %arg2[%121, %c0_i32_94] : memref<30000x256xf32, #tpu.memory_space<any>> -> memref<1x256xf32, #tpu.memory_space<any>>
    %c5_i32_95 = arith.constant 5 : i32
    %c0_i32_96 = arith.constant 0 : i32
    %123 = tpu.memref_slice %arg10[%c1_i32_91, %c5_i32_95, %c0_i32_96] : memref<4x8x256xf32, #tpu.memory_space<vmem>> -> memref<1x1x256xf32, #tpu.memory_space<vmem>>
    %124 = tpu.memref_squeeze %123 : memref<1x1x256xf32, #tpu.memory_space<vmem>> -> memref<1x256xf32, #tpu.memory_space<vmem>>
    %125 = tpu.memref_slice %arg11[%c1_i32_92, %c5_i32_93] : memref<4x8x!tpu.dma_semaphore, #tpu.memory_space<semaphore_mem>> -> memref<1x1x!tpu.dma_semaphore, #tpu.memory_space<semaphore_mem>>
    %126 = tpu.memref_squeeze %125 : memref<1x1x!tpu.dma_semaphore, #tpu.memory_space<semaphore_mem>> -> memref<!tpu.dma_semaphore, #tpu.memory_space<semaphore_mem>>
    tpu.enqueue_dma source(%122 : memref<1x256xf32, #tpu.memory_space<any>>) target(%124 : memref<1x256xf32, #tpu.memory_space<vmem>>) target_semaphore(%126 : memref<!tpu.dma_semaphore, #tpu.memory_space<semaphore_mem>>)
    %c48_i32_97 = arith.constant 48 : i32
    %127 = arith.addi %0, %c48_i32_97 : i32
    %c1_i32_98 = arith.constant 1 : i32
    %128 = arith.addi %127, %c1_i32_98 : i32
    %129 = arith.index_cast %128 : i32 to index
    %130 = memref.load %arg1[%129] : memref<128xi32, #tpu.memory_space<smem>>
    %c1_i32_99 = arith.constant 1 : i32
    %c1_i32_100 = arith.constant 1 : i32
    %c6_i32_101 = arith.constant 6 : i32
    %c0_i32_102 = arith.constant 0 : i32
    %131 = tpu.memref_slice %arg2[%130, %c0_i32_102] : memref<30000x256xf32, #tpu.memory_space<any>> -> memref<1x256xf32, #tpu.memory_space<any>>
    %c6_i32_103 = arith.constant 6 : i32
    %c0_i32_104 = arith.constant 0 : i32
    %132 = tpu.memref_slice %arg10[%c1_i32_99, %c6_i32_103, %c0_i32_104] : memref<4x8x256xf32, #tpu.memory_space<vmem>> -> memref<1x1x256xf32, #tpu.memory_space<vmem>>
    %133 = tpu.memref_squeeze %132 : memref<1x1x256xf32, #tpu.memory_space<vmem>> -> memref<1x256xf32, #tpu.memory_space<vmem>>
    %134 = tpu.memref_slice %arg11[%c1_i32_100, %c6_i32_101] : memref<4x8x!tpu.dma_semaphore, #tpu.memory_space<semaphore_mem>> -> memref<1x1x!tpu.dma_semaphore, #tpu.memory_space<semaphore_mem>>
    %135 = tpu.memref_squeeze %134 : memref<1x1x!tpu.dma_semaphore, #tpu.memory_space<semaphore_mem>> -> memref<!tpu.dma_semaphore, #tpu.memory_space<semaphore_mem>>
    tpu.enqueue_dma source(%131 : memref<1x256xf32, #tpu.memory_space<any>>) target(%133 : memref<1x256xf32, #tpu.memory_space<vmem>>) target_semaphore(%135 : memref<!tpu.dma_semaphore, #tpu.memory_space<semaphore_mem>>)
    %c56_i32_105 = arith.constant 56 : i32
    %136 = arith.addi %0, %c56_i32_105 : i32
    %c1_i32_106 = arith.constant 1 : i32
    %137 = arith.addi %136, %c1_i32_106 : i32
    %138 = arith.index_cast %137 : i32 to index
    %139 = memref.load %arg1[%138] : memref<128xi32, #tpu.memory_space<smem>>
    %c1_i32_107 = arith.constant 1 : i32
    %c1_i32_108 = arith.constant 1 : i32
    %c7_i32_109 = arith.constant 7 : i32
    %c0_i32_110 = arith.constant 0 : i32
    %140 = tpu.memref_slice %arg2[%139, %c0_i32_110] : memref<30000x256xf32, #tpu.memory_space<any>> -> memref<1x256xf32, #tpu.memory_space<any>>
    %c7_i32_111 = arith.constant 7 : i32
    %c0_i32_112 = arith.constant 0 : i32
    %141 = tpu.memref_slice %arg10[%c1_i32_107, %c7_i32_111, %c0_i32_112] : memref<4x8x256xf32, #tpu.memory_space<vmem>> -> memref<1x1x256xf32, #tpu.memory_space<vmem>>
    %142 = tpu.memref_squeeze %141 : memref<1x1x256xf32, #tpu.memory_space<vmem>> -> memref<1x256xf32, #tpu.memory_space<vmem>>
    %143 = tpu.memref_slice %arg11[%c1_i32_108, %c7_i32_109] : memref<4x8x!tpu.dma_semaphore, #tpu.memory_space<semaphore_mem>> -> memref<1x1x!tpu.dma_semaphore, #tpu.memory_space<semaphore_mem>>
    %144 = tpu.memref_squeeze %143 : memref<1x1x!tpu.dma_semaphore, #tpu.memory_space<semaphore_mem>> -> memref<!tpu.dma_semaphore, #tpu.memory_space<semaphore_mem>>
    tpu.enqueue_dma source(%140 : memref<1x256xf32, #tpu.memory_space<any>>) target(%142 : memref<1x256xf32, #tpu.memory_space<vmem>>) target_semaphore(%144 : memref<!tpu.dma_semaphore, #tpu.memory_space<semaphore_mem>>)
    %c0_i32_113 = arith.constant 0 : i32
    %145 = arith.addi %0, %c0_i32_113 : i32
    %c2_i32_114 = arith.constant 2 : i32
    %146 = arith.addi %145, %c2_i32_114 : i32
    %147 = arith.index_cast %146 : i32 to index
    %148 = memref.load %arg1[%147] : memref<128xi32, #tpu.memory_space<smem>>
    %c2_i32_115 = arith.constant 2 : i32
    %c2_i32_116 = arith.constant 2 : i32
    %c0_i32_117 = arith.constant 0 : i32
    %c0_i32_118 = arith.constant 0 : i32
    %149 = tpu.memref_slice %arg2[%148, %c0_i32_118] : memref<30000x256xf32, #tpu.memory_space<any>> -> memref<1x256xf32, #tpu.memory_space<any>>
    %c0_i32_119 = arith.constant 0 : i32
    %c0_i32_120 = arith.constant 0 : i32
    %150 = tpu.memref_slice %arg10[%c2_i32_115, %c0_i32_119, %c0_i32_120] : memref<4x8x256xf32, #tpu.memory_space<vmem>> -> memref<1x1x256xf32, #tpu.memory_space<vmem>>
    %151 = tpu.memref_squeeze %150 : memref<1x1x256xf32, #tpu.memory_space<vmem>> -> memref<1x256xf32, #tpu.memory_space<vmem>>
    %152 = tpu.memref_slice %arg11[%c2_i32_116, %c0_i32_117] : memref<4x8x!tpu.dma_semaphore, #tpu.memory_space<semaphore_mem>> -> memref<1x1x!tpu.dma_semaphore, #tpu.memory_space<semaphore_mem>>
    %153 = tpu.memref_squeeze %152 : memref<1x1x!tpu.dma_semaphore, #tpu.memory_space<semaphore_mem>> -> memref<!tpu.dma_semaphore, #tpu.memory_space<semaphore_mem>>
    tpu.enqueue_dma source(%149 : memref<1x256xf32, #tpu.memory_space<any>>) target(%151 : memref<1x256xf32, #tpu.memory_space<vmem>>) target_semaphore(%153 : memref<!tpu.dma_semaphore, #tpu.memory_space<semaphore_mem>>)
    %c8_i32_121 = arith.constant 8 : i32
    %154 = arith.addi %0, %c8_i32_121 : i32
    %c2_i32_122 = arith.constant 2 : i32
    %155 = arith.addi %154, %c2_i32_122 : i32
    %156 = arith.index_cast %155 : i32 to index
    %157 = memref.load %arg1[%156] : memref<128xi32, #tpu.memory_space<smem>>
    %c2_i32_123 = arith.constant 2 : i32
    %c2_i32_124 = arith.constant 2 : i32
    %c1_i32_125 = arith.constant 1 : i32
    %c0_i32_126 = arith.constant 0 : i32
    %158 = tpu.memref_slice %arg2[%157, %c0_i32_126] : memref<30000x256xf32, #tpu.memory_space<any>> -> memref<1x256xf32, #tpu.memory_space<any>>
    %c1_i32_127 = arith.constant 1 : i32
    %c0_i32_128 = arith.constant 0 : i32
    %159 = tpu.memref_slice %arg10[%c2_i32_123, %c1_i32_127, %c0_i32_128] : memref<4x8x256xf32, #tpu.memory_space<vmem>> -> memref<1x1x256xf32, #tpu.memory_space<vmem>>
    %160 = tpu.memref_squeeze %159 : memref<1x1x256xf32, #tpu.memory_space<vmem>> -> memref<1x256xf32, #tpu.memory_space<vmem>>
    %161 = tpu.memref_slice %arg11[%c2_i32_124, %c1_i32_125] : memref<4x8x!tpu.dma_semaphore, #tpu.memory_space<semaphore_mem>> -> memref<1x1x!tpu.dma_semaphore, #tpu.memory_space<semaphore_mem>>
    %162 = tpu.memref_squeeze %161 : memref<1x1x!tpu.dma_semaphore, #tpu.memory_space<semaphore_mem>> -> memref<!tpu.dma_semaphore, #tpu.memory_space<semaphore_mem>>
    tpu.enqueue_dma source(%158 : memref<1x256xf32, #tpu.memory_space<any>>) target(%160 : memref<1x256xf32, #tpu.memory_space<vmem>>) target_semaphore(%162 : memref<!tpu.dma_semaphore, #tpu.memory_space<semaphore_mem>>)
    %c16_i32_129 = arith.constant 16 : i32
    %163 = arith.addi %0, %c16_i32_129 : i32
    %c2_i32_130 = arith.constant 2 : i32
    %164 = arith.addi %163, %c2_i32_130 : i32
    %165 = arith.index_cast %164 : i32 to index
    %166 = memref.load %arg1[%165] : memref<128xi32, #tpu.memory_space<smem>>
    %c2_i32_131 = arith.constant 2 : i32
    %c2_i32_132 = arith.constant 2 : i32
    %c2_i32_133 = arith.constant 2 : i32
    %c0_i32_134 = arith.constant 0 : i32
    %167 = tpu.memref_slice %arg2[%166, %c0_i32_134] : memref<30000x256xf32, #tpu.memory_space<any>> -> memref<1x256xf32, #tpu.memory_space<any>>
    %c2_i32_135 = arith.constant 2 : i32
    %c0_i32_136 = arith.constant 0 : i32
    %168 = tpu.memref_slice %arg10[%c2_i32_131, %c2_i32_135, %c0_i32_136] : memref<4x8x256xf32, #tpu.memory_space<vmem>> -> memref<1x1x256xf32, #tpu.memory_space<vmem>>
    %169 = tpu.memref_squeeze %168 : memref<1x1x256xf32, #tpu.memory_space<vmem>> -> memref<1x256xf32, #tpu.memory_space<vmem>>
    %170 = tpu.memref_slice %arg11[%c2_i32_132, %c2_i32_133] : memref<4x8x!tpu.dma_semaphore, #tpu.memory_space<semaphore_mem>> -> memref<1x1x!tpu.dma_semaphore, #tpu.memory_space<semaphore_mem>>
    %171 = tpu.memref_squeeze %170 : memref<1x1x!tpu.dma_semaphore, #tpu.memory_space<semaphore_mem>> -> memref<!tpu.dma_semaphore, #tpu.memory_space<semaphore_mem>>
    tpu.enqueue_dma source(%167 : memref<1x256xf32, #tpu.memory_space<any>>) target(%169 : memref<1x256xf32, #tpu.memory_space<vmem>>) target_semaphore(%171 : memref<!tpu.dma_semaphore, #tpu.memory_space<semaphore_mem>>)
    %c24_i32_137 = arith.constant 24 : i32
    %172 = arith.addi %0, %c24_i32_137 : i32
    %c2_i32_138 = arith.constant 2 : i32
    %173 = arith.addi %172, %c2_i32_138 : i32
    %174 = arith.index_cast %173 : i32 to index
    %175 = memref.load %arg1[%174] : memref<128xi32, #tpu.memory_space<smem>>
    %c2_i32_139 = arith.constant 2 : i32
    %c2_i32_140 = arith.constant 2 : i32
    %c3_i32_141 = arith.constant 3 : i32
    %c0_i32_142 = arith.constant 0 : i32
    %176 = tpu.memref_slice %arg2[%175, %c0_i32_142] : memref<30000x256xf32, #tpu.memory_space<any>> -> memref<1x256xf32, #tpu.memory_space<any>>
    %c3_i32_143 = arith.constant 3 : i32
    %c0_i32_144 = arith.constant 0 : i32
    %177 = tpu.memref_slice %arg10[%c2_i32_139, %c3_i32_143, %c0_i32_144] : memref<4x8x256xf32, #tpu.memory_space<vmem>> -> memref<1x1x256xf32, #tpu.memory_space<vmem>>
    %178 = tpu.memref_squeeze %177 : memref<1x1x256xf32, #tpu.memory_space<vmem>> -> memref<1x256xf32, #tpu.memory_space<vmem>>
    %179 = tpu.memref_slice %arg11[%c2_i32_140, %c3_i32_141] : memref<4x8x!tpu.dma_semaphore, #tpu.memory_space<semaphore_mem>> -> memref<1x1x!tpu.dma_semaphore, #tpu.memory_space<semaphore_mem>>
    %180 = tpu.memref_squeeze %179 : memref<1x1x!tpu.dma_semaphore, #tpu.memory_space<semaphore_mem>> -> memref<!tpu.dma_semaphore, #tpu.memory_space<semaphore_mem>>
    tpu.enqueue_dma source(%176 : memref<1x256xf32, #tpu.memory_space<any>>) target(%178 : memref<1x256xf32, #tpu.memory_space<vmem>>) target_semaphore(%180 : memref<!tpu.dma_semaphore, #tpu.memory_space<semaphore_mem>>)
    %c32_i32_145 = arith.constant 32 : i32
    %181 = arith.addi %0, %c32_i32_145 : i32
    %c2_i32_146 = arith.constant 2 : i32
    %182 = arith.addi %181, %c2_i32_146 : i32
    %183 = arith.index_cast %182 : i32 to index
    %184 = memref.load %arg1[%183] : memref<128xi32, #tpu.memory_space<smem>>
    %c2_i32_147 = arith.constant 2 : i32
    %c2_i32_148 = arith.constant 2 : i32
    %c4_i32_149 = arith.constant 4 : i32
    %c0_i32_150 = arith.constant 0 : i32
    %185 = tpu.memref_slice %arg2[%184, %c0_i32_150] : memref<30000x256xf32, #tpu.memory_space<any>> -> memref<1x256xf32, #tpu.memory_space<any>>
    %c4_i32_151 = arith.constant 4 : i32
    %c0_i32_152 = arith.constant 0 : i32
    %186 = tpu.memref_slice %arg10[%c2_i32_147, %c4_i32_151, %c0_i32_152] : memref<4x8x256xf32, #tpu.memory_space<vmem>> -> memref<1x1x256xf32, #tpu.memory_space<vmem>>
    %187 = tpu.memref_squeeze %186 : memref<1x1x256xf32, #tpu.memory_space<vmem>> -> memref<1x256xf32, #tpu.memory_space<vmem>>
    %188 = tpu.memref_slice %arg11[%c2_i32_148, %c4_i32_149] : memref<4x8x!tpu.dma_semaphore, #tpu.memory_space<semaphore_mem>> -> memref<1x1x!tpu.dma_semaphore, #tpu.memory_space<semaphore_mem>>
    %189 = tpu.memref_squeeze %188 : memref<1x1x!tpu.dma_semaphore, #tpu.memory_space<semaphore_mem>> -> memref<!tpu.dma_semaphore, #tpu.memory_space<semaphore_mem>>
    tpu.enqueue_dma source(%185 : memref<1x256xf32, #tpu.memory_space<any>>) target(%187 : memref<1x256xf32, #tpu.memory_space<vmem>>) target_semaphore(%189 : memref<!tpu.dma_semaphore, #tpu.memory_space<semaphore_mem>>)
    %c40_i32_153 = arith.constant 40 : i32
    %190 = arith.addi %0, %c40_i32_153 : i32
    %c2_i32_154 = arith.constant 2 : i32
    %191 = arith.addi %190, %c2_i32_154 : i32
    %192 = arith.index_cast %191 : i32 to index
    %193 = memref.load %arg1[%192] : memref<128xi32, #tpu.memory_space<smem>>
    %c2_i32_155 = arith.constant 2 : i32
    %c2_i32_156 = arith.constant 2 : i32
    %c5_i32_157 = arith.constant 5 : i32
    %c0_i32_158 = arith.constant 0 : i32
    %194 = tpu.memref_slice %arg2[%193, %c0_i32_158] : memref<30000x256xf32, #tpu.memory_space<any>> -> memref<1x256xf32, #tpu.memory_space<any>>
    %c5_i32_159 = arith.constant 5 : i32
    %c0_i32_160 = arith.constant 0 : i32
    %195 = tpu.memref_slice %arg10[%c2_i32_155, %c5_i32_159, %c0_i32_160] : memref<4x8x256xf32, #tpu.memory_space<vmem>> -> memref<1x1x256xf32, #tpu.memory_space<vmem>>
    %196 = tpu.memref_squeeze %195 : memref<1x1x256xf32, #tpu.memory_space<vmem>> -> memref<1x256xf32, #tpu.memory_space<vmem>>
    %197 = tpu.memref_slice %arg11[%c2_i32_156, %c5_i32_157] : memref<4x8x!tpu.dma_semaphore, #tpu.memory_space<semaphore_mem>> -> memref<1x1x!tpu.dma_semaphore, #tpu.memory_space<semaphore_mem>>
    %198 = tpu.memref_squeeze %197 : memref<1x1x!tpu.dma_semaphore, #tpu.memory_space<semaphore_mem>> -> memref<!tpu.dma_semaphore, #tpu.memory_space<semaphore_mem>>
    tpu.enqueue_dma source(%194 : memref<1x256xf32, #tpu.memory_space<any>>) target(%196 : memref<1x256xf32, #tpu.memory_space<vmem>>) target_semaphore(%198 : memref<!tpu.dma_semaphore, #tpu.memory_space<semaphore_mem>>)
    %c48_i32_161 = arith.constant 48 : i32
    %199 = arith.addi %0, %c48_i32_161 : i32
    %c2_i32_162 = arith.constant 2 : i32
    %200 = arith.addi %199, %c2_i32_162 : i32
    %201 = arith.index_cast %200 : i32 to index
    %202 = memref.load %arg1[%201] : memref<128xi32, #tpu.memory_space<smem>>
    %c2_i32_163 = arith.constant 2 : i32
    %c2_i32_164 = arith.constant 2 : i32
    %c6_i32_165 = arith.constant 6 : i32
    %c0_i32_166 = arith.constant 0 : i32
    %203 = tpu.memref_slice %arg2[%202, %c0_i32_166] : memref<30000x256xf32, #tpu.memory_space<any>> -> memref<1x256xf32, #tpu.memory_space<any>>
    %c6_i32_167 = arith.constant 6 : i32
    %c0_i32_168 = arith.constant 0 : i32
    %204 = tpu.memref_slice %arg10[%c2_i32_163, %c6_i32_167, %c0_i32_168] : memref<4x8x256xf32, #tpu.memory_space<vmem>> -> memref<1x1x256xf32, #tpu.memory_space<vmem>>
    %205 = tpu.memref_squeeze %204 : memref<1x1x256xf32, #tpu.memory_space<vmem>> -> memref<1x256xf32, #tpu.memory_space<vmem>>
    %206 = tpu.memref_slice %arg11[%c2_i32_164, %c6_i32_165] : memref<4x8x!tpu.dma_semaphore, #tpu.memory_space<semaphore_mem>> -> memref<1x1x!tpu.dma_semaphore, #tpu.memory_space<semaphore_mem>>
    %207 = tpu.memref_squeeze %206 : memref<1x1x!tpu.dma_semaphore, #tpu.memory_space<semaphore_mem>> -> memref<!tpu.dma_semaphore, #tpu.memory_space<semaphore_mem>>
    tpu.enqueue_dma source(%203 : memref<1x256xf32, #tpu.memory_space<any>>) target(%205 : memref<1x256xf32, #tpu.memory_space<vmem>>) target_semaphore(%207 : memref<!tpu.dma_semaphore, #tpu.memory_space<semaphore_mem>>)
    %c56_i32_169 = arith.constant 56 : i32
    %208 = arith.addi %0, %c56_i32_169 : i32
    %c2_i32_170 = arith.constant 2 : i32
    %209 = arith.addi %208, %c2_i32_170 : i32
    %210 = arith.index_cast %209 : i32 to index
    %211 = memref.load %arg1[%210] : memref<128xi32, #tpu.memory_space<smem>>
    %c2_i32_171 = arith.constant 2 : i32
    %c2_i32_172 = arith.constant 2 : i32
    %c7_i32_173 = arith.constant 7 : i32
    %c0_i32_174 = arith.constant 0 : i32
    %212 = tpu.memref_slice %arg2[%211, %c0_i32_174] : memref<30000x256xf32, #tpu.memory_space<any>> -> memref<1x256xf32, #tpu.memory_space<any>>
    %c7_i32_175 = arith.constant 7 : i32
    %c0_i32_176 = arith.constant 0 : i32
    %213 = tpu.memref_slice %arg10[%c2_i32_171, %c7_i32_175, %c0_i32_176] : memref<4x8x256xf32, #tpu.memory_space<vmem>> -> memref<1x1x256xf32, #tpu.memory_space<vmem>>
    %214 = tpu.memref_squeeze %213 : memref<1x1x256xf32, #tpu.memory_space<vmem>> -> memref<1x256xf32, #tpu.memory_space<vmem>>
    %215 = tpu.memref_slice %arg11[%c2_i32_172, %c7_i32_173] : memref<4x8x!tpu.dma_semaphore, #tpu.memory_space<semaphore_mem>> -> memref<1x1x!tpu.dma_semaphore, #tpu.memory_space<semaphore_mem>>
    %216 = tpu.memref_squeeze %215 : memref<1x1x!tpu.dma_semaphore, #tpu.memory_space<semaphore_mem>> -> memref<!tpu.dma_semaphore, #tpu.memory_space<semaphore_mem>>
    tpu.enqueue_dma source(%212 : memref<1x256xf32, #tpu.memory_space<any>>) target(%214 : memref<1x256xf32, #tpu.memory_space<vmem>>) target_semaphore(%216 : memref<!tpu.dma_semaphore, #tpu.memory_space<semaphore_mem>>)
    %c0_i32_177 = arith.constant 0 : i32
    %217 = arith.addi %0, %c0_i32_177 : i32
    %c3_i32_178 = arith.constant 3 : i32
    %218 = arith.addi %217, %c3_i32_178 : i32
    %219 = arith.index_cast %218 : i32 to index
    %220 = memref.load %arg1[%219] : memref<128xi32, #tpu.memory_space<smem>>
    %c3_i32_179 = arith.constant 3 : i32
    %c3_i32_180 = arith.constant 3 : i32
    %c0_i32_181 = arith.constant 0 : i32
    %c0_i32_182 = arith.constant 0 : i32
    %221 = tpu.memref_slice %arg2[%220, %c0_i32_182] : memref<30000x256xf32, #tpu.memory_space<any>> -> memref<1x256xf32, #tpu.memory_space<any>>
    %c0_i32_183 = arith.constant 0 : i32
    %c0_i32_184 = arith.constant 0 : i32
    %222 = tpu.memref_slice %arg10[%c3_i32_179, %c0_i32_183, %c0_i32_184] : memref<4x8x256xf32, #tpu.memory_space<vmem>> -> memref<1x1x256xf32, #tpu.memory_space<vmem>>
    %223 = tpu.memref_squeeze %222 : memref<1x1x256xf32, #tpu.memory_space<vmem>> -> memref<1x256xf32, #tpu.memory_space<vmem>>
    %224 = tpu.memref_slice %arg11[%c3_i32_180, %c0_i32_181] : memref<4x8x!tpu.dma_semaphore, #tpu.memory_space<semaphore_mem>> -> memref<1x1x!tpu.dma_semaphore, #tpu.memory_space<semaphore_mem>>
    %225 = tpu.memref_squeeze %224 : memref<1x1x!tpu.dma_semaphore, #tpu.memory_space<semaphore_mem>> -> memref<!tpu.dma_semaphore, #tpu.memory_space<semaphore_mem>>
    tpu.enqueue_dma source(%221 : memref<1x256xf32, #tpu.memory_space<any>>) target(%223 : memref<1x256xf32, #tpu.memory_space<vmem>>) target_semaphore(%225 : memref<!tpu.dma_semaphore, #tpu.memory_space<semaphore_mem>>)
    %c8_i32_185 = arith.constant 8 : i32
    %226 = arith.addi %0, %c8_i32_185 : i32
    %c3_i32_186 = arith.constant 3 : i32
    %227 = arith.addi %226, %c3_i32_186 : i32
    %228 = arith.index_cast %227 : i32 to index
    %229 = memref.load %arg1[%228] : memref<128xi32, #tpu.memory_space<smem>>
    %c3_i32_187 = arith.constant 3 : i32
    %c3_i32_188 = arith.constant 3 : i32
    %c1_i32_189 = arith.constant 1 : i32
    %c0_i32_190 = arith.constant 0 : i32
    %230 = tpu.memref_slice %arg2[%229, %c0_i32_190] : memref<30000x256xf32, #tpu.memory_space<any>> -> memref<1x256xf32, #tpu.memory_space<any>>
    %c1_i32_191 = arith.constant 1 : i32
    %c0_i32_192 = arith.constant 0 : i32
    %231 = tpu.memref_slice %arg10[%c3_i32_187, %c1_i32_191, %c0_i32_192] : memref<4x8x256xf32, #tpu.memory_space<vmem>> -> memref<1x1x256xf32, #tpu.memory_space<vmem>>
    %232 = tpu.memref_squeeze %231 : memref<1x1x256xf32, #tpu.memory_space<vmem>> -> memref<1x256xf32, #tpu.memory_space<vmem>>
    %233 = tpu.memref_slice %arg11[%c3_i32_188, %c1_i32_189] : memref<4x8x!tpu.dma_semaphore, #tpu.memory_space<semaphore_mem>> -> memref<1x1x!tpu.dma_semaphore, #tpu.memory_space<semaphore_mem>>
    %234 = tpu.memref_squeeze %233 : memref<1x1x!tpu.dma_semaphore, #tpu.memory_space<semaphore_mem>> -> memref<!tpu.dma_semaphore, #tpu.memory_space<semaphore_mem>>
    tpu.enqueue_dma source(%230 : memref<1x256xf32, #tpu.memory_space<any>>) target(%232 : memref<1x256xf32, #tpu.memory_space<vmem>>) target_semaphore(%234 : memref<!tpu.dma_semaphore, #tpu.memory_space<semaphore_mem>>)
    %c16_i32_193 = arith.constant 16 : i32
    %235 = arith.addi %0, %c16_i32_193 : i32
    %c3_i32_194 = arith.constant 3 : i32
    %236 = arith.addi %235, %c3_i32_194 : i32
    %237 = arith.index_cast %236 : i32 to index
    %238 = memref.load %arg1[%237] : memref<128xi32, #tpu.memory_space<smem>>
    %c3_i32_195 = arith.constant 3 : i32
    %c3_i32_196 = arith.constant 3 : i32
    %c2_i32_197 = arith.constant 2 : i32
    %c0_i32_198 = arith.constant 0 : i32
    %239 = tpu.memref_slice %arg2[%238, %c0_i32_198] : memref<30000x256xf32, #tpu.memory_space<any>> -> memref<1x256xf32, #tpu.memory_space<any>>
    %c2_i32_199 = arith.constant 2 : i32
    %c0_i32_200 = arith.constant 0 : i32
    %240 = tpu.memref_slice %arg10[%c3_i32_195, %c2_i32_199, %c0_i32_200] : memref<4x8x256xf32, #tpu.memory_space<vmem>> -> memref<1x1x256xf32, #tpu.memory_space<vmem>>
    %241 = tpu.memref_squeeze %240 : memref<1x1x256xf32, #tpu.memory_space<vmem>> -> memref<1x256xf32, #tpu.memory_space<vmem>>
    %242 = tpu.memref_slice %arg11[%c3_i32_196, %c2_i32_197] : memref<4x8x!tpu.dma_semaphore, #tpu.memory_space<semaphore_mem>> -> memref<1x1x!tpu.dma_semaphore, #tpu.memory_space<semaphore_mem>>
    %243 = tpu.memref_squeeze %242 : memref<1x1x!tpu.dma_semaphore, #tpu.memory_space<semaphore_mem>> -> memref<!tpu.dma_semaphore, #tpu.memory_space<semaphore_mem>>
    tpu.enqueue_dma source(%239 : memref<1x256xf32, #tpu.memory_space<any>>) target(%241 : memref<1x256xf32, #tpu.memory_space<vmem>>) target_semaphore(%243 : memref<!tpu.dma_semaphore, #tpu.memory_space<semaphore_mem>>)
    %c24_i32_201 = arith.constant 24 : i32
    %244 = arith.addi %0, %c24_i32_201 : i32
    %c3_i32_202 = arith.constant 3 : i32
    %245 = arith.addi %244, %c3_i32_202 : i32
    %246 = arith.index_cast %245 : i32 to index
    %247 = memref.load %arg1[%246] : memref<128xi32, #tpu.memory_space<smem>>
    %c3_i32_203 = arith.constant 3 : i32
    %c3_i32_204 = arith.constant 3 : i32
    %c3_i32_205 = arith.constant 3 : i32
    %c0_i32_206 = arith.constant 0 : i32
    %248 = tpu.memref_slice %arg2[%247, %c0_i32_206] : memref<30000x256xf32, #tpu.memory_space<any>> -> memref<1x256xf32, #tpu.memory_space<any>>
    %c3_i32_207 = arith.constant 3 : i32
    %c0_i32_208 = arith.constant 0 : i32
    %249 = tpu.memref_slice %arg10[%c3_i32_203, %c3_i32_207, %c0_i32_208] : memref<4x8x256xf32, #tpu.memory_space<vmem>> -> memref<1x1x256xf32, #tpu.memory_space<vmem>>
    %250 = tpu.memref_squeeze %249 : memref<1x1x256xf32, #tpu.memory_space<vmem>> -> memref<1x256xf32, #tpu.memory_space<vmem>>
    %251 = tpu.memref_slice %arg11[%c3_i32_204, %c3_i32_205] : memref<4x8x!tpu.dma_semaphore, #tpu.memory_space<semaphore_mem>> -> memref<1x1x!tpu.dma_semaphore, #tpu.memory_space<semaphore_mem>>
    %252 = tpu.memref_squeeze %251 : memref<1x1x!tpu.dma_semaphore, #tpu.memory_space<semaphore_mem>> -> memref<!tpu.dma_semaphore, #tpu.memory_space<semaphore_mem>>
    tpu.enqueue_dma source(%248 : memref<1x256xf32, #tpu.memory_space<any>>) target(%250 : memref<1x256xf32, #tpu.memory_space<vmem>>) target_semaphore(%252 : memref<!tpu.dma_semaphore, #tpu.memory_space<semaphore_mem>>)
    %c32_i32_209 = arith.constant 32 : i32
    %253 = arith.addi %0, %c32_i32_209 : i32
    %c3_i32_210 = arith.constant 3 : i32
    %254 = arith.addi %253, %c3_i32_210 : i32
    %255 = arith.index_cast %254 : i32 to index
    %256 = memref.load %arg1[%255] : memref<128xi32, #tpu.memory_space<smem>>
    %c3_i32_211 = arith.constant 3 : i32
    %c3_i32_212 = arith.constant 3 : i32
    %c4_i32_213 = arith.constant 4 : i32
    %c0_i32_214 = arith.constant 0 : i32
    %257 = tpu.memref_slice %arg2[%256, %c0_i32_214] : memref<30000x256xf32, #tpu.memory_space<any>> -> memref<1x256xf32, #tpu.memory_space<any>>
    %c4_i32_215 = arith.constant 4 : i32
    %c0_i32_216 = arith.constant 0 : i32
    %258 = tpu.memref_slice %arg10[%c3_i32_211, %c4_i32_215, %c0_i32_216] : memref<4x8x256xf32, #tpu.memory_space<vmem>> -> memref<1x1x256xf32, #tpu.memory_space<vmem>>
    %259 = tpu.memref_squeeze %258 : memref<1x1x256xf32, #tpu.memory_space<vmem>> -> memref<1x256xf32, #tpu.memory_space<vmem>>
    %260 = tpu.memref_slice %arg11[%c3_i32_212, %c4_i32_213] : memref<4x8x!tpu.dma_semaphore, #tpu.memory_space<semaphore_mem>> -> memref<1x1x!tpu.dma_semaphore, #tpu.memory_space<semaphore_mem>>
    %261 = tpu.memref_squeeze %260 : memref<1x1x!tpu.dma_semaphore, #tpu.memory_space<semaphore_mem>> -> memref<!tpu.dma_semaphore, #tpu.memory_space<semaphore_mem>>
    tpu.enqueue_dma source(%257 : memref<1x256xf32, #tpu.memory_space<any>>) target(%259 : memref<1x256xf32, #tpu.memory_space<vmem>>) target_semaphore(%261 : memref<!tpu.dma_semaphore, #tpu.memory_space<semaphore_mem>>)
    %c40_i32_217 = arith.constant 40 : i32
    %262 = arith.addi %0, %c40_i32_217 : i32
    %c3_i32_218 = arith.constant 3 : i32
    %263 = arith.addi %262, %c3_i32_218 : i32
    %264 = arith.index_cast %263 : i32 to index
    %265 = memref.load %arg1[%264] : memref<128xi32, #tpu.memory_space<smem>>
    %c3_i32_219 = arith.constant 3 : i32
    %c3_i32_220 = arith.constant 3 : i32
    %c5_i32_221 = arith.constant 5 : i32
    %c0_i32_222 = arith.constant 0 : i32
    %266 = tpu.memref_slice %arg2[%265, %c0_i32_222] : memref<30000x256xf32, #tpu.memory_space<any>> -> memref<1x256xf32, #tpu.memory_space<any>>
    %c5_i32_223 = arith.constant 5 : i32
    %c0_i32_224 = arith.constant 0 : i32
    %267 = tpu.memref_slice %arg10[%c3_i32_219, %c5_i32_223, %c0_i32_224] : memref<4x8x256xf32, #tpu.memory_space<vmem>> -> memref<1x1x256xf32, #tpu.memory_space<vmem>>
    %268 = tpu.memref_squeeze %267 : memref<1x1x256xf32, #tpu.memory_space<vmem>> -> memref<1x256xf32, #tpu.memory_space<vmem>>
    %269 = tpu.memref_slice %arg11[%c3_i32_220, %c5_i32_221] : memref<4x8x!tpu.dma_semaphore, #tpu.memory_space<semaphore_mem>> -> memref<1x1x!tpu.dma_semaphore, #tpu.memory_space<semaphore_mem>>
    %270 = tpu.memref_squeeze %269 : memref<1x1x!tpu.dma_semaphore, #tpu.memory_space<semaphore_mem>> -> memref<!tpu.dma_semaphore, #tpu.memory_space<semaphore_mem>>
    tpu.enqueue_dma source(%266 : memref<1x256xf32, #tpu.memory_space<any>>) target(%268 : memref<1x256xf32, #tpu.memory_space<vmem>>) target_semaphore(%270 : memref<!tpu.dma_semaphore, #tpu.memory_space<semaphore_mem>>)
    %c48_i32_225 = arith.constant 48 : i32
    %271 = arith.addi %0, %c48_i32_225 : i32
    %c3_i32_226 = arith.constant 3 : i32
    %272 = arith.addi %271, %c3_i32_226 : i32
    %273 = arith.index_cast %272 : i32 to index
    %274 = memref.load %arg1[%273] : memref<128xi32, #tpu.memory_space<smem>>
    %c3_i32_227 = arith.constant 3 : i32
    %c3_i32_228 = arith.constant 3 : i32
    %c6_i32_229 = arith.constant 6 : i32
    %c0_i32_230 = arith.constant 0 : i32
    %275 = tpu.memref_slice %arg2[%274, %c0_i32_230] : memref<30000x256xf32, #tpu.memory_space<any>> -> memref<1x256xf32, #tpu.memory_space<any>>
    %c6_i32_231 = arith.constant 6 : i32
    %c0_i32_232 = arith.constant 0 : i32
    %276 = tpu.memref_slice %arg10[%c3_i32_227, %c6_i32_231, %c0_i32_232] : memref<4x8x256xf32, #tpu.memory_space<vmem>> -> memref<1x1x256xf32, #tpu.memory_space<vmem>>
    %277 = tpu.memref_squeeze %276 : memref<1x1x256xf32, #tpu.memory_space<vmem>> -> memref<1x256xf32, #tpu.memory_space<vmem>>
    %278 = tpu.memref_slice %arg11[%c3_i32_228, %c6_i32_229] : memref<4x8x!tpu.dma_semaphore, #tpu.memory_space<semaphore_mem>> -> memref<1x1x!tpu.dma_semaphore, #tpu.memory_space<semaphore_mem>>
    %279 = tpu.memref_squeeze %278 : memref<1x1x!tpu.dma_semaphore, #tpu.memory_space<semaphore_mem>> -> memref<!tpu.dma_semaphore, #tpu.memory_space<semaphore_mem>>
    tpu.enqueue_dma source(%275 : memref<1x256xf32, #tpu.memory_space<any>>) target(%277 : memref<1x256xf32, #tpu.memory_space<vmem>>) target_semaphore(%279 : memref<!tpu.dma_semaphore, #tpu.memory_space<semaphore_mem>>)
    %c56_i32_233 = arith.constant 56 : i32
    %280 = arith.addi %0, %c56_i32_233 : i32
    %c3_i32_234 = arith.constant 3 : i32
    %281 = arith.addi %280, %c3_i32_234 : i32
    %282 = arith.index_cast %281 : i32 to index
    %283 = memref.load %arg1[%282] : memref<128xi32, #tpu.memory_space<smem>>
    %c3_i32_235 = arith.constant 3 : i32
    %c3_i32_236 = arith.constant 3 : i32
    %c7_i32_237 = arith.constant 7 : i32
    %c0_i32_238 = arith.constant 0 : i32
    %284 = tpu.memref_slice %arg2[%283, %c0_i32_238] : memref<30000x256xf32, #tpu.memory_space<any>> -> memref<1x256xf32, #tpu.memory_space<any>>
    %c7_i32_239 = arith.constant 7 : i32
    %c0_i32_240 = arith.constant 0 : i32
    %285 = tpu.memref_slice %arg10[%c3_i32_235, %c7_i32_239, %c0_i32_240] : memref<4x8x256xf32, #tpu.memory_space<vmem>> -> memref<1x1x256xf32, #tpu.memory_space<vmem>>
    %286 = tpu.memref_squeeze %285 : memref<1x1x256xf32, #tpu.memory_space<vmem>> -> memref<1x256xf32, #tpu.memory_space<vmem>>
    %287 = tpu.memref_slice %arg11[%c3_i32_236, %c7_i32_237] : memref<4x8x!tpu.dma_semaphore, #tpu.memory_space<semaphore_mem>> -> memref<1x1x!tpu.dma_semaphore, #tpu.memory_space<semaphore_mem>>
    %288 = tpu.memref_squeeze %287 : memref<1x1x!tpu.dma_semaphore, #tpu.memory_space<semaphore_mem>> -> memref<!tpu.dma_semaphore, #tpu.memory_space<semaphore_mem>>
    tpu.enqueue_dma source(%284 : memref<1x256xf32, #tpu.memory_space<any>>) target(%286 : memref<1x256xf32, #tpu.memory_space<vmem>>) target_semaphore(%288 : memref<!tpu.dma_semaphore, #tpu.memory_space<semaphore_mem>>)
    %cst = arith.constant 0.000000e+00 : f32
    %289 = vector.broadcast %cst : f32 to vector<8x256xf32>
    %c0_i32_241 = arith.constant 0 : i32
    %c2_i32_242 = arith.constant 2 : i32
    %290 = arith.addi %c0_i32_241, %c2_i32_242 : i32
    %c1_i32_243 = arith.constant 1 : i32
    %291 = scf.for %arg12 = %c0_i32_241 to %290 step %c1_i32_243 iter_args(%arg13 = %289) -> (vector<8x256xf32>)  : i32 {
      %c4_i32_269 = arith.constant 4 : i32
      %330 = arith.muli %arg12, %c4_i32_269 : i32
      %c0_i32_270 = arith.constant 0 : i32
      %331 = arith.addi %330, %c0_i32_270 : i32
      %c4_i32_271 = arith.constant 4 : i32
      %332 = arith.addi %331, %c4_i32_271 : i32
      %c7_i32_272 = arith.constant 7 : i32
      %333 = arith.minsi %332, %c7_i32_272 : i32
      %c0_i32_273 = arith.constant 0 : i32
      %334 = arith.addi %0, %c0_i32_273 : i32
      %335 = arith.addi %334, %333 : i32
      %336 = arith.index_cast %335 : i32 to index
      %337 = memref.load %arg1[%336] : memref<128xi32, #tpu.memory_space<smem>>
      %c8_i32_274 = arith.constant 8 : i32
      %338 = arith.addi %0, %c8_i32_274 : i32
      %339 = arith.addi %338, %333 : i32
      %340 = arith.index_cast %339 : i32 to index
      %341 = memref.load %arg1[%340] : memref<128xi32, #tpu.memory_space<smem>>
      %c16_i32_275 = arith.constant 16 : i32
      %342 = arith.addi %0, %c16_i32_275 : i32
      %343 = arith.addi %342, %333 : i32
      %344 = arith.index_cast %343 : i32 to index
      %345 = memref.load %arg1[%344] : memref<128xi32, #tpu.memory_space<smem>>
      %c24_i32_276 = arith.constant 24 : i32
      %346 = arith.addi %0, %c24_i32_276 : i32
      %347 = arith.addi %346, %333 : i32
      %348 = arith.index_cast %347 : i32 to index
      %349 = memref.load %arg1[%348] : memref<128xi32, #tpu.memory_space<smem>>
      %c32_i32_277 = arith.constant 32 : i32
      %350 = arith.addi %0, %c32_i32_277 : i32
      %351 = arith.addi %350, %333 : i32
      %352 = arith.index_cast %351 : i32 to index
      %353 = memref.load %arg1[%352] : memref<128xi32, #tpu.memory_space<smem>>
      %c40_i32_278 = arith.constant 40 : i32
      %354 = arith.addi %0, %c40_i32_278 : i32
      %355 = arith.addi %354, %333 : i32
      %356 = arith.index_cast %355 : i32 to index
      %357 = memref.load %arg1[%356] : memref<128xi32, #tpu.memory_space<smem>>
      %c48_i32_279 = arith.constant 48 : i32
      %358 = arith.addi %0, %c48_i32_279 : i32
      %359 = arith.addi %358, %333 : i32
      %360 = arith.index_cast %359 : i32 to index
      %361 = memref.load %arg1[%360] : memref<128xi32, #tpu.memory_space<smem>>
      %c56_i32_280 = arith.constant 56 : i32
      %362 = arith.addi %0, %c56_i32_280 : i32
      %363 = arith.addi %362, %333 : i32
      %364 = arith.index_cast %363 : i32 to index
      %365 = memref.load %arg1[%364] : memref<128xi32, #tpu.memory_space<smem>>
      %c0_i32_281 = arith.constant 0 : i32
      %c0_i32_282 = arith.constant 0 : i32
      %c0_i32_283 = arith.constant 0 : i32
      %c0_i32_284 = arith.constant 0 : i32
      %c0_i32_285 = arith.constant 0 : i32
      %366 = tpu.memref_slice %arg2[%c0_i32_284, %c0_i32_285] : memref<30000x256xf32, #tpu.memory_space<any>> -> memref<1x256xf32, #tpu.memory_space<any>>
      %c0_i32_286 = arith.constant 0 : i32
      %c0_i32_287 = arith.constant 0 : i32
      %367 = tpu.memref_slice %arg10[%c0_i32_281, %c0_i32_286, %c0_i32_287] : memref<4x8x256xf32, #tpu.memory_space<vmem>> -> memref<1x1x256xf32, #tpu.memory_space<vmem>>
      %368 = tpu.memref_squeeze %367 : memref<1x1x256xf32, #tpu.memory_space<vmem>> -> memref<1x256xf32, #tpu.memory_space<vmem>>
      %369 = tpu.memref_slice %arg11[%c0_i32_282, %c0_i32_283] : memref<4x8x!tpu.dma_semaphore, #tpu.memory_space<semaphore_mem>> -> memref<1x1x!tpu.dma_semaphore, #tpu.memory_space<semaphore_mem>>
      %370 = tpu.memref_squeeze %369 : memref<1x1x!tpu.dma_semaphore, #tpu.memory_space<semaphore_mem>> -> memref<!tpu.dma_semaphore, #tpu.memory_space<semaphore_mem>>
      tpu.wait_dma2 semaphore(%370 : memref<!tpu.dma_semaphore, #tpu.memory_space<semaphore_mem>>) src(%366 : memref<1x256xf32, #tpu.memory_space<any>>) dst(%368 : memref<1x256xf32, #tpu.memory_space<vmem>>)
      %c0_i32_288 = arith.constant 0 : i32
      %c0_i32_289 = arith.constant 0 : i32
      %c1_i32_290 = arith.constant 1 : i32
      %c0_i32_291 = arith.constant 0 : i32
      %c0_i32_292 = arith.constant 0 : i32
      %371 = tpu.memref_slice %arg2[%c0_i32_291, %c0_i32_292] : memref<30000x256xf32, #tpu.memory_space<any>> -> memref<1x256xf32, #tpu.memory_space<any>>
      %c1_i32_293 = arith.constant 1 : i32
      %c0_i32_294 = arith.constant 0 : i32
      %372 = tpu.memref_slice %arg10[%c0_i32_288, %c1_i32_293, %c0_i32_294] : memref<4x8x256xf32, #tpu.memory_space<vmem>> -> memref<1x1x256xf32, #tpu.memory_space<vmem>>
      %373 = tpu.memref_squeeze %372 : memref<1x1x256xf32, #tpu.memory_space<vmem>> -> memref<1x256xf32, #tpu.memory_space<vmem>>
      %374 = tpu.memref_slice %arg11[%c0_i32_289, %c1_i32_290] : memref<4x8x!tpu.dma_semaphore, #tpu.memory_space<semaphore_mem>> -> memref<1x1x!tpu.dma_semaphore, #tpu.memory_space<semaphore_mem>>
      %375 = tpu.memref_squeeze %374 : memref<1x1x!tpu.dma_semaphore, #tpu.memory_space<semaphore_mem>> -> memref<!tpu.dma_semaphore, #tpu.memory_space<semaphore_mem>>
      tpu.wait_dma2 semaphore(%375 : memref<!tpu.dma_semaphore, #tpu.memory_space<semaphore_mem>>) src(%371 : memref<1x256xf32, #tpu.memory_space<any>>) dst(%373 : memref<1x256xf32, #tpu.memory_space<vmem>>)
      %c0_i32_295 = arith.constant 0 : i32
      %c0_i32_296 = arith.constant 0 : i32
      %c2_i32_297 = arith.constant 2 : i32
      %c0_i32_298 = arith.constant 0 : i32
      %c0_i32_299 = arith.constant 0 : i32
      %376 = tpu.memref_slice %arg2[%c0_i32_298, %c0_i32_299] : memref<30000x256xf32, #tpu.memory_space<any>> -> memref<1x256xf32, #tpu.memory_space<any>>
      %c2_i32_300 = arith.constant 2 : i32
      %c0_i32_301 = arith.constant 0 : i32
      %377 = tpu.memref_slice %arg10[%c0_i32_295, %c2_i32_300, %c0_i32_301] : memref<4x8x256xf32, #tpu.memory_space<vmem>> -> memref<1x1x256xf32, #tpu.memory_space<vmem>>
      %378 = tpu.memref_squeeze %377 : memref<1x1x256xf32, #tpu.memory_space<vmem>> -> memref<1x256xf32, #tpu.memory_space<vmem>>
      %379 = tpu.memref_slice %arg11[%c0_i32_296, %c2_i32_297] : memref<4x8x!tpu.dma_semaphore, #tpu.memory_space<semaphore_mem>> -> memref<1x1x!tpu.dma_semaphore, #tpu.memory_space<semaphore_mem>>
      %380 = tpu.memref_squeeze %379 : memref<1x1x!tpu.dma_semaphore, #tpu.memory_space<semaphore_mem>> -> memref<!tpu.dma_semaphore, #tpu.memory_space<semaphore_mem>>
      tpu.wait_dma2 semaphore(%380 : memref<!tpu.dma_semaphore, #tpu.memory_space<semaphore_mem>>) src(%376 : memref<1x256xf32, #tpu.memory_space<any>>) dst(%378 : memref<1x256xf32, #tpu.memory_space<vmem>>)
      %c0_i32_302 = arith.constant 0 : i32
      %c0_i32_303 = arith.constant 0 : i32
      %c3_i32_304 = arith.constant 3 : i32
      %c0_i32_305 = arith.constant 0 : i32
      %c0_i32_306 = arith.constant 0 : i32
      %381 = tpu.memref_slice %arg2[%c0_i32_305, %c0_i32_306] : memref<30000x256xf32, #tpu.memory_space<any>> -> memref<1x256xf32, #tpu.memory_space<any>>
      %c3_i32_307 = arith.constant 3 : i32
      %c0_i32_308 = arith.constant 0 : i32
      %382 = tpu.memref_slice %arg10[%c0_i32_302, %c3_i32_307, %c0_i32_308] : memref<4x8x256xf32, #tpu.memory_space<vmem>> -> memref<1x1x256xf32, #tpu.memory_space<vmem>>
      %383 = tpu.memref_squeeze %382 : memref<1x1x256xf32, #tpu.memory_space<vmem>> -> memref<1x256xf32, #tpu.memory_space<vmem>>
      %384 = tpu.memref_slice %arg11[%c0_i32_303, %c3_i32_304] : memref<4x8x!tpu.dma_semaphore, #tpu.memory_space<semaphore_mem>> -> memref<1x1x!tpu.dma_semaphore, #tpu.memory_space<semaphore_mem>>
      %385 = tpu.memref_squeeze %384 : memref<1x1x!tpu.dma_semaphore, #tpu.memory_space<semaphore_mem>> -> memref<!tpu.dma_semaphore, #tpu.memory_space<semaphore_mem>>
      tpu.wait_dma2 semaphore(%385 : memref<!tpu.dma_semaphore, #tpu.memory_space<semaphore_mem>>) src(%381 : memref<1x256xf32, #tpu.memory_space<any>>) dst(%383 : memref<1x256xf32, #tpu.memory_space<vmem>>)
      %c0_i32_309 = arith.constant 0 : i32
      %c0_i32_310 = arith.constant 0 : i32
      %c4_i32_311 = arith.constant 4 : i32
      %c0_i32_312 = arith.constant 0 : i32
      %c0_i32_313 = arith.constant 0 : i32
      %386 = tpu.memref_slice %arg2[%c0_i32_312, %c0_i32_313] : memref<30000x256xf32, #tpu.memory_space<any>> -> memref<1x256xf32, #tpu.memory_space<any>>
      %c4_i32_314 = arith.constant 4 : i32
      %c0_i32_315 = arith.constant 0 : i32
      %387 = tpu.memref_slice %arg10[%c0_i32_309, %c4_i32_314, %c0_i32_315] : memref<4x8x256xf32, #tpu.memory_space<vmem>> -> memref<1x1x256xf32, #tpu.memory_space<vmem>>
      %388 = tpu.memref_squeeze %387 : memref<1x1x256xf32, #tpu.memory_space<vmem>> -> memref<1x256xf32, #tpu.memory_space<vmem>>
      %389 = tpu.memref_slice %arg11[%c0_i32_310, %c4_i32_311] : memref<4x8x!tpu.dma_semaphore, #tpu.memory_space<semaphore_mem>> -> memref<1x1x!tpu.dma_semaphore, #tpu.memory_space<semaphore_mem>>
      %390 = tpu.memref_squeeze %389 : memref<1x1x!tpu.dma_semaphore, #tpu.memory_space<semaphore_mem>> -> memref<!tpu.dma_semaphore, #tpu.memory_space<semaphore_mem>>
      tpu.wait_dma2 semaphore(%390 : memref<!tpu.dma_semaphore, #tpu.memory_space<semaphore_mem>>) src(%386 : memref<1x256xf32, #tpu.memory_space<any>>) dst(%388 : memref<1x256xf32, #tpu.memory_space<vmem>>)
      %c0_i32_316 = arith.constant 0 : i32
      %c0_i32_317 = arith.constant 0 : i32
      %c5_i32_318 = arith.constant 5 : i32
      %c0_i32_319 = arith.constant 0 : i32
      %c0_i32_320 = arith.constant 0 : i32
      %391 = tpu.memref_slice %arg2[%c0_i32_319, %c0_i32_320] : memref<30000x256xf32, #tpu.memory_space<any>> -> memref<1x256xf32, #tpu.memory_space<any>>
      %c5_i32_321 = arith.constant 5 : i32
      %c0_i32_322 = arith.constant 0 : i32
      %392 = tpu.memref_slice %arg10[%c0_i32_316, %c5_i32_321, %c0_i32_322] : memref<4x8x256xf32, #tpu.memory_space<vmem>> -> memref<1x1x256xf32, #tpu.memory_space<vmem>>
      %393 = tpu.memref_squeeze %392 : memref<1x1x256xf32, #tpu.memory_space<vmem>> -> memref<1x256xf32, #tpu.memory_space<vmem>>
      %394 = tpu.memref_slice %arg11[%c0_i32_317, %c5_i32_318] : memref<4x8x!tpu.dma_semaphore, #tpu.memory_space<semaphore_mem>> -> memref<1x1x!tpu.dma_semaphore, #tpu.memory_space<semaphore_mem>>
      %395 = tpu.memref_squeeze %394 : memref<1x1x!tpu.dma_semaphore, #tpu.memory_space<semaphore_mem>> -> memref<!tpu.dma_semaphore, #tpu.memory_space<semaphore_mem>>
      tpu.wait_dma2 semaphore(%395 : memref<!tpu.dma_semaphore, #tpu.memory_space<semaphore_mem>>) src(%391 : memref<1x256xf32, #tpu.memory_space<any>>) dst(%393 : memref<1x256xf32, #tpu.memory_space<vmem>>)
      %c0_i32_323 = arith.constant 0 : i32
      %c0_i32_324 = arith.constant 0 : i32
      %c6_i32_325 = arith.constant 6 : i32
      %c0_i32_326 = arith.constant 0 : i32
      %c0_i32_327 = arith.constant 0 : i32
      %396 = tpu.memref_slice %arg2[%c0_i32_326, %c0_i32_327] : memref<30000x256xf32, #tpu.memory_space<any>> -> memref<1x256xf32, #tpu.memory_space<any>>
      %c6_i32_328 = arith.constant 6 : i32
      %c0_i32_329 = arith.constant 0 : i32
      %397 = tpu.memref_slice %arg10[%c0_i32_323, %c6_i32_328, %c0_i32_329] : memref<4x8x256xf32, #tpu.memory_space<vmem>> -> memref<1x1x256xf32, #tpu.memory_space<vmem>>
      %398 = tpu.memref_squeeze %397 : memref<1x1x256xf32, #tpu.memory_space<vmem>> -> memref<1x256xf32, #tpu.memory_space<vmem>>
      %399 = tpu.memref_slice %arg11[%c0_i32_324, %c6_i32_325] : memref<4x8x!tpu.dma_semaphore, #tpu.memory_space<semaphore_mem>> -> memref<1x1x!tpu.dma_semaphore, #tpu.memory_space<semaphore_mem>>
      %400 = tpu.memref_squeeze %399 : memref<1x1x!tpu.dma_semaphore, #tpu.memory_space<semaphore_mem>> -> memref<!tpu.dma_semaphore, #tpu.memory_space<semaphore_mem>>
      tpu.wait_dma2 semaphore(%400 : memref<!tpu.dma_semaphore, #tpu.memory_space<semaphore_mem>>) src(%396 : memref<1x256xf32, #tpu.memory_space<any>>) dst(%398 : memref<1x256xf32, #tpu.memory_space<vmem>>)
      %c0_i32_330 = arith.constant 0 : i32
      %c0_i32_331 = arith.constant 0 : i32
      %c7_i32_332 = arith.constant 7 : i32
      %c0_i32_333 = arith.constant 0 : i32
      %c0_i32_334 = arith.constant 0 : i32
      %401 = tpu.memref_slice %arg2[%c0_i32_333, %c0_i32_334] : memref<30000x256xf32, #tpu.memory_space<any>> -> memref<1x256xf32, #tpu.memory_space<any>>
      %c7_i32_335 = arith.constant 7 : i32
      %c0_i32_336 = arith.constant 0 : i32
      %402 = tpu.memref_slice %arg10[%c0_i32_330, %c7_i32_335, %c0_i32_336] : memref<4x8x256xf32, #tpu.memory_space<vmem>> -> memref<1x1x256xf32, #tpu.memory_space<vmem>>
      %403 = tpu.memref_squeeze %402 : memref<1x1x256xf32, #tpu.memory_space<vmem>> -> memref<1x256xf32, #tpu.memory_space<vmem>>
      %404 = tpu.memref_slice %arg11[%c0_i32_331, %c7_i32_332] : memref<4x8x!tpu.dma_semaphore, #tpu.memory_space<semaphore_mem>> -> memref<1x1x!tpu.dma_semaphore, #tpu.memory_space<semaphore_mem>>
      %405 = tpu.memref_squeeze %404 : memref<1x1x!tpu.dma_semaphore, #tpu.memory_space<semaphore_mem>> -> memref<!tpu.dma_semaphore, #tpu.memory_space<semaphore_mem>>
      tpu.wait_dma2 semaphore(%405 : memref<!tpu.dma_semaphore, #tpu.memory_space<semaphore_mem>>) src(%401 : memref<1x256xf32, #tpu.memory_space<any>>) dst(%403 : memref<1x256xf32, #tpu.memory_space<vmem>>)
      %c0_337 = arith.constant 0 : index
      %c0_338 = arith.constant 0 : index
      %c0_339 = arith.constant 0 : index
      %406 = vector.load %arg10[%c0_337, %c0_338, %c0_339] : memref<4x8x256xf32, #tpu.memory_space<vmem>>, vector<1x8x256xf32>
      %407 = vector.shape_cast %406 : vector<1x8x256xf32> to vector<8x256xf32>
      %408 = arith.addf %arg13, %407 : vector<8x256xf32>
      %c8_i32_340 = arith.constant 8 : i32
      %409 = arith.cmpi slt, %332, %c8_i32_340 : i32
      %410 = arith.extui %409 : i1 to i32
      %c0_i32_341 = arith.constant 0 : i32
      %411 = arith.cmpi ne, %410, %c0_i32_341 : i32
      scf.if %411 {
        %c0_i32_555 = arith.constant 0 : i32
        %c0_i32_556 = arith.constant 0 : i32
        %c0_i32_557 = arith.constant 0 : i32
        %c0_i32_558 = arith.constant 0 : i32
        %655 = tpu.memref_slice %arg2[%337, %c0_i32_558] : memref<30000x256xf32, #tpu.memory_space<any>> -> memref<1x256xf32, #tpu.memory_space<any>>
        %c0_i32_559 = arith.constant 0 : i32
        %c0_i32_560 = arith.constant 0 : i32
        %656 = tpu.memref_slice %arg10[%c0_i32_555, %c0_i32_559, %c0_i32_560] : memref<4x8x256xf32, #tpu.memory_space<vmem>> -> memref<1x1x256xf32, #tpu.memory_space<vmem>>
        %657 = tpu.memref_squeeze %656 : memref<1x1x256xf32, #tpu.memory_space<vmem>> -> memref<1x256xf32, #tpu.memory_space<vmem>>
        %658 = tpu.memref_slice %arg11[%c0_i32_556, %c0_i32_557] : memref<4x8x!tpu.dma_semaphore, #tpu.memory_space<semaphore_mem>> -> memref<1x1x!tpu.dma_semaphore, #tpu.memory_space<semaphore_mem>>
        %659 = tpu.memref_squeeze %658 : memref<1x1x!tpu.dma_semaphore, #tpu.memory_space<semaphore_mem>> -> memref<!tpu.dma_semaphore, #tpu.memory_space<semaphore_mem>>
        tpu.enqueue_dma source(%655 : memref<1x256xf32, #tpu.memory_space<any>>) target(%657 : memref<1x256xf32, #tpu.memory_space<vmem>>) target_semaphore(%659 : memref<!tpu.dma_semaphore, #tpu.memory_space<semaphore_mem>>)
        %c0_i32_561 = arith.constant 0 : i32
        %c0_i32_562 = arith.constant 0 : i32
        %c1_i32_563 = arith.constant 1 : i32
        %c0_i32_564 = arith.constant 0 : i32
        %660 = tpu.memref_slice %arg2[%341, %c0_i32_564] : memref<30000x256xf32, #tpu.memory_space<any>> -> memref<1x256xf32, #tpu.memory_space<any>>
        %c1_i32_565 = arith.constant 1 : i32
        %c0_i32_566 = arith.constant 0 : i32
        %661 = tpu.memref_slice %arg10[%c0_i32_561, %c1_i32_565, %c0_i32_566] : memref<4x8x256xf32, #tpu.memory_space<vmem>> -> memref<1x1x256xf32, #tpu.memory_space<vmem>>
        %662 = tpu.memref_squeeze %661 : memref<1x1x256xf32, #tpu.memory_space<vmem>> -> memref<1x256xf32, #tpu.memory_space<vmem>>
        %663 = tpu.memref_slice %arg11[%c0_i32_562, %c1_i32_563] : memref<4x8x!tpu.dma_semaphore, #tpu.memory_space<semaphore_mem>> -> memref<1x1x!tpu.dma_semaphore, #tpu.memory_space<semaphore_mem>>
        %664 = tpu.memref_squeeze %663 : memref<1x1x!tpu.dma_semaphore, #tpu.memory_space<semaphore_mem>> -> memref<!tpu.dma_semaphore, #tpu.memory_space<semaphore_mem>>
        tpu.enqueue_dma source(%660 : memref<1x256xf32, #tpu.memory_space<any>>) target(%662 : memref<1x256xf32, #tpu.memory_space<vmem>>) target_semaphore(%664 : memref<!tpu.dma_semaphore, #tpu.memory_space<semaphore_mem>>)
        %c0_i32_567 = arith.constant 0 : i32
        %c0_i32_568 = arith.constant 0 : i32
        %c2_i32_569 = arith.constant 2 : i32
        %c0_i32_570 = arith.constant 0 : i32
        %665 = tpu.memref_slice %arg2[%345, %c0_i32_570] : memref<30000x256xf32, #tpu.memory_space<any>> -> memref<1x256xf32, #tpu.memory_space<any>>
        %c2_i32_571 = arith.constant 2 : i32
        %c0_i32_572 = arith.constant 0 : i32
        %666 = tpu.memref_slice %arg10[%c0_i32_567, %c2_i32_571, %c0_i32_572] : memref<4x8x256xf32, #tpu.memory_space<vmem>> -> memref<1x1x256xf32, #tpu.memory_space<vmem>>
        %667 = tpu.memref_squeeze %666 : memref<1x1x256xf32, #tpu.memory_space<vmem>> -> memref<1x256xf32, #tpu.memory_space<vmem>>
        %668 = tpu.memref_slice %arg11[%c0_i32_568, %c2_i32_569] : memref<4x8x!tpu.dma_semaphore, #tpu.memory_space<semaphore_mem>> -> memref<1x1x!tpu.dma_semaphore, #tpu.memory_space<semaphore_mem>>
        %669 = tpu.memref_squeeze %668 : memref<1x1x!tpu.dma_semaphore, #tpu.memory_space<semaphore_mem>> -> memref<!tpu.dma_semaphore, #tpu.memory_space<semaphore_mem>>
        tpu.enqueue_dma source(%665 : memref<1x256xf32, #tpu.memory_space<any>>) target(%667 : memref<1x256xf32, #tpu.memory_space<vmem>>) target_semaphore(%669 : memref<!tpu.dma_semaphore, #tpu.memory_space<semaphore_mem>>)
        %c0_i32_573 = arith.constant 0 : i32
        %c0_i32_574 = arith.constant 0 : i32
        %c3_i32_575 = arith.constant 3 : i32
        %c0_i32_576 = arith.constant 0 : i32
        %670 = tpu.memref_slice %arg2[%349, %c0_i32_576] : memref<30000x256xf32, #tpu.memory_space<any>> -> memref<1x256xf32, #tpu.memory_space<any>>
        %c3_i32_577 = arith.constant 3 : i32
        %c0_i32_578 = arith.constant 0 : i32
        %671 = tpu.memref_slice %arg10[%c0_i32_573, %c3_i32_577, %c0_i32_578] : memref<4x8x256xf32, #tpu.memory_space<vmem>> -> memref<1x1x256xf32, #tpu.memory_space<vmem>>
        %672 = tpu.memref_squeeze %671 : memref<1x1x256xf32, #tpu.memory_space<vmem>> -> memref<1x256xf32, #tpu.memory_space<vmem>>
        %673 = tpu.memref_slice %arg11[%c0_i32_574, %c3_i32_575] : memref<4x8x!tpu.dma_semaphore, #tpu.memory_space<semaphore_mem>> -> memref<1x1x!tpu.dma_semaphore, #tpu.memory_space<semaphore_mem>>
        %674 = tpu.memref_squeeze %673 : memref<1x1x!tpu.dma_semaphore, #tpu.memory_space<semaphore_mem>> -> memref<!tpu.dma_semaphore, #tpu.memory_space<semaphore_mem>>
        tpu.enqueue_dma source(%670 : memref<1x256xf32, #tpu.memory_space<any>>) target(%672 : memref<1x256xf32, #tpu.memory_space<vmem>>) target_semaphore(%674 : memref<!tpu.dma_semaphore, #tpu.memory_space<semaphore_mem>>)
        %c0_i32_579 = arith.constant 0 : i32
        %c0_i32_580 = arith.constant 0 : i32
        %c4_i32_581 = arith.constant 4 : i32
        %c0_i32_582 = arith.constant 0 : i32
        %675 = tpu.memref_slice %arg2[%353, %c0_i32_582] : memref<30000x256xf32, #tpu.memory_space<any>> -> memref<1x256xf32, #tpu.memory_space<any>>
        %c4_i32_583 = arith.constant 4 : i32
        %c0_i32_584 = arith.constant 0 : i32
        %676 = tpu.memref_slice %arg10[%c0_i32_579, %c4_i32_583, %c0_i32_584] : memref<4x8x256xf32, #tpu.memory_space<vmem>> -> memref<1x1x256xf32, #tpu.memory_space<vmem>>
        %677 = tpu.memref_squeeze %676 : memref<1x1x256xf32, #tpu.memory_space<vmem>> -> memref<1x256xf32, #tpu.memory_space<vmem>>
        %678 = tpu.memref_slice %arg11[%c0_i32_580, %c4_i32_581] : memref<4x8x!tpu.dma_semaphore, #tpu.memory_space<semaphore_mem>> -> memref<1x1x!tpu.dma_semaphore, #tpu.memory_space<semaphore_mem>>
        %679 = tpu.memref_squeeze %678 : memref<1x1x!tpu.dma_semaphore, #tpu.memory_space<semaphore_mem>> -> memref<!tpu.dma_semaphore, #tpu.memory_space<semaphore_mem>>
        tpu.enqueue_dma source(%675 : memref<1x256xf32, #tpu.memory_space<any>>) target(%677 : memref<1x256xf32, #tpu.memory_space<vmem>>) target_semaphore(%679 : memref<!tpu.dma_semaphore, #tpu.memory_space<semaphore_mem>>)
        %c0_i32_585 = arith.constant 0 : i32
        %c0_i32_586 = arith.constant 0 : i32
        %c5_i32_587 = arith.constant 5 : i32
        %c0_i32_588 = arith.constant 0 : i32
        %680 = tpu.memref_slice %arg2[%357, %c0_i32_588] : memref<30000x256xf32, #tpu.memory_space<any>> -> memref<1x256xf32, #tpu.memory_space<any>>
        %c5_i32_589 = arith.constant 5 : i32
        %c0_i32_590 = arith.constant 0 : i32
        %681 = tpu.memref_slice %arg10[%c0_i32_585, %c5_i32_589, %c0_i32_590] : memref<4x8x256xf32, #tpu.memory_space<vmem>> -> memref<1x1x256xf32, #tpu.memory_space<vmem>>
        %682 = tpu.memref_squeeze %681 : memref<1x1x256xf32, #tpu.memory_space<vmem>> -> memref<1x256xf32, #tpu.memory_space<vmem>>
        %683 = tpu.memref_slice %arg11[%c0_i32_586, %c5_i32_587] : memref<4x8x!tpu.dma_semaphore, #tpu.memory_space<semaphore_mem>> -> memref<1x1x!tpu.dma_semaphore, #tpu.memory_space<semaphore_mem>>
        %684 = tpu.memref_squeeze %683 : memref<1x1x!tpu.dma_semaphore, #tpu.memory_space<semaphore_mem>> -> memref<!tpu.dma_semaphore, #tpu.memory_space<semaphore_mem>>
        tpu.enqueue_dma source(%680 : memref<1x256xf32, #tpu.memory_space<any>>) target(%682 : memref<1x256xf32, #tpu.memory_space<vmem>>) target_semaphore(%684 : memref<!tpu.dma_semaphore, #tpu.memory_space<semaphore_mem>>)
        %c0_i32_591 = arith.constant 0 : i32
        %c0_i32_592 = arith.constant 0 : i32
        %c6_i32_593 = arith.constant 6 : i32
        %c0_i32_594 = arith.constant 0 : i32
        %685 = tpu.memref_slice %arg2[%361, %c0_i32_594] : memref<30000x256xf32, #tpu.memory_space<any>> -> memref<1x256xf32, #tpu.memory_space<any>>
        %c6_i32_595 = arith.constant 6 : i32
        %c0_i32_596 = arith.constant 0 : i32
        %686 = tpu.memref_slice %arg10[%c0_i32_591, %c6_i32_595, %c0_i32_596] : memref<4x8x256xf32, #tpu.memory_space<vmem>> -> memref<1x1x256xf32, #tpu.memory_space<vmem>>
        %687 = tpu.memref_squeeze %686 : memref<1x1x256xf32, #tpu.memory_space<vmem>> -> memref<1x256xf32, #tpu.memory_space<vmem>>
        %688 = tpu.memref_slice %arg11[%c0_i32_592, %c6_i32_593] : memref<4x8x!tpu.dma_semaphore, #tpu.memory_space<semaphore_mem>> -> memref<1x1x!tpu.dma_semaphore, #tpu.memory_space<semaphore_mem>>
        %689 = tpu.memref_squeeze %688 : memref<1x1x!tpu.dma_semaphore, #tpu.memory_space<semaphore_mem>> -> memref<!tpu.dma_semaphore, #tpu.memory_space<semaphore_mem>>
        tpu.enqueue_dma source(%685 : memref<1x256xf32, #tpu.memory_space<any>>) target(%687 : memref<1x256xf32, #tpu.memory_space<vmem>>) target_semaphore(%689 : memref<!tpu.dma_semaphore, #tpu.memory_space<semaphore_mem>>)
        %c0_i32_597 = arith.constant 0 : i32
        %c0_i32_598 = arith.constant 0 : i32
        %c7_i32_599 = arith.constant 7 : i32
        %c0_i32_600 = arith.constant 0 : i32
        %690 = tpu.memref_slice %arg2[%365, %c0_i32_600] : memref<30000x256xf32, #tpu.memory_space<any>> -> memref<1x256xf32, #tpu.memory_space<any>>
        %c7_i32_601 = arith.constant 7 : i32
        %c0_i32_602 = arith.constant 0 : i32
        %691 = tpu.memref_slice %arg10[%c0_i32_597, %c7_i32_601, %c0_i32_602] : memref<4x8x256xf32, #tpu.memory_space<vmem>> -> memref<1x1x256xf32, #tpu.memory_space<vmem>>
        %692 = tpu.memref_squeeze %691 : memref<1x1x256xf32, #tpu.memory_space<vmem>> -> memref<1x256xf32, #tpu.memory_space<vmem>>
        %693 = tpu.memref_slice %arg11[%c0_i32_598, %c7_i32_599] : memref<4x8x!tpu.dma_semaphore, #tpu.memory_space<semaphore_mem>> -> memref<1x1x!tpu.dma_semaphore, #tpu.memory_space<semaphore_mem>>
        %694 = tpu.memref_squeeze %693 : memref<1x1x!tpu.dma_semaphore, #tpu.memory_space<semaphore_mem>> -> memref<!tpu.dma_semaphore, #tpu.memory_space<semaphore_mem>>
        tpu.enqueue_dma source(%690 : memref<1x256xf32, #tpu.memory_space<any>>) target(%692 : memref<1x256xf32, #tpu.memory_space<vmem>>) target_semaphore(%694 : memref<!tpu.dma_semaphore, #tpu.memory_space<semaphore_mem>>)
      } else {
      }
      %c1_i32_342 = arith.constant 1 : i32
      %412 = arith.addi %330, %c1_i32_342 : i32
      %c4_i32_343 = arith.constant 4 : i32
      %413 = arith.addi %412, %c4_i32_343 : i32
      %c7_i32_344 = arith.constant 7 : i32
      %414 = arith.minsi %413, %c7_i32_344 : i32
      %c0_i32_345 = arith.constant 0 : i32
      %415 = arith.addi %0, %c0_i32_345 : i32
      %416 = arith.addi %415, %414 : i32
      %417 = arith.index_cast %416 : i32 to index
      %418 = memref.load %arg1[%417] : memref<128xi32, #tpu.memory_space<smem>>
      %c8_i32_346 = arith.constant 8 : i32
      %419 = arith.addi %0, %c8_i32_346 : i32
      %420 = arith.addi %419, %414 : i32
      %421 = arith.index_cast %420 : i32 to index
      %422 = memref.load %arg1[%421] : memref<128xi32, #tpu.memory_space<smem>>
      %c16_i32_347 = arith.constant 16 : i32
      %423 = arith.addi %0, %c16_i32_347 : i32
      %424 = arith.addi %423, %414 : i32
      %425 = arith.index_cast %424 : i32 to index
      %426 = memref.load %arg1[%425] : memref<128xi32, #tpu.memory_space<smem>>
      %c24_i32_348 = arith.constant 24 : i32
      %427 = arith.addi %0, %c24_i32_348 : i32
      %428 = arith.addi %427, %414 : i32
      %429 = arith.index_cast %428 : i32 to index
      %430 = memref.load %arg1[%429] : memref<128xi32, #tpu.memory_space<smem>>
      %c32_i32_349 = arith.constant 32 : i32
      %431 = arith.addi %0, %c32_i32_349 : i32
      %432 = arith.addi %431, %414 : i32
      %433 = arith.index_cast %432 : i32 to index
      %434 = memref.load %arg1[%433] : memref<128xi32, #tpu.memory_space<smem>>
      %c40_i32_350 = arith.constant 40 : i32
      %435 = arith.addi %0, %c40_i32_350 : i32
      %436 = arith.addi %435, %414 : i32
      %437 = arith.index_cast %436 : i32 to index
      %438 = memref.load %arg1[%437] : memref<128xi32, #tpu.memory_space<smem>>
      %c48_i32_351 = arith.constant 48 : i32
      %439 = arith.addi %0, %c48_i32_351 : i32
      %440 = arith.addi %439, %414 : i32
      %441 = arith.index_cast %440 : i32 to index
      %442 = memref.load %arg1[%441] : memref<128xi32, #tpu.memory_space<smem>>
      %c56_i32_352 = arith.constant 56 : i32
      %443 = arith.addi %0, %c56_i32_352 : i32
      %444 = arith.addi %443, %414 : i32
      %445 = arith.index_cast %444 : i32 to index
      %446 = memref.load %arg1[%445] : memref<128xi32, #tpu.memory_space<smem>>
      %c1_i32_353 = arith.constant 1 : i32
      %c1_i32_354 = arith.constant 1 : i32
      %c0_i32_355 = arith.constant 0 : i32
      %c0_i32_356 = arith.constant 0 : i32
      %c0_i32_357 = arith.constant 0 : i32
      %447 = tpu.memref_slice %arg2[%c0_i32_356, %c0_i32_357] : memref<30000x256xf32, #tpu.memory_space<any>> -> memref<1x256xf32, #tpu.memory_space<any>>
      %c0_i32_358 = arith.constant 0 : i32
      %c0_i32_359 = arith.constant 0 : i32
      %448 = tpu.memref_slice %arg10[%c1_i32_353, %c0_i32_358, %c0_i32_359] : memref<4x8x256xf32, #tpu.memory_space<vmem>> -> memref<1x1x256xf32, #tpu.memory_space<vmem>>
      %449 = tpu.memref_squeeze %448 : memref<1x1x256xf32, #tpu.memory_space<vmem>> -> memref<1x256xf32, #tpu.memory_space<vmem>>
      %450 = tpu.memref_slice %arg11[%c1_i32_354, %c0_i32_355] : memref<4x8x!tpu.dma_semaphore, #tpu.memory_space<semaphore_mem>> -> memref<1x1x!tpu.dma_semaphore, #tpu.memory_space<semaphore_mem>>
      %451 = tpu.memref_squeeze %450 : memref<1x1x!tpu.dma_semaphore, #tpu.memory_space<semaphore_mem>> -> memref<!tpu.dma_semaphore, #tpu.memory_space<semaphore_mem>>
      tpu.wait_dma2 semaphore(%451 : memref<!tpu.dma_semaphore, #tpu.memory_space<semaphore_mem>>) src(%447 : memref<1x256xf32, #tpu.memory_space<any>>) dst(%449 : memref<1x256xf32, #tpu.memory_space<vmem>>)
      %c1_i32_360 = arith.constant 1 : i32
      %c1_i32_361 = arith.constant 1 : i32
      %c1_i32_362 = arith.constant 1 : i32
      %c0_i32_363 = arith.constant 0 : i32
      %c0_i32_364 = arith.constant 0 : i32
      %452 = tpu.memref_slice %arg2[%c0_i32_363, %c0_i32_364] : memref<30000x256xf32, #tpu.memory_space<any>> -> memref<1x256xf32, #tpu.memory_space<any>>
      %c1_i32_365 = arith.constant 1 : i32
      %c0_i32_366 = arith.constant 0 : i32
      %453 = tpu.memref_slice %arg10[%c1_i32_360, %c1_i32_365, %c0_i32_366] : memref<4x8x256xf32, #tpu.memory_space<vmem>> -> memref<1x1x256xf32, #tpu.memory_space<vmem>>
      %454 = tpu.memref_squeeze %453 : memref<1x1x256xf32, #tpu.memory_space<vmem>> -> memref<1x256xf32, #tpu.memory_space<vmem>>
      %455 = tpu.memref_slice %arg11[%c1_i32_361, %c1_i32_362] : memref<4x8x!tpu.dma_semaphore, #tpu.memory_space<semaphore_mem>> -> memref<1x1x!tpu.dma_semaphore, #tpu.memory_space<semaphore_mem>>
      %456 = tpu.memref_squeeze %455 : memref<1x1x!tpu.dma_semaphore, #tpu.memory_space<semaphore_mem>> -> memref<!tpu.dma_semaphore, #tpu.memory_space<semaphore_mem>>
      tpu.wait_dma2 semaphore(%456 : memref<!tpu.dma_semaphore, #tpu.memory_space<semaphore_mem>>) src(%452 : memref<1x256xf32, #tpu.memory_space<any>>) dst(%454 : memref<1x256xf32, #tpu.memory_space<vmem>>)
      %c1_i32_367 = arith.constant 1 : i32
      %c1_i32_368 = arith.constant 1 : i32
      %c2_i32_369 = arith.constant 2 : i32
      %c0_i32_370 = arith.constant 0 : i32
      %c0_i32_371 = arith.constant 0 : i32
      %457 = tpu.memref_slice %arg2[%c0_i32_370, %c0_i32_371] : memref<30000x256xf32, #tpu.memory_space<any>> -> memref<1x256xf32, #tpu.memory_space<any>>
      %c2_i32_372 = arith.constant 2 : i32
      %c0_i32_373 = arith.constant 0 : i32
      %458 = tpu.memref_slice %arg10[%c1_i32_367, %c2_i32_372, %c0_i32_373] : memref<4x8x256xf32, #tpu.memory_space<vmem>> -> memref<1x1x256xf32, #tpu.memory_space<vmem>>
      %459 = tpu.memref_squeeze %458 : memref<1x1x256xf32, #tpu.memory_space<vmem>> -> memref<1x256xf32, #tpu.memory_space<vmem>>
      %460 = tpu.memref_slice %arg11[%c1_i32_368, %c2_i32_369] : memref<4x8x!tpu.dma_semaphore, #tpu.memory_space<semaphore_mem>> -> memref<1x1x!tpu.dma_semaphore, #tpu.memory_space<semaphore_mem>>
      %461 = tpu.memref_squeeze %460 : memref<1x1x!tpu.dma_semaphore, #tpu.memory_space<semaphore_mem>> -> memref<!tpu.dma_semaphore, #tpu.memory_space<semaphore_mem>>
      tpu.wait_dma2 semaphore(%461 : memref<!tpu.dma_semaphore, #tpu.memory_space<semaphore_mem>>) src(%457 : memref<1x256xf32, #tpu.memory_space<any>>) dst(%459 : memref<1x256xf32, #tpu.memory_space<vmem>>)
      %c1_i32_374 = arith.constant 1 : i32
      %c1_i32_375 = arith.constant 1 : i32
      %c3_i32_376 = arith.constant 3 : i32
      %c0_i32_377 = arith.constant 0 : i32
      %c0_i32_378 = arith.constant 0 : i32
      %462 = tpu.memref_slice %arg2[%c0_i32_377, %c0_i32_378] : memref<30000x256xf32, #tpu.memory_space<any>> -> memref<1x256xf32, #tpu.memory_space<any>>
      %c3_i32_379 = arith.constant 3 : i32
      %c0_i32_380 = arith.constant 0 : i32
      %463 = tpu.memref_slice %arg10[%c1_i32_374, %c3_i32_379, %c0_i32_380] : memref<4x8x256xf32, #tpu.memory_space<vmem>> -> memref<1x1x256xf32, #tpu.memory_space<vmem>>
      %464 = tpu.memref_squeeze %463 : memref<1x1x256xf32, #tpu.memory_space<vmem>> -> memref<1x256xf32, #tpu.memory_space<vmem>>
      %465 = tpu.memref_slice %arg11[%c1_i32_375, %c3_i32_376] : memref<4x8x!tpu.dma_semaphore, #tpu.memory_space<semaphore_mem>> -> memref<1x1x!tpu.dma_semaphore, #tpu.memory_space<semaphore_mem>>
      %466 = tpu.memref_squeeze %465 : memref<1x1x!tpu.dma_semaphore, #tpu.memory_space<semaphore_mem>> -> memref<!tpu.dma_semaphore, #tpu.memory_space<semaphore_mem>>
      tpu.wait_dma2 semaphore(%466 : memref<!tpu.dma_semaphore, #tpu.memory_space<semaphore_mem>>) src(%462 : memref<1x256xf32, #tpu.memory_space<any>>) dst(%464 : memref<1x256xf32, #tpu.memory_space<vmem>>)
      %c1_i32_381 = arith.constant 1 : i32
      %c1_i32_382 = arith.constant 1 : i32
      %c4_i32_383 = arith.constant 4 : i32
      %c0_i32_384 = arith.constant 0 : i32
      %c0_i32_385 = arith.constant 0 : i32
      %467 = tpu.memref_slice %arg2[%c0_i32_384, %c0_i32_385] : memref<30000x256xf32, #tpu.memory_space<any>> -> memref<1x256xf32, #tpu.memory_space<any>>
      %c4_i32_386 = arith.constant 4 : i32
      %c0_i32_387 = arith.constant 0 : i32
      %468 = tpu.memref_slice %arg10[%c1_i32_381, %c4_i32_386, %c0_i32_387] : memref<4x8x256xf32, #tpu.memory_space<vmem>> -> memref<1x1x256xf32, #tpu.memory_space<vmem>>
      %469 = tpu.memref_squeeze %468 : memref<1x1x256xf32, #tpu.memory_space<vmem>> -> memref<1x256xf32, #tpu.memory_space<vmem>>
      %470 = tpu.memref_slice %arg11[%c1_i32_382, %c4_i32_383] : memref<4x8x!tpu.dma_semaphore, #tpu.memory_space<semaphore_mem>> -> memref<1x1x!tpu.dma_semaphore, #tpu.memory_space<semaphore_mem>>
      %471 = tpu.memref_squeeze %470 : memref<1x1x!tpu.dma_semaphore, #tpu.memory_space<semaphore_mem>> -> memref<!tpu.dma_semaphore, #tpu.memory_space<semaphore_mem>>
      tpu.wait_dma2 semaphore(%471 : memref<!tpu.dma_semaphore, #tpu.memory_space<semaphore_mem>>) src(%467 : memref<1x256xf32, #tpu.memory_space<any>>) dst(%469 : memref<1x256xf32, #tpu.memory_space<vmem>>)
      %c1_i32_388 = arith.constant 1 : i32
      %c1_i32_389 = arith.constant 1 : i32
      %c5_i32_390 = arith.constant 5 : i32
      %c0_i32_391 = arith.constant 0 : i32
      %c0_i32_392 = arith.constant 0 : i32
      %472 = tpu.memref_slice %arg2[%c0_i32_391, %c0_i32_392] : memref<30000x256xf32, #tpu.memory_space<any>> -> memref<1x256xf32, #tpu.memory_space<any>>
      %c5_i32_393 = arith.constant 5 : i32
      %c0_i32_394 = arith.constant 0 : i32
      %473 = tpu.memref_slice %arg10[%c1_i32_388, %c5_i32_393, %c0_i32_394] : memref<4x8x256xf32, #tpu.memory_space<vmem>> -> memref<1x1x256xf32, #tpu.memory_space<vmem>>
      %474 = tpu.memref_squeeze %473 : memref<1x1x256xf32, #tpu.memory_space<vmem>> -> memref<1x256xf32, #tpu.memory_space<vmem>>
      %475 = tpu.memref_slice %arg11[%c1_i32_389, %c5_i32_390] : memref<4x8x!tpu.dma_semaphore, #tpu.memory_space<semaphore_mem>> -> memref<1x1x!tpu.dma_semaphore, #tpu.memory_space<semaphore_mem>>
      %476 = tpu.memref_squeeze %475 : memref<1x1x!tpu.dma_semaphore, #tpu.memory_space<semaphore_mem>> -> memref<!tpu.dma_semaphore, #tpu.memory_space<semaphore_mem>>
      tpu.wait_dma2 semaphore(%476 : memref<!tpu.dma_semaphore, #tpu.memory_space<semaphore_mem>>) src(%472 : memref<1x256xf32, #tpu.memory_space<any>>) dst(%474 : memref<1x256xf32, #tpu.memory_space<vmem>>)
      %c1_i32_395 = arith.constant 1 : i32
      %c1_i32_396 = arith.constant 1 : i32
      %c6_i32_397 = arith.constant 6 : i32
      %c0_i32_398 = arith.constant 0 : i32
      %c0_i32_399 = arith.constant 0 : i32
      %477 = tpu.memref_slice %arg2[%c0_i32_398, %c0_i32_399] : memref<30000x256xf32, #tpu.memory_space<any>> -> memref<1x256xf32, #tpu.memory_space<any>>
      %c6_i32_400 = arith.constant 6 : i32
      %c0_i32_401 = arith.constant 0 : i32
      %478 = tpu.memref_slice %arg10[%c1_i32_395, %c6_i32_400, %c0_i32_401] : memref<4x8x256xf32, #tpu.memory_space<vmem>> -> memref<1x1x256xf32, #tpu.memory_space<vmem>>
      %479 = tpu.memref_squeeze %478 : memref<1x1x256xf32, #tpu.memory_space<vmem>> -> memref<1x256xf32, #tpu.memory_space<vmem>>
      %480 = tpu.memref_slice %arg11[%c1_i32_396, %c6_i32_397] : memref<4x8x!tpu.dma_semaphore, #tpu.memory_space<semaphore_mem>> -> memref<1x1x!tpu.dma_semaphore, #tpu.memory_space<semaphore_mem>>
      %481 = tpu.memref_squeeze %480 : memref<1x1x!tpu.dma_semaphore, #tpu.memory_space<semaphore_mem>> -> memref<!tpu.dma_semaphore, #tpu.memory_space<semaphore_mem>>
      tpu.wait_dma2 semaphore(%481 : memref<!tpu.dma_semaphore, #tpu.memory_space<semaphore_mem>>) src(%477 : memref<1x256xf32, #tpu.memory_space<any>>) dst(%479 : memref<1x256xf32, #tpu.memory_space<vmem>>)
      %c1_i32_402 = arith.constant 1 : i32
      %c1_i32_403 = arith.constant 1 : i32
      %c7_i32_404 = arith.constant 7 : i32
      %c0_i32_405 = arith.constant 0 : i32
      %c0_i32_406 = arith.constant 0 : i32
      %482 = tpu.memref_slice %arg2[%c0_i32_405, %c0_i32_406] : memref<30000x256xf32, #tpu.memory_space<any>> -> memref<1x256xf32, #tpu.memory_space<any>>
      %c7_i32_407 = arith.constant 7 : i32
      %c0_i32_408 = arith.constant 0 : i32
      %483 = tpu.memref_slice %arg10[%c1_i32_402, %c7_i32_407, %c0_i32_408] : memref<4x8x256xf32, #tpu.memory_space<vmem>> -> memref<1x1x256xf32, #tpu.memory_space<vmem>>
      %484 = tpu.memref_squeeze %483 : memref<1x1x256xf32, #tpu.memory_space<vmem>> -> memref<1x256xf32, #tpu.memory_space<vmem>>
      %485 = tpu.memref_slice %arg11[%c1_i32_403, %c7_i32_404] : memref<4x8x!tpu.dma_semaphore, #tpu.memory_space<semaphore_mem>> -> memref<1x1x!tpu.dma_semaphore, #tpu.memory_space<semaphore_mem>>
      %486 = tpu.memref_squeeze %485 : memref<1x1x!tpu.dma_semaphore, #tpu.memory_space<semaphore_mem>> -> memref<!tpu.dma_semaphore, #tpu.memory_space<semaphore_mem>>
      tpu.wait_dma2 semaphore(%486 : memref<!tpu.dma_semaphore, #tpu.memory_space<semaphore_mem>>) src(%482 : memref<1x256xf32, #tpu.memory_space<any>>) dst(%484 : memref<1x256xf32, #tpu.memory_space<vmem>>)
      %c1 = arith.constant 1 : index
      %c0_409 = arith.constant 0 : index
      %c0_410 = arith.constant 0 : index
      %487 = vector.load %arg10[%c1, %c0_409, %c0_410] : memref<4x8x256xf32, #tpu.memory_space<vmem>>, vector<1x8x256xf32>
      %488 = vector.shape_cast %487 : vector<1x8x256xf32> to vector<8x256xf32>
      %489 = arith.addf %408, %488 : vector<8x256xf32>
      %c8_i32_411 = arith.constant 8 : i32
      %490 = arith.cmpi slt, %413, %c8_i32_411 : i32
      %491 = arith.extui %490 : i1 to i32
      %c0_i32_412 = arith.constant 0 : i32
      %492 = arith.cmpi ne, %491, %c0_i32_412 : i32
      scf.if %492 {
        %c1_i32_555 = arith.constant 1 : i32
        %c1_i32_556 = arith.constant 1 : i32
        %c0_i32_557 = arith.constant 0 : i32
        %c0_i32_558 = arith.constant 0 : i32
        %655 = tpu.memref_slice %arg2[%418, %c0_i32_558] : memref<30000x256xf32, #tpu.memory_space<any>> -> memref<1x256xf32, #tpu.memory_space<any>>
        %c0_i32_559 = arith.constant 0 : i32
        %c0_i32_560 = arith.constant 0 : i32
        %656 = tpu.memref_slice %arg10[%c1_i32_555, %c0_i32_559, %c0_i32_560] : memref<4x8x256xf32, #tpu.memory_space<vmem>> -> memref<1x1x256xf32, #tpu.memory_space<vmem>>
        %657 = tpu.memref_squeeze %656 : memref<1x1x256xf32, #tpu.memory_space<vmem>> -> memref<1x256xf32, #tpu.memory_space<vmem>>
        %658 = tpu.memref_slice %arg11[%c1_i32_556, %c0_i32_557] : memref<4x8x!tpu.dma_semaphore, #tpu.memory_space<semaphore_mem>> -> memref<1x1x!tpu.dma_semaphore, #tpu.memory_space<semaphore_mem>>
        %659 = tpu.memref_squeeze %658 : memref<1x1x!tpu.dma_semaphore, #tpu.memory_space<semaphore_mem>> -> memref<!tpu.dma_semaphore, #tpu.memory_space<semaphore_mem>>
        tpu.enqueue_dma source(%655 : memref<1x256xf32, #tpu.memory_space<any>>) target(%657 : memref<1x256xf32, #tpu.memory_space<vmem>>) target_semaphore(%659 : memref<!tpu.dma_semaphore, #tpu.memory_space<semaphore_mem>>)
        %c1_i32_561 = arith.constant 1 : i32
        %c1_i32_562 = arith.constant 1 : i32
        %c1_i32_563 = arith.constant 1 : i32
        %c0_i32_564 = arith.constant 0 : i32
        %660 = tpu.memref_slice %arg2[%422, %c0_i32_564] : memref<30000x256xf32, #tpu.memory_space<any>> -> memref<1x256xf32, #tpu.memory_space<any>>
        %c1_i32_565 = arith.constant 1 : i32
        %c0_i32_566 = arith.constant 0 : i32
        %661 = tpu.memref_slice %arg10[%c1_i32_561, %c1_i32_565, %c0_i32_566] : memref<4x8x256xf32, #tpu.memory_space<vmem>> -> memref<1x1x256xf32, #tpu.memory_space<vmem>>
        %662 = tpu.memref_squeeze %661 : memref<1x1x256xf32, #tpu.memory_space<vmem>> -> memref<1x256xf32, #tpu.memory_space<vmem>>
        %663 = tpu.memref_slice %arg11[%c1_i32_562, %c1_i32_563] : memref<4x8x!tpu.dma_semaphore, #tpu.memory_space<semaphore_mem>> -> memref<1x1x!tpu.dma_semaphore, #tpu.memory_space<semaphore_mem>>
        %664 = tpu.memref_squeeze %663 : memref<1x1x!tpu.dma_semaphore, #tpu.memory_space<semaphore_mem>> -> memref<!tpu.dma_semaphore, #tpu.memory_space<semaphore_mem>>
        tpu.enqueue_dma source(%660 : memref<1x256xf32, #tpu.memory_space<any>>) target(%662 : memref<1x256xf32, #tpu.memory_space<vmem>>) target_semaphore(%664 : memref<!tpu.dma_semaphore, #tpu.memory_space<semaphore_mem>>)
        %c1_i32_567 = arith.constant 1 : i32
        %c1_i32_568 = arith.constant 1 : i32
        %c2_i32_569 = arith.constant 2 : i32
        %c0_i32_570 = arith.constant 0 : i32
        %665 = tpu.memref_slice %arg2[%426, %c0_i32_570] : memref<30000x256xf32, #tpu.memory_space<any>> -> memref<1x256xf32, #tpu.memory_space<any>>
        %c2_i32_571 = arith.constant 2 : i32
        %c0_i32_572 = arith.constant 0 : i32
        %666 = tpu.memref_slice %arg10[%c1_i32_567, %c2_i32_571, %c0_i32_572] : memref<4x8x256xf32, #tpu.memory_space<vmem>> -> memref<1x1x256xf32, #tpu.memory_space<vmem>>
        %667 = tpu.memref_squeeze %666 : memref<1x1x256xf32, #tpu.memory_space<vmem>> -> memref<1x256xf32, #tpu.memory_space<vmem>>
        %668 = tpu.memref_slice %arg11[%c1_i32_568, %c2_i32_569] : memref<4x8x!tpu.dma_semaphore, #tpu.memory_space<semaphore_mem>> -> memref<1x1x!tpu.dma_semaphore, #tpu.memory_space<semaphore_mem>>
        %669 = tpu.memref_squeeze %668 : memref<1x1x!tpu.dma_semaphore, #tpu.memory_space<semaphore_mem>> -> memref<!tpu.dma_semaphore, #tpu.memory_space<semaphore_mem>>
        tpu.enqueue_dma source(%665 : memref<1x256xf32, #tpu.memory_space<any>>) target(%667 : memref<1x256xf32, #tpu.memory_space<vmem>>) target_semaphore(%669 : memref<!tpu.dma_semaphore, #tpu.memory_space<semaphore_mem>>)
        %c1_i32_573 = arith.constant 1 : i32
        %c1_i32_574 = arith.constant 1 : i32
        %c3_i32_575 = arith.constant 3 : i32
        %c0_i32_576 = arith.constant 0 : i32
        %670 = tpu.memref_slice %arg2[%430, %c0_i32_576] : memref<30000x256xf32, #tpu.memory_space<any>> -> memref<1x256xf32, #tpu.memory_space<any>>
        %c3_i32_577 = arith.constant 3 : i32
        %c0_i32_578 = arith.constant 0 : i32
        %671 = tpu.memref_slice %arg10[%c1_i32_573, %c3_i32_577, %c0_i32_578] : memref<4x8x256xf32, #tpu.memory_space<vmem>> -> memref<1x1x256xf32, #tpu.memory_space<vmem>>
        %672 = tpu.memref_squeeze %671 : memref<1x1x256xf32, #tpu.memory_space<vmem>> -> memref<1x256xf32, #tpu.memory_space<vmem>>
        %673 = tpu.memref_slice %arg11[%c1_i32_574, %c3_i32_575] : memref<4x8x!tpu.dma_semaphore, #tpu.memory_space<semaphore_mem>> -> memref<1x1x!tpu.dma_semaphore, #tpu.memory_space<semaphore_mem>>
        %674 = tpu.memref_squeeze %673 : memref<1x1x!tpu.dma_semaphore, #tpu.memory_space<semaphore_mem>> -> memref<!tpu.dma_semaphore, #tpu.memory_space<semaphore_mem>>
        tpu.enqueue_dma source(%670 : memref<1x256xf32, #tpu.memory_space<any>>) target(%672 : memref<1x256xf32, #tpu.memory_space<vmem>>) target_semaphore(%674 : memref<!tpu.dma_semaphore, #tpu.memory_space<semaphore_mem>>)
        %c1_i32_579 = arith.constant 1 : i32
        %c1_i32_580 = arith.constant 1 : i32
        %c4_i32_581 = arith.constant 4 : i32
        %c0_i32_582 = arith.constant 0 : i32
        %675 = tpu.memref_slice %arg2[%434, %c0_i32_582] : memref<30000x256xf32, #tpu.memory_space<any>> -> memref<1x256xf32, #tpu.memory_space<any>>
        %c4_i32_583 = arith.constant 4 : i32
        %c0_i32_584 = arith.constant 0 : i32
        %676 = tpu.memref_slice %arg10[%c1_i32_579, %c4_i32_583, %c0_i32_584] : memref<4x8x256xf32, #tpu.memory_space<vmem>> -> memref<1x1x256xf32, #tpu.memory_space<vmem>>
        %677 = tpu.memref_squeeze %676 : memref<1x1x256xf32, #tpu.memory_space<vmem>> -> memref<1x256xf32, #tpu.memory_space<vmem>>
        %678 = tpu.memref_slice %arg11[%c1_i32_580, %c4_i32_581] : memref<4x8x!tpu.dma_semaphore, #tpu.memory_space<semaphore_mem>> -> memref<1x1x!tpu.dma_semaphore, #tpu.memory_space<semaphore_mem>>
        %679 = tpu.memref_squeeze %678 : memref<1x1x!tpu.dma_semaphore, #tpu.memory_space<semaphore_mem>> -> memref<!tpu.dma_semaphore, #tpu.memory_space<semaphore_mem>>
        tpu.enqueue_dma source(%675 : memref<1x256xf32, #tpu.memory_space<any>>) target(%677 : memref<1x256xf32, #tpu.memory_space<vmem>>) target_semaphore(%679 : memref<!tpu.dma_semaphore, #tpu.memory_space<semaphore_mem>>)
        %c1_i32_585 = arith.constant 1 : i32
        %c1_i32_586 = arith.constant 1 : i32
        %c5_i32_587 = arith.constant 5 : i32
        %c0_i32_588 = arith.constant 0 : i32
        %680 = tpu.memref_slice %arg2[%438, %c0_i32_588] : memref<30000x256xf32, #tpu.memory_space<any>> -> memref<1x256xf32, #tpu.memory_space<any>>
        %c5_i32_589 = arith.constant 5 : i32
        %c0_i32_590 = arith.constant 0 : i32
        %681 = tpu.memref_slice %arg10[%c1_i32_585, %c5_i32_589, %c0_i32_590] : memref<4x8x256xf32, #tpu.memory_space<vmem>> -> memref<1x1x256xf32, #tpu.memory_space<vmem>>
        %682 = tpu.memref_squeeze %681 : memref<1x1x256xf32, #tpu.memory_space<vmem>> -> memref<1x256xf32, #tpu.memory_space<vmem>>
        %683 = tpu.memref_slice %arg11[%c1_i32_586, %c5_i32_587] : memref<4x8x!tpu.dma_semaphore, #tpu.memory_space<semaphore_mem>> -> memref<1x1x!tpu.dma_semaphore, #tpu.memory_space<semaphore_mem>>
        %684 = tpu.memref_squeeze %683 : memref<1x1x!tpu.dma_semaphore, #tpu.memory_space<semaphore_mem>> -> memref<!tpu.dma_semaphore, #tpu.memory_space<semaphore_mem>>
        tpu.enqueue_dma source(%680 : memref<1x256xf32, #tpu.memory_space<any>>) target(%682 : memref<1x256xf32, #tpu.memory_space<vmem>>) target_semaphore(%684 : memref<!tpu.dma_semaphore, #tpu.memory_space<semaphore_mem>>)
        %c1_i32_591 = arith.constant 1 : i32
        %c1_i32_592 = arith.constant 1 : i32
        %c6_i32_593 = arith.constant 6 : i32
        %c0_i32_594 = arith.constant 0 : i32
        %685 = tpu.memref_slice %arg2[%442, %c0_i32_594] : memref<30000x256xf32, #tpu.memory_space<any>> -> memref<1x256xf32, #tpu.memory_space<any>>
        %c6_i32_595 = arith.constant 6 : i32
        %c0_i32_596 = arith.constant 0 : i32
        %686 = tpu.memref_slice %arg10[%c1_i32_591, %c6_i32_595, %c0_i32_596] : memref<4x8x256xf32, #tpu.memory_space<vmem>> -> memref<1x1x256xf32, #tpu.memory_space<vmem>>
        %687 = tpu.memref_squeeze %686 : memref<1x1x256xf32, #tpu.memory_space<vmem>> -> memref<1x256xf32, #tpu.memory_space<vmem>>
        %688 = tpu.memref_slice %arg11[%c1_i32_592, %c6_i32_593] : memref<4x8x!tpu.dma_semaphore, #tpu.memory_space<semaphore_mem>> -> memref<1x1x!tpu.dma_semaphore, #tpu.memory_space<semaphore_mem>>
        %689 = tpu.memref_squeeze %688 : memref<1x1x!tpu.dma_semaphore, #tpu.memory_space<semaphore_mem>> -> memref<!tpu.dma_semaphore, #tpu.memory_space<semaphore_mem>>
        tpu.enqueue_dma source(%685 : memref<1x256xf32, #tpu.memory_space<any>>) target(%687 : memref<1x256xf32, #tpu.memory_space<vmem>>) target_semaphore(%689 : memref<!tpu.dma_semaphore, #tpu.memory_space<semaphore_mem>>)
        %c1_i32_597 = arith.constant 1 : i32
        %c1_i32_598 = arith.constant 1 : i32
        %c7_i32_599 = arith.constant 7 : i32
        %c0_i32_600 = arith.constant 0 : i32
        %690 = tpu.memref_slice %arg2[%446, %c0_i32_600] : memref<30000x256xf32, #tpu.memory_space<any>> -> memref<1x256xf32, #tpu.memory_space<any>>
        %c7_i32_601 = arith.constant 7 : i32
        %c0_i32_602 = arith.constant 0 : i32
        %691 = tpu.memref_slice %arg10[%c1_i32_597, %c7_i32_601, %c0_i32_602] : memref<4x8x256xf32, #tpu.memory_space<vmem>> -> memref<1x1x256xf32, #tpu.memory_space<vmem>>
        %692 = tpu.memref_squeeze %691 : memref<1x1x256xf32, #tpu.memory_space<vmem>> -> memref<1x256xf32, #tpu.memory_space<vmem>>
        %693 = tpu.memref_slice %arg11[%c1_i32_598, %c7_i32_599] : memref<4x8x!tpu.dma_semaphore, #tpu.memory_space<semaphore_mem>> -> memref<1x1x!tpu.dma_semaphore, #tpu.memory_space<semaphore_mem>>
        %694 = tpu.memref_squeeze %693 : memref<1x1x!tpu.dma_semaphore, #tpu.memory_space<semaphore_mem>> -> memref<!tpu.dma_semaphore, #tpu.memory_space<semaphore_mem>>
        tpu.enqueue_dma source(%690 : memref<1x256xf32, #tpu.memory_space<any>>) target(%692 : memref<1x256xf32, #tpu.memory_space<vmem>>) target_semaphore(%694 : memref<!tpu.dma_semaphore, #tpu.memory_space<semaphore_mem>>)
      } else {
      }
      %c2_i32_413 = arith.constant 2 : i32
      %493 = arith.addi %330, %c2_i32_413 : i32
      %c4_i32_414 = arith.constant 4 : i32
      %494 = arith.addi %493, %c4_i32_414 : i32
      %c7_i32_415 = arith.constant 7 : i32
      %495 = arith.minsi %494, %c7_i32_415 : i32
      %c0_i32_416 = arith.constant 0 : i32
      %496 = arith.addi %0, %c0_i32_416 : i32
      %497 = arith.addi %496, %495 : i32
      %498 = arith.index_cast %497 : i32 to index
      %499 = memref.load %arg1[%498] : memref<128xi32, #tpu.memory_space<smem>>
      %c8_i32_417 = arith.constant 8 : i32
      %500 = arith.addi %0, %c8_i32_417 : i32
      %501 = arith.addi %500, %495 : i32
      %502 = arith.index_cast %501 : i32 to index
      %503 = memref.load %arg1[%502] : memref<128xi32, #tpu.memory_space<smem>>
      %c16_i32_418 = arith.constant 16 : i32
      %504 = arith.addi %0, %c16_i32_418 : i32
      %505 = arith.addi %504, %495 : i32
      %506 = arith.index_cast %505 : i32 to index
      %507 = memref.load %arg1[%506] : memref<128xi32, #tpu.memory_space<smem>>
      %c24_i32_419 = arith.constant 24 : i32
      %508 = arith.addi %0, %c24_i32_419 : i32
      %509 = arith.addi %508, %495 : i32
      %510 = arith.index_cast %509 : i32 to index
      %511 = memref.load %arg1[%510] : memref<128xi32, #tpu.memory_space<smem>>
      %c32_i32_420 = arith.constant 32 : i32
      %512 = arith.addi %0, %c32_i32_420 : i32
      %513 = arith.addi %512, %495 : i32
      %514 = arith.index_cast %513 : i32 to index
      %515 = memref.load %arg1[%514] : memref<128xi32, #tpu.memory_space<smem>>
      %c40_i32_421 = arith.constant 40 : i32
      %516 = arith.addi %0, %c40_i32_421 : i32
      %517 = arith.addi %516, %495 : i32
      %518 = arith.index_cast %517 : i32 to index
      %519 = memref.load %arg1[%518] : memref<128xi32, #tpu.memory_space<smem>>
      %c48_i32_422 = arith.constant 48 : i32
      %520 = arith.addi %0, %c48_i32_422 : i32
      %521 = arith.addi %520, %495 : i32
      %522 = arith.index_cast %521 : i32 to index
      %523 = memref.load %arg1[%522] : memref<128xi32, #tpu.memory_space<smem>>
      %c56_i32_423 = arith.constant 56 : i32
      %524 = arith.addi %0, %c56_i32_423 : i32
      %525 = arith.addi %524, %495 : i32
      %526 = arith.index_cast %525 : i32 to index
      %527 = memref.load %arg1[%526] : memref<128xi32, #tpu.memory_space<smem>>
      %c2_i32_424 = arith.constant 2 : i32
      %c2_i32_425 = arith.constant 2 : i32
      %c0_i32_426 = arith.constant 0 : i32
      %c0_i32_427 = arith.constant 0 : i32
      %c0_i32_428 = arith.constant 0 : i32
      %528 = tpu.memref_slice %arg2[%c0_i32_427, %c0_i32_428] : memref<30000x256xf32, #tpu.memory_space<any>> -> memref<1x256xf32, #tpu.memory_space<any>>
      %c0_i32_429 = arith.constant 0 : i32
      %c0_i32_430 = arith.constant 0 : i32
      %529 = tpu.memref_slice %arg10[%c2_i32_424, %c0_i32_429, %c0_i32_430] : memref<4x8x256xf32, #tpu.memory_space<vmem>> -> memref<1x1x256xf32, #tpu.memory_space<vmem>>
      %530 = tpu.memref_squeeze %529 : memref<1x1x256xf32, #tpu.memory_space<vmem>> -> memref<1x256xf32, #tpu.memory_space<vmem>>
      %531 = tpu.memref_slice %arg11[%c2_i32_425, %c0_i32_426] : memref<4x8x!tpu.dma_semaphore, #tpu.memory_space<semaphore_mem>> -> memref<1x1x!tpu.dma_semaphore, #tpu.memory_space<semaphore_mem>>
      %532 = tpu.memref_squeeze %531 : memref<1x1x!tpu.dma_semaphore, #tpu.memory_space<semaphore_mem>> -> memref<!tpu.dma_semaphore, #tpu.memory_space<semaphore_mem>>
      tpu.wait_dma2 semaphore(%532 : memref<!tpu.dma_semaphore, #tpu.memory_space<semaphore_mem>>) src(%528 : memref<1x256xf32, #tpu.memory_space<any>>) dst(%530 : memref<1x256xf32, #tpu.memory_space<vmem>>)
      %c2_i32_431 = arith.constant 2 : i32
      %c2_i32_432 = arith.constant 2 : i32
      %c1_i32_433 = arith.constant 1 : i32
      %c0_i32_434 = arith.constant 0 : i32
      %c0_i32_435 = arith.constant 0 : i32
      %533 = tpu.memref_slice %arg2[%c0_i32_434, %c0_i32_435] : memref<30000x256xf32, #tpu.memory_space<any>> -> memref<1x256xf32, #tpu.memory_space<any>>
      %c1_i32_436 = arith.constant 1 : i32
      %c0_i32_437 = arith.constant 0 : i32
      %534 = tpu.memref_slice %arg10[%c2_i32_431, %c1_i32_436, %c0_i32_437] : memref<4x8x256xf32, #tpu.memory_space<vmem>> -> memref<1x1x256xf32, #tpu.memory_space<vmem>>
      %535 = tpu.memref_squeeze %534 : memref<1x1x256xf32, #tpu.memory_space<vmem>> -> memref<1x256xf32, #tpu.memory_space<vmem>>
      %536 = tpu.memref_slice %arg11[%c2_i32_432, %c1_i32_433] : memref<4x8x!tpu.dma_semaphore, #tpu.memory_space<semaphore_mem>> -> memref<1x1x!tpu.dma_semaphore, #tpu.memory_space<semaphore_mem>>
      %537 = tpu.memref_squeeze %536 : memref<1x1x!tpu.dma_semaphore, #tpu.memory_space<semaphore_mem>> -> memref<!tpu.dma_semaphore, #tpu.memory_space<semaphore_mem>>
      tpu.wait_dma2 semaphore(%537 : memref<!tpu.dma_semaphore, #tpu.memory_space<semaphore_mem>>) src(%533 : memref<1x256xf32, #tpu.memory_space<any>>) dst(%535 : memref<1x256xf32, #tpu.memory_space<vmem>>)
      %c2_i32_438 = arith.constant 2 : i32
      %c2_i32_439 = arith.constant 2 : i32
      %c2_i32_440 = arith.constant 2 : i32
      %c0_i32_441 = arith.constant 0 : i32
      %c0_i32_442 = arith.constant 0 : i32
      %538 = tpu.memref_slice %arg2[%c0_i32_441, %c0_i32_442] : memref<30000x256xf32, #tpu.memory_space<any>> -> memref<1x256xf32, #tpu.memory_space<any>>
      %c2_i32_443 = arith.constant 2 : i32
      %c0_i32_444 = arith.constant 0 : i32
      %539 = tpu.memref_slice %arg10[%c2_i32_438, %c2_i32_443, %c0_i32_444] : memref<4x8x256xf32, #tpu.memory_space<vmem>> -> memref<1x1x256xf32, #tpu.memory_space<vmem>>
      %540 = tpu.memref_squeeze %539 : memref<1x1x256xf32, #tpu.memory_space<vmem>> -> memref<1x256xf32, #tpu.memory_space<vmem>>
      %541 = tpu.memref_slice %arg11[%c2_i32_439, %c2_i32_440] : memref<4x8x!tpu.dma_semaphore, #tpu.memory_space<semaphore_mem>> -> memref<1x1x!tpu.dma_semaphore, #tpu.memory_space<semaphore_mem>>
      %542 = tpu.memref_squeeze %541 : memref<1x1x!tpu.dma_semaphore, #tpu.memory_space<semaphore_mem>> -> memref<!tpu.dma_semaphore, #tpu.memory_space<semaphore_mem>>
      tpu.wait_dma2 semaphore(%542 : memref<!tpu.dma_semaphore, #tpu.memory_space<semaphore_mem>>) src(%538 : memref<1x256xf32, #tpu.memory_space<any>>) dst(%540 : memref<1x256xf32, #tpu.memory_space<vmem>>)
      %c2_i32_445 = arith.constant 2 : i32
      %c2_i32_446 = arith.constant 2 : i32
      %c3_i32_447 = arith.constant 3 : i32
      %c0_i32_448 = arith.constant 0 : i32
      %c0_i32_449 = arith.constant 0 : i32
      %543 = tpu.memref_slice %arg2[%c0_i32_448, %c0_i32_449] : memref<30000x256xf32, #tpu.memory_space<any>> -> memref<1x256xf32, #tpu.memory_space<any>>
      %c3_i32_450 = arith.constant 3 : i32
      %c0_i32_451 = arith.constant 0 : i32
      %544 = tpu.memref_slice %arg10[%c2_i32_445, %c3_i32_450, %c0_i32_451] : memref<4x8x256xf32, #tpu.memory_space<vmem>> -> memref<1x1x256xf32, #tpu.memory_space<vmem>>
      %545 = tpu.memref_squeeze %544 : memref<1x1x256xf32, #tpu.memory_space<vmem>> -> memref<1x256xf32, #tpu.memory_space<vmem>>
      %546 = tpu.memref_slice %arg11[%c2_i32_446, %c3_i32_447] : memref<4x8x!tpu.dma_semaphore, #tpu.memory_space<semaphore_mem>> -> memref<1x1x!tpu.dma_semaphore, #tpu.memory_space<semaphore_mem>>
      %547 = tpu.memref_squeeze %546 : memref<1x1x!tpu.dma_semaphore, #tpu.memory_space<semaphore_mem>> -> memref<!tpu.dma_semaphore, #tpu.memory_space<semaphore_mem>>
      tpu.wait_dma2 semaphore(%547 : memref<!tpu.dma_semaphore, #tpu.memory_space<semaphore_mem>>) src(%543 : memref<1x256xf32, #tpu.memory_space<any>>) dst(%545 : memref<1x256xf32, #tpu.memory_space<vmem>>)
      %c2_i32_452 = arith.constant 2 : i32
      %c2_i32_453 = arith.constant 2 : i32
      %c4_i32_454 = arith.constant 4 : i32
      %c0_i32_455 = arith.constant 0 : i32
      %c0_i32_456 = arith.constant 0 : i32
      %548 = tpu.memref_slice %arg2[%c0_i32_455, %c0_i32_456] : memref<30000x256xf32, #tpu.memory_space<any>> -> memref<1x256xf32, #tpu.memory_space<any>>
      %c4_i32_457 = arith.constant 4 : i32
      %c0_i32_458 = arith.constant 0 : i32
      %549 = tpu.memref_slice %arg10[%c2_i32_452, %c4_i32_457, %c0_i32_458] : memref<4x8x256xf32, #tpu.memory_space<vmem>> -> memref<1x1x256xf32, #tpu.memory_space<vmem>>
      %550 = tpu.memref_squeeze %549 : memref<1x1x256xf32, #tpu.memory_space<vmem>> -> memref<1x256xf32, #tpu.memory_space<vmem>>
      %551 = tpu.memref_slice %arg11[%c2_i32_453, %c4_i32_454] : memref<4x8x!tpu.dma_semaphore, #tpu.memory_space<semaphore_mem>> -> memref<1x1x!tpu.dma_semaphore, #tpu.memory_space<semaphore_mem>>
      %552 = tpu.memref_squeeze %551 : memref<1x1x!tpu.dma_semaphore, #tpu.memory_space<semaphore_mem>> -> memref<!tpu.dma_semaphore, #tpu.memory_space<semaphore_mem>>
      tpu.wait_dma2 semaphore(%552 : memref<!tpu.dma_semaphore, #tpu.memory_space<semaphore_mem>>) src(%548 : memref<1x256xf32, #tpu.memory_space<any>>) dst(%550 : memref<1x256xf32, #tpu.memory_space<vmem>>)
      %c2_i32_459 = arith.constant 2 : i32
      %c2_i32_460 = arith.constant 2 : i32
      %c5_i32_461 = arith.constant 5 : i32
      %c0_i32_462 = arith.constant 0 : i32
      %c0_i32_463 = arith.constant 0 : i32
      %553 = tpu.memref_slice %arg2[%c0_i32_462, %c0_i32_463] : memref<30000x256xf32, #tpu.memory_space<any>> -> memref<1x256xf32, #tpu.memory_space<any>>
      %c5_i32_464 = arith.constant 5 : i32
      %c0_i32_465 = arith.constant 0 : i32
      %554 = tpu.memref_slice %arg10[%c2_i32_459, %c5_i32_464, %c0_i32_465] : memref<4x8x256xf32, #tpu.memory_space<vmem>> -> memref<1x1x256xf32, #tpu.memory_space<vmem>>
      %555 = tpu.memref_squeeze %554 : memref<1x1x256xf32, #tpu.memory_space<vmem>> -> memref<1x256xf32, #tpu.memory_space<vmem>>
      %556 = tpu.memref_slice %arg11[%c2_i32_460, %c5_i32_461] : memref<4x8x!tpu.dma_semaphore, #tpu.memory_space<semaphore_mem>> -> memref<1x1x!tpu.dma_semaphore, #tpu.memory_space<semaphore_mem>>
      %557 = tpu.memref_squeeze %556 : memref<1x1x!tpu.dma_semaphore, #tpu.memory_space<semaphore_mem>> -> memref<!tpu.dma_semaphore, #tpu.memory_space<semaphore_mem>>
      tpu.wait_dma2 semaphore(%557 : memref<!tpu.dma_semaphore, #tpu.memory_space<semaphore_mem>>) src(%553 : memref<1x256xf32, #tpu.memory_space<any>>) dst(%555 : memref<1x256xf32, #tpu.memory_space<vmem>>)
      %c2_i32_466 = arith.constant 2 : i32
      %c2_i32_467 = arith.constant 2 : i32
      %c6_i32_468 = arith.constant 6 : i32
      %c0_i32_469 = arith.constant 0 : i32
      %c0_i32_470 = arith.constant 0 : i32
      %558 = tpu.memref_slice %arg2[%c0_i32_469, %c0_i32_470] : memref<30000x256xf32, #tpu.memory_space<any>> -> memref<1x256xf32, #tpu.memory_space<any>>
      %c6_i32_471 = arith.constant 6 : i32
      %c0_i32_472 = arith.constant 0 : i32
      %559 = tpu.memref_slice %arg10[%c2_i32_466, %c6_i32_471, %c0_i32_472] : memref<4x8x256xf32, #tpu.memory_space<vmem>> -> memref<1x1x256xf32, #tpu.memory_space<vmem>>
      %560 = tpu.memref_squeeze %559 : memref<1x1x256xf32, #tpu.memory_space<vmem>> -> memref<1x256xf32, #tpu.memory_space<vmem>>
      %561 = tpu.memref_slice %arg11[%c2_i32_467, %c6_i32_468] : memref<4x8x!tpu.dma_semaphore, #tpu.memory_space<semaphore_mem>> -> memref<1x1x!tpu.dma_semaphore, #tpu.memory_space<semaphore_mem>>
      %562 = tpu.memref_squeeze %561 : memref<1x1x!tpu.dma_semaphore, #tpu.memory_space<semaphore_mem>> -> memref<!tpu.dma_semaphore, #tpu.memory_space<semaphore_mem>>
      tpu.wait_dma2 semaphore(%562 : memref<!tpu.dma_semaphore, #tpu.memory_space<semaphore_mem>>) src(%558 : memref<1x256xf32, #tpu.memory_space<any>>) dst(%560 : memref<1x256xf32, #tpu.memory_space<vmem>>)
      %c2_i32_473 = arith.constant 2 : i32
      %c2_i32_474 = arith.constant 2 : i32
      %c7_i32_475 = arith.constant 7 : i32
      %c0_i32_476 = arith.constant 0 : i32
      %c0_i32_477 = arith.constant 0 : i32
      %563 = tpu.memref_slice %arg2[%c0_i32_476, %c0_i32_477] : memref<30000x256xf32, #tpu.memory_space<any>> -> memref<1x256xf32, #tpu.memory_space<any>>
      %c7_i32_478 = arith.constant 7 : i32
      %c0_i32_479 = arith.constant 0 : i32
      %564 = tpu.memref_slice %arg10[%c2_i32_473, %c7_i32_478, %c0_i32_479] : memref<4x8x256xf32, #tpu.memory_space<vmem>> -> memref<1x1x256xf32, #tpu.memory_space<vmem>>
      %565 = tpu.memref_squeeze %564 : memref<1x1x256xf32, #tpu.memory_space<vmem>> -> memref<1x256xf32, #tpu.memory_space<vmem>>
      %566 = tpu.memref_slice %arg11[%c2_i32_474, %c7_i32_475] : memref<4x8x!tpu.dma_semaphore, #tpu.memory_space<semaphore_mem>> -> memref<1x1x!tpu.dma_semaphore, #tpu.memory_space<semaphore_mem>>
      %567 = tpu.memref_squeeze %566 : memref<1x1x!tpu.dma_semaphore, #tpu.memory_space<semaphore_mem>> -> memref<!tpu.dma_semaphore, #tpu.memory_space<semaphore_mem>>
      tpu.wait_dma2 semaphore(%567 : memref<!tpu.dma_semaphore, #tpu.memory_space<semaphore_mem>>) src(%563 : memref<1x256xf32, #tpu.memory_space<any>>) dst(%565 : memref<1x256xf32, #tpu.memory_space<vmem>>)
      %c2 = arith.constant 2 : index
      %c0_480 = arith.constant 0 : index
      %c0_481 = arith.constant 0 : index
      %568 = vector.load %arg10[%c2, %c0_480, %c0_481] : memref<4x8x256xf32, #tpu.memory_space<vmem>>, vector<1x8x256xf32>
      %569 = vector.shape_cast %568 : vector<1x8x256xf32> to vector<8x256xf32>
      %570 = arith.addf %489, %569 : vector<8x256xf32>
      %c8_i32_482 = arith.constant 8 : i32
      %571 = arith.cmpi slt, %494, %c8_i32_482 : i32
      %572 = arith.extui %571 : i1 to i32
      %c0_i32_483 = arith.constant 0 : i32
      %573 = arith.cmpi ne, %572, %c0_i32_483 : i32
      scf.if %573 {
        %c2_i32_555 = arith.constant 2 : i32
        %c2_i32_556 = arith.constant 2 : i32
        %c0_i32_557 = arith.constant 0 : i32
        %c0_i32_558 = arith.constant 0 : i32
        %655 = tpu.memref_slice %arg2[%499, %c0_i32_558] : memref<30000x256xf32, #tpu.memory_space<any>> -> memref<1x256xf32, #tpu.memory_space<any>>
        %c0_i32_559 = arith.constant 0 : i32
        %c0_i32_560 = arith.constant 0 : i32
        %656 = tpu.memref_slice %arg10[%c2_i32_555, %c0_i32_559, %c0_i32_560] : memref<4x8x256xf32, #tpu.memory_space<vmem>> -> memref<1x1x256xf32, #tpu.memory_space<vmem>>
        %657 = tpu.memref_squeeze %656 : memref<1x1x256xf32, #tpu.memory_space<vmem>> -> memref<1x256xf32, #tpu.memory_space<vmem>>
        %658 = tpu.memref_slice %arg11[%c2_i32_556, %c0_i32_557] : memref<4x8x!tpu.dma_semaphore, #tpu.memory_space<semaphore_mem>> -> memref<1x1x!tpu.dma_semaphore, #tpu.memory_space<semaphore_mem>>
        %659 = tpu.memref_squeeze %658 : memref<1x1x!tpu.dma_semaphore, #tpu.memory_space<semaphore_mem>> -> memref<!tpu.dma_semaphore, #tpu.memory_space<semaphore_mem>>
        tpu.enqueue_dma source(%655 : memref<1x256xf32, #tpu.memory_space<any>>) target(%657 : memref<1x256xf32, #tpu.memory_space<vmem>>) target_semaphore(%659 : memref<!tpu.dma_semaphore, #tpu.memory_space<semaphore_mem>>)
        %c2_i32_561 = arith.constant 2 : i32
        %c2_i32_562 = arith.constant 2 : i32
        %c1_i32_563 = arith.constant 1 : i32
        %c0_i32_564 = arith.constant 0 : i32
        %660 = tpu.memref_slice %arg2[%503, %c0_i32_564] : memref<30000x256xf32, #tpu.memory_space<any>> -> memref<1x256xf32, #tpu.memory_space<any>>
        %c1_i32_565 = arith.constant 1 : i32
        %c0_i32_566 = arith.constant 0 : i32
        %661 = tpu.memref_slice %arg10[%c2_i32_561, %c1_i32_565, %c0_i32_566] : memref<4x8x256xf32, #tpu.memory_space<vmem>> -> memref<1x1x256xf32, #tpu.memory_space<vmem>>
        %662 = tpu.memref_squeeze %661 : memref<1x1x256xf32, #tpu.memory_space<vmem>> -> memref<1x256xf32, #tpu.memory_space<vmem>>
        %663 = tpu.memref_slice %arg11[%c2_i32_562, %c1_i32_563] : memref<4x8x!tpu.dma_semaphore, #tpu.memory_space<semaphore_mem>> -> memref<1x1x!tpu.dma_semaphore, #tpu.memory_space<semaphore_mem>>
        %664 = tpu.memref_squeeze %663 : memref<1x1x!tpu.dma_semaphore, #tpu.memory_space<semaphore_mem>> -> memref<!tpu.dma_semaphore, #tpu.memory_space<semaphore_mem>>
        tpu.enqueue_dma source(%660 : memref<1x256xf32, #tpu.memory_space<any>>) target(%662 : memref<1x256xf32, #tpu.memory_space<vmem>>) target_semaphore(%664 : memref<!tpu.dma_semaphore, #tpu.memory_space<semaphore_mem>>)
        %c2_i32_567 = arith.constant 2 : i32
        %c2_i32_568 = arith.constant 2 : i32
        %c2_i32_569 = arith.constant 2 : i32
        %c0_i32_570 = arith.constant 0 : i32
        %665 = tpu.memref_slice %arg2[%507, %c0_i32_570] : memref<30000x256xf32, #tpu.memory_space<any>> -> memref<1x256xf32, #tpu.memory_space<any>>
        %c2_i32_571 = arith.constant 2 : i32
        %c0_i32_572 = arith.constant 0 : i32
        %666 = tpu.memref_slice %arg10[%c2_i32_567, %c2_i32_571, %c0_i32_572] : memref<4x8x256xf32, #tpu.memory_space<vmem>> -> memref<1x1x256xf32, #tpu.memory_space<vmem>>
        %667 = tpu.memref_squeeze %666 : memref<1x1x256xf32, #tpu.memory_space<vmem>> -> memref<1x256xf32, #tpu.memory_space<vmem>>
        %668 = tpu.memref_slice %arg11[%c2_i32_568, %c2_i32_569] : memref<4x8x!tpu.dma_semaphore, #tpu.memory_space<semaphore_mem>> -> memref<1x1x!tpu.dma_semaphore, #tpu.memory_space<semaphore_mem>>
        %669 = tpu.memref_squeeze %668 : memref<1x1x!tpu.dma_semaphore, #tpu.memory_space<semaphore_mem>> -> memref<!tpu.dma_semaphore, #tpu.memory_space<semaphore_mem>>
        tpu.enqueue_dma source(%665 : memref<1x256xf32, #tpu.memory_space<any>>) target(%667 : memref<1x256xf32, #tpu.memory_space<vmem>>) target_semaphore(%669 : memref<!tpu.dma_semaphore, #tpu.memory_space<semaphore_mem>>)
        %c2_i32_573 = arith.constant 2 : i32
        %c2_i32_574 = arith.constant 2 : i32
        %c3_i32_575 = arith.constant 3 : i32
        %c0_i32_576 = arith.constant 0 : i32
        %670 = tpu.memref_slice %arg2[%511, %c0_i32_576] : memref<30000x256xf32, #tpu.memory_space<any>> -> memref<1x256xf32, #tpu.memory_space<any>>
        %c3_i32_577 = arith.constant 3 : i32
        %c0_i32_578 = arith.constant 0 : i32
        %671 = tpu.memref_slice %arg10[%c2_i32_573, %c3_i32_577, %c0_i32_578] : memref<4x8x256xf32, #tpu.memory_space<vmem>> -> memref<1x1x256xf32, #tpu.memory_space<vmem>>
        %672 = tpu.memref_squeeze %671 : memref<1x1x256xf32, #tpu.memory_space<vmem>> -> memref<1x256xf32, #tpu.memory_space<vmem>>
        %673 = tpu.memref_slice %arg11[%c2_i32_574, %c3_i32_575] : memref<4x8x!tpu.dma_semaphore, #tpu.memory_space<semaphore_mem>> -> memref<1x1x!tpu.dma_semaphore, #tpu.memory_space<semaphore_mem>>
        %674 = tpu.memref_squeeze %673 : memref<1x1x!tpu.dma_semaphore, #tpu.memory_space<semaphore_mem>> -> memref<!tpu.dma_semaphore, #tpu.memory_space<semaphore_mem>>
        tpu.enqueue_dma source(%670 : memref<1x256xf32, #tpu.memory_space<any>>) target(%672 : memref<1x256xf32, #tpu.memory_space<vmem>>) target_semaphore(%674 : memref<!tpu.dma_semaphore, #tpu.memory_space<semaphore_mem>>)
        %c2_i32_579 = arith.constant 2 : i32
        %c2_i32_580 = arith.constant 2 : i32
        %c4_i32_581 = arith.constant 4 : i32
        %c0_i32_582 = arith.constant 0 : i32
        %675 = tpu.memref_slice %arg2[%515, %c0_i32_582] : memref<30000x256xf32, #tpu.memory_space<any>> -> memref<1x256xf32, #tpu.memory_space<any>>
        %c4_i32_583 = arith.constant 4 : i32
        %c0_i32_584 = arith.constant 0 : i32
        %676 = tpu.memref_slice %arg10[%c2_i32_579, %c4_i32_583, %c0_i32_584] : memref<4x8x256xf32, #tpu.memory_space<vmem>> -> memref<1x1x256xf32, #tpu.memory_space<vmem>>
        %677 = tpu.memref_squeeze %676 : memref<1x1x256xf32, #tpu.memory_space<vmem>> -> memref<1x256xf32, #tpu.memory_space<vmem>>
        %678 = tpu.memref_slice %arg11[%c2_i32_580, %c4_i32_581] : memref<4x8x!tpu.dma_semaphore, #tpu.memory_space<semaphore_mem>> -> memref<1x1x!tpu.dma_semaphore, #tpu.memory_space<semaphore_mem>>
        %679 = tpu.memref_squeeze %678 : memref<1x1x!tpu.dma_semaphore, #tpu.memory_space<semaphore_mem>> -> memref<!tpu.dma_semaphore, #tpu.memory_space<semaphore_mem>>
        tpu.enqueue_dma source(%675 : memref<1x256xf32, #tpu.memory_space<any>>) target(%677 : memref<1x256xf32, #tpu.memory_space<vmem>>) target_semaphore(%679 : memref<!tpu.dma_semaphore, #tpu.memory_space<semaphore_mem>>)
        %c2_i32_585 = arith.constant 2 : i32
        %c2_i32_586 = arith.constant 2 : i32
        %c5_i32_587 = arith.constant 5 : i32
        %c0_i32_588 = arith.constant 0 : i32
        %680 = tpu.memref_slice %arg2[%519, %c0_i32_588] : memref<30000x256xf32, #tpu.memory_space<any>> -> memref<1x256xf32, #tpu.memory_space<any>>
        %c5_i32_589 = arith.constant 5 : i32
        %c0_i32_590 = arith.constant 0 : i32
        %681 = tpu.memref_slice %arg10[%c2_i32_585, %c5_i32_589, %c0_i32_590] : memref<4x8x256xf32, #tpu.memory_space<vmem>> -> memref<1x1x256xf32, #tpu.memory_space<vmem>>
        %682 = tpu.memref_squeeze %681 : memref<1x1x256xf32, #tpu.memory_space<vmem>> -> memref<1x256xf32, #tpu.memory_space<vmem>>
        %683 = tpu.memref_slice %arg11[%c2_i32_586, %c5_i32_587] : memref<4x8x!tpu.dma_semaphore, #tpu.memory_space<semaphore_mem>> -> memref<1x1x!tpu.dma_semaphore, #tpu.memory_space<semaphore_mem>>
        %684 = tpu.memref_squeeze %683 : memref<1x1x!tpu.dma_semaphore, #tpu.memory_space<semaphore_mem>> -> memref<!tpu.dma_semaphore, #tpu.memory_space<semaphore_mem>>
        tpu.enqueue_dma source(%680 : memref<1x256xf32, #tpu.memory_space<any>>) target(%682 : memref<1x256xf32, #tpu.memory_space<vmem>>) target_semaphore(%684 : memref<!tpu.dma_semaphore, #tpu.memory_space<semaphore_mem>>)
        %c2_i32_591 = arith.constant 2 : i32
        %c2_i32_592 = arith.constant 2 : i32
        %c6_i32_593 = arith.constant 6 : i32
        %c0_i32_594 = arith.constant 0 : i32
        %685 = tpu.memref_slice %arg2[%523, %c0_i32_594] : memref<30000x256xf32, #tpu.memory_space<any>> -> memref<1x256xf32, #tpu.memory_space<any>>
        %c6_i32_595 = arith.constant 6 : i32
        %c0_i32_596 = arith.constant 0 : i32
        %686 = tpu.memref_slice %arg10[%c2_i32_591, %c6_i32_595, %c0_i32_596] : memref<4x8x256xf32, #tpu.memory_space<vmem>> -> memref<1x1x256xf32, #tpu.memory_space<vmem>>
        %687 = tpu.memref_squeeze %686 : memref<1x1x256xf32, #tpu.memory_space<vmem>> -> memref<1x256xf32, #tpu.memory_space<vmem>>
        %688 = tpu.memref_slice %arg11[%c2_i32_592, %c6_i32_593] : memref<4x8x!tpu.dma_semaphore, #tpu.memory_space<semaphore_mem>> -> memref<1x1x!tpu.dma_semaphore, #tpu.memory_space<semaphore_mem>>
        %689 = tpu.memref_squeeze %688 : memref<1x1x!tpu.dma_semaphore, #tpu.memory_space<semaphore_mem>> -> memref<!tpu.dma_semaphore, #tpu.memory_space<semaphore_mem>>
        tpu.enqueue_dma source(%685 : memref<1x256xf32, #tpu.memory_space<any>>) target(%687 : memref<1x256xf32, #tpu.memory_space<vmem>>) target_semaphore(%689 : memref<!tpu.dma_semaphore, #tpu.memory_space<semaphore_mem>>)
        %c2_i32_597 = arith.constant 2 : i32
        %c2_i32_598 = arith.constant 2 : i32
        %c7_i32_599 = arith.constant 7 : i32
        %c0_i32_600 = arith.constant 0 : i32
        %690 = tpu.memref_slice %arg2[%527, %c0_i32_600] : memref<30000x256xf32, #tpu.memory_space<any>> -> memref<1x256xf32, #tpu.memory_space<any>>
        %c7_i32_601 = arith.constant 7 : i32
        %c0_i32_602 = arith.constant 0 : i32
        %691 = tpu.memref_slice %arg10[%c2_i32_597, %c7_i32_601, %c0_i32_602] : memref<4x8x256xf32, #tpu.memory_space<vmem>> -> memref<1x1x256xf32, #tpu.memory_space<vmem>>
        %692 = tpu.memref_squeeze %691 : memref<1x1x256xf32, #tpu.memory_space<vmem>> -> memref<1x256xf32, #tpu.memory_space<vmem>>
        %693 = tpu.memref_slice %arg11[%c2_i32_598, %c7_i32_599] : memref<4x8x!tpu.dma_semaphore, #tpu.memory_space<semaphore_mem>> -> memref<1x1x!tpu.dma_semaphore, #tpu.memory_space<semaphore_mem>>
        %694 = tpu.memref_squeeze %693 : memref<1x1x!tpu.dma_semaphore, #tpu.memory_space<semaphore_mem>> -> memref<!tpu.dma_semaphore, #tpu.memory_space<semaphore_mem>>
        tpu.enqueue_dma source(%690 : memref<1x256xf32, #tpu.memory_space<any>>) target(%692 : memref<1x256xf32, #tpu.memory_space<vmem>>) target_semaphore(%694 : memref<!tpu.dma_semaphore, #tpu.memory_space<semaphore_mem>>)
      } else {
      }
      %c3_i32_484 = arith.constant 3 : i32
      %574 = arith.addi %330, %c3_i32_484 : i32
      %c4_i32_485 = arith.constant 4 : i32
      %575 = arith.addi %574, %c4_i32_485 : i32
      %c7_i32_486 = arith.constant 7 : i32
      %576 = arith.minsi %575, %c7_i32_486 : i32
      %c0_i32_487 = arith.constant 0 : i32
      %577 = arith.addi %0, %c0_i32_487 : i32
      %578 = arith.addi %577, %576 : i32
      %579 = arith.index_cast %578 : i32 to index
      %580 = memref.load %arg1[%579] : memref<128xi32, #tpu.memory_space<smem>>
      %c8_i32_488 = arith.constant 8 : i32
      %581 = arith.addi %0, %c8_i32_488 : i32
      %582 = arith.addi %581, %576 : i32
      %583 = arith.index_cast %582 : i32 to index
      %584 = memref.load %arg1[%583] : memref<128xi32, #tpu.memory_space<smem>>
      %c16_i32_489 = arith.constant 16 : i32
      %585 = arith.addi %0, %c16_i32_489 : i32
      %586 = arith.addi %585, %576 : i32
      %587 = arith.index_cast %586 : i32 to index
      %588 = memref.load %arg1[%587] : memref<128xi32, #tpu.memory_space<smem>>
      %c24_i32_490 = arith.constant 24 : i32
      %589 = arith.addi %0, %c24_i32_490 : i32
      %590 = arith.addi %589, %576 : i32
      %591 = arith.index_cast %590 : i32 to index
      %592 = memref.load %arg1[%591] : memref<128xi32, #tpu.memory_space<smem>>
      %c32_i32_491 = arith.constant 32 : i32
      %593 = arith.addi %0, %c32_i32_491 : i32
      %594 = arith.addi %593, %576 : i32
      %595 = arith.index_cast %594 : i32 to index
      %596 = memref.load %arg1[%595] : memref<128xi32, #tpu.memory_space<smem>>
      %c40_i32_492 = arith.constant 40 : i32
      %597 = arith.addi %0, %c40_i32_492 : i32
      %598 = arith.addi %597, %576 : i32
      %599 = arith.index_cast %598 : i32 to index
      %600 = memref.load %arg1[%599] : memref<128xi32, #tpu.memory_space<smem>>
      %c48_i32_493 = arith.constant 48 : i32
      %601 = arith.addi %0, %c48_i32_493 : i32
      %602 = arith.addi %601, %576 : i32
      %603 = arith.index_cast %602 : i32 to index
      %604 = memref.load %arg1[%603] : memref<128xi32, #tpu.memory_space<smem>>
      %c56_i32_494 = arith.constant 56 : i32
      %605 = arith.addi %0, %c56_i32_494 : i32
      %606 = arith.addi %605, %576 : i32
      %607 = arith.index_cast %606 : i32 to index
      %608 = memref.load %arg1[%607] : memref<128xi32, #tpu.memory_space<smem>>
      %c3_i32_495 = arith.constant 3 : i32
      %c3_i32_496 = arith.constant 3 : i32
      %c0_i32_497 = arith.constant 0 : i32
      %c0_i32_498 = arith.constant 0 : i32
      %c0_i32_499 = arith.constant 0 : i32
      %609 = tpu.memref_slice %arg2[%c0_i32_498, %c0_i32_499] : memref<30000x256xf32, #tpu.memory_space<any>> -> memref<1x256xf32, #tpu.memory_space<any>>
      %c0_i32_500 = arith.constant 0 : i32
      %c0_i32_501 = arith.constant 0 : i32
      %610 = tpu.memref_slice %arg10[%c3_i32_495, %c0_i32_500, %c0_i32_501] : memref<4x8x256xf32, #tpu.memory_space<vmem>> -> memref<1x1x256xf32, #tpu.memory_space<vmem>>
      %611 = tpu.memref_squeeze %610 : memref<1x1x256xf32, #tpu.memory_space<vmem>> -> memref<1x256xf32, #tpu.memory_space<vmem>>
      %612 = tpu.memref_slice %arg11[%c3_i32_496, %c0_i32_497] : memref<4x8x!tpu.dma_semaphore, #tpu.memory_space<semaphore_mem>> -> memref<1x1x!tpu.dma_semaphore, #tpu.memory_space<semaphore_mem>>
      %613 = tpu.memref_squeeze %612 : memref<1x1x!tpu.dma_semaphore, #tpu.memory_space<semaphore_mem>> -> memref<!tpu.dma_semaphore, #tpu.memory_space<semaphore_mem>>
      tpu.wait_dma2 semaphore(%613 : memref<!tpu.dma_semaphore, #tpu.memory_space<semaphore_mem>>) src(%609 : memref<1x256xf32, #tpu.memory_space<any>>) dst(%611 : memref<1x256xf32, #tpu.memory_space<vmem>>)
      %c3_i32_502 = arith.constant 3 : i32
      %c3_i32_503 = arith.constant 3 : i32
      %c1_i32_504 = arith.constant 1 : i32
      %c0_i32_505 = arith.constant 0 : i32
      %c0_i32_506 = arith.constant 0 : i32
      %614 = tpu.memref_slice %arg2[%c0_i32_505, %c0_i32_506] : memref<30000x256xf32, #tpu.memory_space<any>> -> memref<1x256xf32, #tpu.memory_space<any>>
      %c1_i32_507 = arith.constant 1 : i32
      %c0_i32_508 = arith.constant 0 : i32
      %615 = tpu.memref_slice %arg10[%c3_i32_502, %c1_i32_507, %c0_i32_508] : memref<4x8x256xf32, #tpu.memory_space<vmem>> -> memref<1x1x256xf32, #tpu.memory_space<vmem>>
      %616 = tpu.memref_squeeze %615 : memref<1x1x256xf32, #tpu.memory_space<vmem>> -> memref<1x256xf32, #tpu.memory_space<vmem>>
      %617 = tpu.memref_slice %arg11[%c3_i32_503, %c1_i32_504] : memref<4x8x!tpu.dma_semaphore, #tpu.memory_space<semaphore_mem>> -> memref<1x1x!tpu.dma_semaphore, #tpu.memory_space<semaphore_mem>>
      %618 = tpu.memref_squeeze %617 : memref<1x1x!tpu.dma_semaphore, #tpu.memory_space<semaphore_mem>> -> memref<!tpu.dma_semaphore, #tpu.memory_space<semaphore_mem>>
      tpu.wait_dma2 semaphore(%618 : memref<!tpu.dma_semaphore, #tpu.memory_space<semaphore_mem>>) src(%614 : memref<1x256xf32, #tpu.memory_space<any>>) dst(%616 : memref<1x256xf32, #tpu.memory_space<vmem>>)
      %c3_i32_509 = arith.constant 3 : i32
      %c3_i32_510 = arith.constant 3 : i32
      %c2_i32_511 = arith.constant 2 : i32
      %c0_i32_512 = arith.constant 0 : i32
      %c0_i32_513 = arith.constant 0 : i32
      %619 = tpu.memref_slice %arg2[%c0_i32_512, %c0_i32_513] : memref<30000x256xf32, #tpu.memory_space<any>> -> memref<1x256xf32, #tpu.memory_space<any>>
      %c2_i32_514 = arith.constant 2 : i32
      %c0_i32_515 = arith.constant 0 : i32
      %620 = tpu.memref_slice %arg10[%c3_i32_509, %c2_i32_514, %c0_i32_515] : memref<4x8x256xf32, #tpu.memory_space<vmem>> -> memref<1x1x256xf32, #tpu.memory_space<vmem>>
      %621 = tpu.memref_squeeze %620 : memref<1x1x256xf32, #tpu.memory_space<vmem>> -> memref<1x256xf32, #tpu.memory_space<vmem>>
      %622 = tpu.memref_slice %arg11[%c3_i32_510, %c2_i32_511] : memref<4x8x!tpu.dma_semaphore, #tpu.memory_space<semaphore_mem>> -> memref<1x1x!tpu.dma_semaphore, #tpu.memory_space<semaphore_mem>>
      %623 = tpu.memref_squeeze %622 : memref<1x1x!tpu.dma_semaphore, #tpu.memory_space<semaphore_mem>> -> memref<!tpu.dma_semaphore, #tpu.memory_space<semaphore_mem>>
      tpu.wait_dma2 semaphore(%623 : memref<!tpu.dma_semaphore, #tpu.memory_space<semaphore_mem>>) src(%619 : memref<1x256xf32, #tpu.memory_space<any>>) dst(%621 : memref<1x256xf32, #tpu.memory_space<vmem>>)
      %c3_i32_516 = arith.constant 3 : i32
      %c3_i32_517 = arith.constant 3 : i32
      %c3_i32_518 = arith.constant 3 : i32
      %c0_i32_519 = arith.constant 0 : i32
      %c0_i32_520 = arith.constant 0 : i32
      %624 = tpu.memref_slice %arg2[%c0_i32_519, %c0_i32_520] : memref<30000x256xf32, #tpu.memory_space<any>> -> memref<1x256xf32, #tpu.memory_space<any>>
      %c3_i32_521 = arith.constant 3 : i32
      %c0_i32_522 = arith.constant 0 : i32
      %625 = tpu.memref_slice %arg10[%c3_i32_516, %c3_i32_521, %c0_i32_522] : memref<4x8x256xf32, #tpu.memory_space<vmem>> -> memref<1x1x256xf32, #tpu.memory_space<vmem>>
      %626 = tpu.memref_squeeze %625 : memref<1x1x256xf32, #tpu.memory_space<vmem>> -> memref<1x256xf32, #tpu.memory_space<vmem>>
      %627 = tpu.memref_slice %arg11[%c3_i32_517, %c3_i32_518] : memref<4x8x!tpu.dma_semaphore, #tpu.memory_space<semaphore_mem>> -> memref<1x1x!tpu.dma_semaphore, #tpu.memory_space<semaphore_mem>>
      %628 = tpu.memref_squeeze %627 : memref<1x1x!tpu.dma_semaphore, #tpu.memory_space<semaphore_mem>> -> memref<!tpu.dma_semaphore, #tpu.memory_space<semaphore_mem>>
      tpu.wait_dma2 semaphore(%628 : memref<!tpu.dma_semaphore, #tpu.memory_space<semaphore_mem>>) src(%624 : memref<1x256xf32, #tpu.memory_space<any>>) dst(%626 : memref<1x256xf32, #tpu.memory_space<vmem>>)
      %c3_i32_523 = arith.constant 3 : i32
      %c3_i32_524 = arith.constant 3 : i32
      %c4_i32_525 = arith.constant 4 : i32
      %c0_i32_526 = arith.constant 0 : i32
      %c0_i32_527 = arith.constant 0 : i32
      %629 = tpu.memref_slice %arg2[%c0_i32_526, %c0_i32_527] : memref<30000x256xf32, #tpu.memory_space<any>> -> memref<1x256xf32, #tpu.memory_space<any>>
      %c4_i32_528 = arith.constant 4 : i32
      %c0_i32_529 = arith.constant 0 : i32
      %630 = tpu.memref_slice %arg10[%c3_i32_523, %c4_i32_528, %c0_i32_529] : memref<4x8x256xf32, #tpu.memory_space<vmem>> -> memref<1x1x256xf32, #tpu.memory_space<vmem>>
      %631 = tpu.memref_squeeze %630 : memref<1x1x256xf32, #tpu.memory_space<vmem>> -> memref<1x256xf32, #tpu.memory_space<vmem>>
      %632 = tpu.memref_slice %arg11[%c3_i32_524, %c4_i32_525] : memref<4x8x!tpu.dma_semaphore, #tpu.memory_space<semaphore_mem>> -> memref<1x1x!tpu.dma_semaphore, #tpu.memory_space<semaphore_mem>>
      %633 = tpu.memref_squeeze %632 : memref<1x1x!tpu.dma_semaphore, #tpu.memory_space<semaphore_mem>> -> memref<!tpu.dma_semaphore, #tpu.memory_space<semaphore_mem>>
      tpu.wait_dma2 semaphore(%633 : memref<!tpu.dma_semaphore, #tpu.memory_space<semaphore_mem>>) src(%629 : memref<1x256xf32, #tpu.memory_space<any>>) dst(%631 : memref<1x256xf32, #tpu.memory_space<vmem>>)
      %c3_i32_530 = arith.constant 3 : i32
      %c3_i32_531 = arith.constant 3 : i32
      %c5_i32_532 = arith.constant 5 : i32
      %c0_i32_533 = arith.constant 0 : i32
      %c0_i32_534 = arith.constant 0 : i32
      %634 = tpu.memref_slice %arg2[%c0_i32_533, %c0_i32_534] : memref<30000x256xf32, #tpu.memory_space<any>> -> memref<1x256xf32, #tpu.memory_space<any>>
      %c5_i32_535 = arith.constant 5 : i32
      %c0_i32_536 = arith.constant 0 : i32
      %635 = tpu.memref_slice %arg10[%c3_i32_530, %c5_i32_535, %c0_i32_536] : memref<4x8x256xf32, #tpu.memory_space<vmem>> -> memref<1x1x256xf32, #tpu.memory_space<vmem>>
      %636 = tpu.memref_squeeze %635 : memref<1x1x256xf32, #tpu.memory_space<vmem>> -> memref<1x256xf32, #tpu.memory_space<vmem>>
      %637 = tpu.memref_slice %arg11[%c3_i32_531, %c5_i32_532] : memref<4x8x!tpu.dma_semaphore, #tpu.memory_space<semaphore_mem>> -> memref<1x1x!tpu.dma_semaphore, #tpu.memory_space<semaphore_mem>>
      %638 = tpu.memref_squeeze %637 : memref<1x1x!tpu.dma_semaphore, #tpu.memory_space<semaphore_mem>> -> memref<!tpu.dma_semaphore, #tpu.memory_space<semaphore_mem>>
      tpu.wait_dma2 semaphore(%638 : memref<!tpu.dma_semaphore, #tpu.memory_space<semaphore_mem>>) src(%634 : memref<1x256xf32, #tpu.memory_space<any>>) dst(%636 : memref<1x256xf32, #tpu.memory_space<vmem>>)
      %c3_i32_537 = arith.constant 3 : i32
      %c3_i32_538 = arith.constant 3 : i32
      %c6_i32_539 = arith.constant 6 : i32
      %c0_i32_540 = arith.constant 0 : i32
      %c0_i32_541 = arith.constant 0 : i32
      %639 = tpu.memref_slice %arg2[%c0_i32_540, %c0_i32_541] : memref<30000x256xf32, #tpu.memory_space<any>> -> memref<1x256xf32, #tpu.memory_space<any>>
      %c6_i32_542 = arith.constant 6 : i32
      %c0_i32_543 = arith.constant 0 : i32
      %640 = tpu.memref_slice %arg10[%c3_i32_537, %c6_i32_542, %c0_i32_543] : memref<4x8x256xf32, #tpu.memory_space<vmem>> -> memref<1x1x256xf32, #tpu.memory_space<vmem>>
      %641 = tpu.memref_squeeze %640 : memref<1x1x256xf32, #tpu.memory_space<vmem>> -> memref<1x256xf32, #tpu.memory_space<vmem>>
      %642 = tpu.memref_slice %arg11[%c3_i32_538, %c6_i32_539] : memref<4x8x!tpu.dma_semaphore, #tpu.memory_space<semaphore_mem>> -> memref<1x1x!tpu.dma_semaphore, #tpu.memory_space<semaphore_mem>>
      %643 = tpu.memref_squeeze %642 : memref<1x1x!tpu.dma_semaphore, #tpu.memory_space<semaphore_mem>> -> memref<!tpu.dma_semaphore, #tpu.memory_space<semaphore_mem>>
      tpu.wait_dma2 semaphore(%643 : memref<!tpu.dma_semaphore, #tpu.memory_space<semaphore_mem>>) src(%639 : memref<1x256xf32, #tpu.memory_space<any>>) dst(%641 : memref<1x256xf32, #tpu.memory_space<vmem>>)
      %c3_i32_544 = arith.constant 3 : i32
      %c3_i32_545 = arith.constant 3 : i32
      %c7_i32_546 = arith.constant 7 : i32
      %c0_i32_547 = arith.constant 0 : i32
      %c0_i32_548 = arith.constant 0 : i32
      %644 = tpu.memref_slice %arg2[%c0_i32_547, %c0_i32_548] : memref<30000x256xf32, #tpu.memory_space<any>> -> memref<1x256xf32, #tpu.memory_space<any>>
      %c7_i32_549 = arith.constant 7 : i32
      %c0_i32_550 = arith.constant 0 : i32
      %645 = tpu.memref_slice %arg10[%c3_i32_544, %c7_i32_549, %c0_i32_550] : memref<4x8x256xf32, #tpu.memory_space<vmem>> -> memref<1x1x256xf32, #tpu.memory_space<vmem>>
      %646 = tpu.memref_squeeze %645 : memref<1x1x256xf32, #tpu.memory_space<vmem>> -> memref<1x256xf32, #tpu.memory_space<vmem>>
      %647 = tpu.memref_slice %arg11[%c3_i32_545, %c7_i32_546] : memref<4x8x!tpu.dma_semaphore, #tpu.memory_space<semaphore_mem>> -> memref<1x1x!tpu.dma_semaphore, #tpu.memory_space<semaphore_mem>>
      %648 = tpu.memref_squeeze %647 : memref<1x1x!tpu.dma_semaphore, #tpu.memory_space<semaphore_mem>> -> memref<!tpu.dma_semaphore, #tpu.memory_space<semaphore_mem>>
      tpu.wait_dma2 semaphore(%648 : memref<!tpu.dma_semaphore, #tpu.memory_space<semaphore_mem>>) src(%644 : memref<1x256xf32, #tpu.memory_space<any>>) dst(%646 : memref<1x256xf32, #tpu.memory_space<vmem>>)
      %c3 = arith.constant 3 : index
      %c0_551 = arith.constant 0 : index
      %c0_552 = arith.constant 0 : index
      %649 = vector.load %arg10[%c3, %c0_551, %c0_552] : memref<4x8x256xf32, #tpu.memory_space<vmem>>, vector<1x8x256xf32>
      %650 = vector.shape_cast %649 : vector<1x8x256xf32> to vector<8x256xf32>
      %651 = arith.addf %570, %650 : vector<8x256xf32>
      %c8_i32_553 = arith.constant 8 : i32
      %652 = arith.cmpi slt, %575, %c8_i32_553 : i32
      %653 = arith.extui %652 : i1 to i32
      %c0_i32_554 = arith.constant 0 : i32
      %654 = arith.cmpi ne, %653, %c0_i32_554 : i32
      scf.if %654 {
        %c3_i32_555 = arith.constant 3 : i32
        %c3_i32_556 = arith.constant 3 : i32
        %c0_i32_557 = arith.constant 0 : i32
        %c0_i32_558 = arith.constant 0 : i32
        %655 = tpu.memref_slice %arg2[%580, %c0_i32_558] : memref<30000x256xf32, #tpu.memory_space<any>> -> memref<1x256xf32, #tpu.memory_space<any>>
        %c0_i32_559 = arith.constant 0 : i32
        %c0_i32_560 = arith.constant 0 : i32
        %656 = tpu.memref_slice %arg10[%c3_i32_555, %c0_i32_559, %c0_i32_560] : memref<4x8x256xf32, #tpu.memory_space<vmem>> -> memref<1x1x256xf32, #tpu.memory_space<vmem>>
        %657 = tpu.memref_squeeze %656 : memref<1x1x256xf32, #tpu.memory_space<vmem>> -> memref<1x256xf32, #tpu.memory_space<vmem>>
        %658 = tpu.memref_slice %arg11[%c3_i32_556, %c0_i32_557] : memref<4x8x!tpu.dma_semaphore, #tpu.memory_space<semaphore_mem>> -> memref<1x1x!tpu.dma_semaphore, #tpu.memory_space<semaphore_mem>>
        %659 = tpu.memref_squeeze %658 : memref<1x1x!tpu.dma_semaphore, #tpu.memory_space<semaphore_mem>> -> memref<!tpu.dma_semaphore, #tpu.memory_space<semaphore_mem>>
        tpu.enqueue_dma source(%655 : memref<1x256xf32, #tpu.memory_space<any>>) target(%657 : memref<1x256xf32, #tpu.memory_space<vmem>>) target_semaphore(%659 : memref<!tpu.dma_semaphore, #tpu.memory_space<semaphore_mem>>)
        %c3_i32_561 = arith.constant 3 : i32
        %c3_i32_562 = arith.constant 3 : i32
        %c1_i32_563 = arith.constant 1 : i32
        %c0_i32_564 = arith.constant 0 : i32
        %660 = tpu.memref_slice %arg2[%584, %c0_i32_564] : memref<30000x256xf32, #tpu.memory_space<any>> -> memref<1x256xf32, #tpu.memory_space<any>>
        %c1_i32_565 = arith.constant 1 : i32
        %c0_i32_566 = arith.constant 0 : i32
        %661 = tpu.memref_slice %arg10[%c3_i32_561, %c1_i32_565, %c0_i32_566] : memref<4x8x256xf32, #tpu.memory_space<vmem>> -> memref<1x1x256xf32, #tpu.memory_space<vmem>>
        %662 = tpu.memref_squeeze %661 : memref<1x1x256xf32, #tpu.memory_space<vmem>> -> memref<1x256xf32, #tpu.memory_space<vmem>>
        %663 = tpu.memref_slice %arg11[%c3_i32_562, %c1_i32_563] : memref<4x8x!tpu.dma_semaphore, #tpu.memory_space<semaphore_mem>> -> memref<1x1x!tpu.dma_semaphore, #tpu.memory_space<semaphore_mem>>
        %664 = tpu.memref_squeeze %663 : memref<1x1x!tpu.dma_semaphore, #tpu.memory_space<semaphore_mem>> -> memref<!tpu.dma_semaphore, #tpu.memory_space<semaphore_mem>>
        tpu.enqueue_dma source(%660 : memref<1x256xf32, #tpu.memory_space<any>>) target(%662 : memref<1x256xf32, #tpu.memory_space<vmem>>) target_semaphore(%664 : memref<!tpu.dma_semaphore, #tpu.memory_space<semaphore_mem>>)
        %c3_i32_567 = arith.constant 3 : i32
        %c3_i32_568 = arith.constant 3 : i32
        %c2_i32_569 = arith.constant 2 : i32
        %c0_i32_570 = arith.constant 0 : i32
        %665 = tpu.memref_slice %arg2[%588, %c0_i32_570] : memref<30000x256xf32, #tpu.memory_space<any>> -> memref<1x256xf32, #tpu.memory_space<any>>
        %c2_i32_571 = arith.constant 2 : i32
        %c0_i32_572 = arith.constant 0 : i32
        %666 = tpu.memref_slice %arg10[%c3_i32_567, %c2_i32_571, %c0_i32_572] : memref<4x8x256xf32, #tpu.memory_space<vmem>> -> memref<1x1x256xf32, #tpu.memory_space<vmem>>
        %667 = tpu.memref_squeeze %666 : memref<1x1x256xf32, #tpu.memory_space<vmem>> -> memref<1x256xf32, #tpu.memory_space<vmem>>
        %668 = tpu.memref_slice %arg11[%c3_i32_568, %c2_i32_569] : memref<4x8x!tpu.dma_semaphore, #tpu.memory_space<semaphore_mem>> -> memref<1x1x!tpu.dma_semaphore, #tpu.memory_space<semaphore_mem>>
        %669 = tpu.memref_squeeze %668 : memref<1x1x!tpu.dma_semaphore, #tpu.memory_space<semaphore_mem>> -> memref<!tpu.dma_semaphore, #tpu.memory_space<semaphore_mem>>
        tpu.enqueue_dma source(%665 : memref<1x256xf32, #tpu.memory_space<any>>) target(%667 : memref<1x256xf32, #tpu.memory_space<vmem>>) target_semaphore(%669 : memref<!tpu.dma_semaphore, #tpu.memory_space<semaphore_mem>>)
        %c3_i32_573 = arith.constant 3 : i32
        %c3_i32_574 = arith.constant 3 : i32
        %c3_i32_575 = arith.constant 3 : i32
        %c0_i32_576 = arith.constant 0 : i32
        %670 = tpu.memref_slice %arg2[%592, %c0_i32_576] : memref<30000x256xf32, #tpu.memory_space<any>> -> memref<1x256xf32, #tpu.memory_space<any>>
        %c3_i32_577 = arith.constant 3 : i32
        %c0_i32_578 = arith.constant 0 : i32
        %671 = tpu.memref_slice %arg10[%c3_i32_573, %c3_i32_577, %c0_i32_578] : memref<4x8x256xf32, #tpu.memory_space<vmem>> -> memref<1x1x256xf32, #tpu.memory_space<vmem>>
        %672 = tpu.memref_squeeze %671 : memref<1x1x256xf32, #tpu.memory_space<vmem>> -> memref<1x256xf32, #tpu.memory_space<vmem>>
        %673 = tpu.memref_slice %arg11[%c3_i32_574, %c3_i32_575] : memref<4x8x!tpu.dma_semaphore, #tpu.memory_space<semaphore_mem>> -> memref<1x1x!tpu.dma_semaphore, #tpu.memory_space<semaphore_mem>>
        %674 = tpu.memref_squeeze %673 : memref<1x1x!tpu.dma_semaphore, #tpu.memory_space<semaphore_mem>> -> memref<!tpu.dma_semaphore, #tpu.memory_space<semaphore_mem>>
        tpu.enqueue_dma source(%670 : memref<1x256xf32, #tpu.memory_space<any>>) target(%672 : memref<1x256xf32, #tpu.memory_space<vmem>>) target_semaphore(%674 : memref<!tpu.dma_semaphore, #tpu.memory_space<semaphore_mem>>)
        %c3_i32_579 = arith.constant 3 : i32
        %c3_i32_580 = arith.constant 3 : i32
        %c4_i32_581 = arith.constant 4 : i32
        %c0_i32_582 = arith.constant 0 : i32
        %675 = tpu.memref_slice %arg2[%596, %c0_i32_582] : memref<30000x256xf32, #tpu.memory_space<any>> -> memref<1x256xf32, #tpu.memory_space<any>>
        %c4_i32_583 = arith.constant 4 : i32
        %c0_i32_584 = arith.constant 0 : i32
        %676 = tpu.memref_slice %arg10[%c3_i32_579, %c4_i32_583, %c0_i32_584] : memref<4x8x256xf32, #tpu.memory_space<vmem>> -> memref<1x1x256xf32, #tpu.memory_space<vmem>>
        %677 = tpu.memref_squeeze %676 : memref<1x1x256xf32, #tpu.memory_space<vmem>> -> memref<1x256xf32, #tpu.memory_space<vmem>>
        %678 = tpu.memref_slice %arg11[%c3_i32_580, %c4_i32_581] : memref<4x8x!tpu.dma_semaphore, #tpu.memory_space<semaphore_mem>> -> memref<1x1x!tpu.dma_semaphore, #tpu.memory_space<semaphore_mem>>
        %679 = tpu.memref_squeeze %678 : memref<1x1x!tpu.dma_semaphore, #tpu.memory_space<semaphore_mem>> -> memref<!tpu.dma_semaphore, #tpu.memory_space<semaphore_mem>>
        tpu.enqueue_dma source(%675 : memref<1x256xf32, #tpu.memory_space<any>>) target(%677 : memref<1x256xf32, #tpu.memory_space<vmem>>) target_semaphore(%679 : memref<!tpu.dma_semaphore, #tpu.memory_space<semaphore_mem>>)
        %c3_i32_585 = arith.constant 3 : i32
        %c3_i32_586 = arith.constant 3 : i32
        %c5_i32_587 = arith.constant 5 : i32
        %c0_i32_588 = arith.constant 0 : i32
        %680 = tpu.memref_slice %arg2[%600, %c0_i32_588] : memref<30000x256xf32, #tpu.memory_space<any>> -> memref<1x256xf32, #tpu.memory_space<any>>
        %c5_i32_589 = arith.constant 5 : i32
        %c0_i32_590 = arith.constant 0 : i32
        %681 = tpu.memref_slice %arg10[%c3_i32_585, %c5_i32_589, %c0_i32_590] : memref<4x8x256xf32, #tpu.memory_space<vmem>> -> memref<1x1x256xf32, #tpu.memory_space<vmem>>
        %682 = tpu.memref_squeeze %681 : memref<1x1x256xf32, #tpu.memory_space<vmem>> -> memref<1x256xf32, #tpu.memory_space<vmem>>
        %683 = tpu.memref_slice %arg11[%c3_i32_586, %c5_i32_587] : memref<4x8x!tpu.dma_semaphore, #tpu.memory_space<semaphore_mem>> -> memref<1x1x!tpu.dma_semaphore, #tpu.memory_space<semaphore_mem>>
        %684 = tpu.memref_squeeze %683 : memref<1x1x!tpu.dma_semaphore, #tpu.memory_space<semaphore_mem>> -> memref<!tpu.dma_semaphore, #tpu.memory_space<semaphore_mem>>
        tpu.enqueue_dma source(%680 : memref<1x256xf32, #tpu.memory_space<any>>) target(%682 : memref<1x256xf32, #tpu.memory_space<vmem>>) target_semaphore(%684 : memref<!tpu.dma_semaphore, #tpu.memory_space<semaphore_mem>>)
        %c3_i32_591 = arith.constant 3 : i32
        %c3_i32_592 = arith.constant 3 : i32
        %c6_i32_593 = arith.constant 6 : i32
        %c0_i32_594 = arith.constant 0 : i32
        %685 = tpu.memref_slice %arg2[%604, %c0_i32_594] : memref<30000x256xf32, #tpu.memory_space<any>> -> memref<1x256xf32, #tpu.memory_space<any>>
        %c6_i32_595 = arith.constant 6 : i32
        %c0_i32_596 = arith.constant 0 : i32
        %686 = tpu.memref_slice %arg10[%c3_i32_591, %c6_i32_595, %c0_i32_596] : memref<4x8x256xf32, #tpu.memory_space<vmem>> -> memref<1x1x256xf32, #tpu.memory_space<vmem>>
        %687 = tpu.memref_squeeze %686 : memref<1x1x256xf32, #tpu.memory_space<vmem>> -> memref<1x256xf32, #tpu.memory_space<vmem>>
        %688 = tpu.memref_slice %arg11[%c3_i32_592, %c6_i32_593] : memref<4x8x!tpu.dma_semaphore, #tpu.memory_space<semaphore_mem>> -> memref<1x1x!tpu.dma_semaphore, #tpu.memory_space<semaphore_mem>>
        %689 = tpu.memref_squeeze %688 : memref<1x1x!tpu.dma_semaphore, #tpu.memory_space<semaphore_mem>> -> memref<!tpu.dma_semaphore, #tpu.memory_space<semaphore_mem>>
        tpu.enqueue_dma source(%685 : memref<1x256xf32, #tpu.memory_space<any>>) target(%687 : memref<1x256xf32, #tpu.memory_space<vmem>>) target_semaphore(%689 : memref<!tpu.dma_semaphore, #tpu.memory_space<semaphore_mem>>)
        %c3_i32_597 = arith.constant 3 : i32
        %c3_i32_598 = arith.constant 3 : i32
        %c7_i32_599 = arith.constant 7 : i32
        %c0_i32_600 = arith.constant 0 : i32
        %690 = tpu.memref_slice %arg2[%608, %c0_i32_600] : memref<30000x256xf32, #tpu.memory_space<any>> -> memref<1x256xf32, #tpu.memory_space<any>>
        %c7_i32_601 = arith.constant 7 : i32
        %c0_i32_602 = arith.constant 0 : i32
        %691 = tpu.memref_slice %arg10[%c3_i32_597, %c7_i32_601, %c0_i32_602] : memref<4x8x256xf32, #tpu.memory_space<vmem>> -> memref<1x1x256xf32, #tpu.memory_space<vmem>>
        %692 = tpu.memref_squeeze %691 : memref<1x1x256xf32, #tpu.memory_space<vmem>> -> memref<1x256xf32, #tpu.memory_space<vmem>>
        %693 = tpu.memref_slice %arg11[%c3_i32_598, %c7_i32_599] : memref<4x8x!tpu.dma_semaphore, #tpu.memory_space<semaphore_mem>> -> memref<1x1x!tpu.dma_semaphore, #tpu.memory_space<semaphore_mem>>
        %694 = tpu.memref_squeeze %693 : memref<1x1x!tpu.dma_semaphore, #tpu.memory_space<semaphore_mem>> -> memref<!tpu.dma_semaphore, #tpu.memory_space<semaphore_mem>>
        tpu.enqueue_dma source(%690 : memref<1x256xf32, #tpu.memory_space<any>>) target(%692 : memref<1x256xf32, #tpu.memory_space<vmem>>) target_semaphore(%694 : memref<!tpu.dma_semaphore, #tpu.memory_space<semaphore_mem>>)
      } else {
      }
      scf.yield %651 : vector<8x256xf32>
    }
    %c2_i32_244 = arith.constant 2 : i32
    %cst_245 = arith.constant 1.250000e-01 : f32
    %292 = vector.broadcast %cst_245 : f32 to vector<8x256xf32>
    %293 = arith.mulf %291, %292 : vector<8x256xf32>
    %c0 = arith.constant 0 : index
    %c0_246 = arith.constant 0 : index
    %294 = vector.load %arg3[%c0, %c0_246] : memref<256x256xf32, #tpu.memory_space<vmem>>, vector<256x256xf32>
    %cst_247 = arith.constant dense<0.000000e+00> : vector<8x256xf32>
    %295 = tpu.matmul %293, %294, %cst_247 {dimension_numbers = #tpu.dot_dimension_numbers<[1], [0], [0], [1], [0, 0, 1, 1], [], []>} : vector<8x256xf32>, vector<256x256xf32>, vector<8x256xf32> -> vector<8x256xf32>
    %c0_248 = arith.constant 0 : index
    %c0_249 = arith.constant 0 : index
    %296 = vector.load %arg4[%c0_248, %c0_249] : memref<1x256xf32, #tpu.memory_space<vmem>>, vector<1x256xf32>
    %297 = vector.broadcast %296 : vector<1x256xf32> to vector<8x256xf32>
    %298 = arith.addf %295, %297 : vector<8x256xf32>
    %cst_250 = arith.constant 0.000000e+00 : f32
    %299 = vector.broadcast %cst_250 : f32 to vector<8x256xf32>
    %300 = arith.maximumf %298, %299 : vector<8x256xf32>
    %c0_251 = arith.constant 0 : index
    %c0_252 = arith.constant 0 : index
    %301 = vector.load %arg5[%c0_251, %c0_252] : memref<256x256xf32, #tpu.memory_space<vmem>>, vector<256x256xf32>
    %cst_253 = arith.constant dense<0.000000e+00> : vector<8x256xf32>
    %302 = tpu.matmul %300, %301, %cst_253 {dimension_numbers = #tpu.dot_dimension_numbers<[1], [0], [0], [1], [0, 0, 1, 1], [], []>} : vector<8x256xf32>, vector<256x256xf32>, vector<8x256xf32> -> vector<8x256xf32>
    %c0_254 = arith.constant 0 : index
    %c0_255 = arith.constant 0 : index
    %303 = vector.load %arg6[%c0_254, %c0_255] : memref<1x256xf32, #tpu.memory_space<vmem>>, vector<1x256xf32>
    %304 = vector.broadcast %303 : vector<1x256xf32> to vector<8x256xf32>
    %305 = arith.addf %302, %304 : vector<8x256xf32>
    %cst_256 = arith.constant 0.000000e+00 : f32
    %306 = vector.broadcast %cst_256 : f32 to vector<8x256xf32>
    %307 = arith.maximumf %305, %306 : vector<8x256xf32>
    %c0_257 = arith.constant 0 : index
    %c0_258 = arith.constant 0 : index
    %308 = vector.load %arg7[%c0_257, %c0_258] : memref<256x128xf32, #tpu.memory_space<vmem>>, vector<256x128xf32>
    %cst_259 = arith.constant dense<0.000000e+00> : vector<8x128xf32>
    %309 = tpu.matmul %307, %308, %cst_259 {dimension_numbers = #tpu.dot_dimension_numbers<[1], [0], [0], [1], [0, 0, 1, 1], [], []>} : vector<8x256xf32>, vector<256x128xf32>, vector<8x128xf32> -> vector<8x128xf32>
    %c0_260 = arith.constant 0 : index
    %c0_261 = arith.constant 0 : index
    %310 = vector.load %arg8[%c0_260, %c0_261] : memref<1x128xf32, #tpu.memory_space<vmem>>, vector<1x128xf32>
    %311 = vector.broadcast %310 : vector<1x128xf32> to vector<8x128xf32>
    %312 = arith.addf %309, %311 : vector<8x128xf32>
    %cst_262 = arith.constant 0.000000e+00 : f32
    %313 = vector.broadcast %cst_262 : f32 to vector<8x128xf32>
    %314 = arith.maximumf %312, %313 : vector<8x128xf32>
    %315 = tpu.iota {dimensions = array<i32: 1>} : vector<8x128xi32>
    %c2_i32_263 = arith.constant 2 : i32
    %316 = vector.broadcast %c2_i32_263 : i32 to vector<8x128xi32>
    %317 = arith.cmpi slt, %315, %316 : vector<8x128xi32>
    %cst_264 = arith.constant -1.000000e+30 : f32
    %318 = vector.broadcast %cst_264 : f32 to vector<8x128xf32>
    %319 = arith.select %317, %314, %318 : vector<8x128xi1>, vector<8x128xf32>
    %cst_265 = arith.constant dense<0xFF800000> : vector<8xf32>
    %320 = vector.multi_reduction <maximumf>, %319, %cst_265 [1] : vector<8x128xf32> to vector<8xf32>
    %321 = vector.shape_cast %320 : vector<8xf32> to vector<8x1xf32>
    %322 = vector.broadcast %321 : vector<8x1xf32> to vector<8x128xf32>
    %323 = arith.subf %319, %322 : vector<8x128xf32>
    %324 = math.exp %323 : vector<8x128xf32>
    %cst_266 = arith.constant dense<0.000000e+00> : vector<8xf32>
    %325 = vector.multi_reduction <add>, %324, %cst_266 [1] : vector<8x128xf32> to vector<8xf32>
    %326 = vector.shape_cast %325 : vector<8xf32> to vector<8x1xf32>
    %327 = vector.broadcast %326 : vector<8x1xf32> to vector<8x128xf32>
    %328 = arith.divf %324, %327 : vector<8x128xf32>
    %c0_267 = arith.constant 0 : index
    %c0_268 = arith.constant 0 : index
    %329 = vector.load %arg9[%c0_267, %c0_268] : memref<8x128xf32, #tpu.memory_space<vmem>>, vector<8x128xf32>
    tpu.vector_store %arg9[%c0_267, %c0_268], %328 {strides = array<i32>} : memref<8x128xf32, #tpu.memory_space<vmem>>, vector<8x128xf32>,
    return
  }
  func.func @transform_1(%arg0: i32, %arg1: memref<128xi32, #tpu.memory_space<smem>>) -> (i32, i32) {
    %c0_i32 = arith.constant 0 : i32
    %c0_i32_0 = arith.constant 0 : i32
    %c0_i32_1 = arith.constant 0 : i32
    return %c0_i32, %c0_i32_0 : i32, i32
  }
  func.func @transform_2(%arg0: i32, %arg1: memref<128xi32, #tpu.memory_space<smem>>) -> (i32, i32) {
    %c0_i32 = arith.constant 0 : i32
    %c0_i32_0 = arith.constant 0 : i32
    %c0_i32_1 = arith.constant 0 : i32
    return %c0_i32, %c0_i32_0 : i32, i32
  }
  func.func @transform_3(%arg0: i32, %arg1: memref<128xi32, #tpu.memory_space<smem>>) -> (i32, i32) {
    %c0_i32 = arith.constant 0 : i32
    %c0_i32_0 = arith.constant 0 : i32
    %c0_i32_1 = arith.constant 0 : i32
    return %c0_i32, %c0_i32_0 : i32, i32
  }
  func.func @transform_4(%arg0: i32, %arg1: memref<128xi32, #tpu.memory_space<smem>>) -> (i32, i32) {
    %c0_i32 = arith.constant 0 : i32
    %c0_i32_0 = arith.constant 0 : i32
    %c0_i32_1 = arith.constant 0 : i32
    return %c0_i32, %c0_i32_0 : i32, i32
  }
  func.func @transform_5(%arg0: i32, %arg1: memref<128xi32, #tpu.memory_space<smem>>) -> (i32, i32) {
    %c0_i32 = arith.constant 0 : i32
    %c0_i32_0 = arith.constant 0 : i32
    %c0_i32_1 = arith.constant 0 : i32
    return %c0_i32, %c0_i32_0 : i32, i32
  }
  func.func @transform_6(%arg0: i32, %arg1: memref<128xi32, #tpu.memory_space<smem>>) -> (i32, i32) {
    %c0_i32 = arith.constant 0 : i32
    %c0_i32_0 = arith.constant 0 : i32
    %c0_i32_1 = arith.constant 0 : i32
    return %c0_i32, %c0_i32_0 : i32, i32
  }
  func.func @transform_7(%arg0: i32, %arg1: memref<128xi32, #tpu.memory_space<smem>>) -> (i32, i32) {
    %c0_i32 = arith.constant 0 : i32
    %c0_i32_0 = arith.constant 0 : i32
    return %arg0, %c0_i32 : i32, i32
  }
}

</mosaic_0001>

<llo_original>
// kernel: tpu_custom_call.1
$region0: #{tpu_custom_call.1}
  #allocation0 [shape = 'u32[]', space=smem, size = 0x4, offset = 0x4, fixed_abs, tag = 'smem constant byte address 0x4 - core index']
  #allocation1 [shape = 'u32[72,128]{1,0:T(1,128)}', space=vmem, size = 0x9000, scoped, tag = 'internal scratch']
  #allocation2 [shape = 'f32[4,8,256]{2,1,0:T(8,128)}', space=vmem, size = 0x8000, scoped, tag = 'scratch operand']
  #allocation3 [shape = 's32[32]{0}', space=sflag, size = 0x80, scoped, tag = 'scratch operand']
  #allocation4 [shape = 's32[1]{0}', space=sflag, size = 0x4, scoped, tag = 'scoped memory for tpu_custom_call.1']
  #allocation5 [shape = 'u8[512]{0}', space=smem, size = 0x200, scoped, tag = 'prefetched SMEM operand 0']
  #allocation18 [shape = 's32[]', space=sflag, size = 0x4, offset = 0, fixed_abs, tag = 'sflag constant byte address 0x0 - dummy sync flag']
  #allocation19 [shape = 's32[]', space=sflag, size = 0x4, offset = 0, fixed_abs, tag = 'sflag constant byte address 0x0 - dummy sync flag']
  #allocation20 [shape = 's32[]', space=sflag, size = 0x4, offset = 0, fixed_abs, tag = 'sflag constant byte address 0x0 - dummy sync flag']
  #allocation21 [shape = 's32[]', space=sflag, size = 0x4, offset = 0, fixed_abs, tag = 'sflag constant byte address 0x0 - dummy sync flag']
  #allocation22 [shape = 's32[]', space=sflag, size = 0x4, offset = 0, fixed_abs, tag = 'sflag constant byte address 0x0 - dummy sync flag']
  #allocation23 [shape = 's32[]', space=sflag, size = 0x4, offset = 0, fixed_abs, tag = 'sflag constant byte address 0x0 - dummy sync flag']
  #allocation24 [shape = 's32[]', space=sflag, size = 0x4, offset = 0, fixed_abs, tag = 'sflag constant byte address 0x0 - dummy sync flag']
  #allocation25 [shape = 's32[]', space=sflag, size = 0x4, offset = 0, fixed_abs, tag = 'sflag constant byte address 0x0 - dummy sync flag']
  #allocation26 [shape = 's32[]', space=sflag, size = 0x4, offset = 0, fixed_abs, tag = 'sflag constant byte address 0x0 - dummy sync flag']
  #allocation27 [shape = 's32[]', space=sflag, size = 0x4, offset = 0, fixed_abs, tag = 'sflag constant byte address 0x0 - dummy sync flag']
  #allocation28 [shape = 's32[]', space=sflag, size = 0x4, offset = 0, fixed_abs, tag = 'sflag constant byte address 0x0 - dummy sync flag']
  #allocation29 [shape = 's32[]', space=sflag, size = 0x4, offset = 0, fixed_abs, tag = 'sflag constant byte address 0x0 - dummy sync flag']
  #allocation30 [shape = 's32[]', space=sflag, size = 0x4, offset = 0, fixed_abs, tag = 'sflag constant byte address 0x0 - dummy sync flag']
  #allocation31 [shape = 's32[]', space=sflag, size = 0x4, offset = 0, fixed_abs, tag = 'sflag constant byte address 0x0 - dummy sync flag']
  #allocation32 [shape = 's32[]', space=sflag, size = 0x4, offset = 0, fixed_abs, tag = 'sflag constant byte address 0x0 - dummy sync flag']
  #allocation33 [shape = 's32[]', space=sflag, size = 0x4, offset = 0, fixed_abs, tag = 'sflag constant byte address 0x0 - dummy sync flag']
  #allocation34 [shape = 's32[]', space=sflag, size = 0x4, offset = 0, fixed_abs, tag = 'sflag constant byte address 0x0 - dummy sync flag']
  #allocation35 [shape = 's32[]', space=sflag, size = 0x4, offset = 0, fixed_abs, tag = 'sflag constant byte address 0x0 - dummy sync flag']
  #allocation36 [shape = 's32[]', space=sflag, size = 0x4, offset = 0, fixed_abs, tag = 'sflag constant byte address 0x0 - dummy sync flag']
  #allocation37 [shape = 's32[]', space=sflag, size = 0x4, offset = 0, fixed_abs, tag = 'sflag constant byte address 0x0 - dummy sync flag']
  #allocation38 [shape = 's32[]', space=sflag, size = 0x4, offset = 0, fixed_abs, tag = 'sflag constant byte address 0x0 - dummy sync flag']
  #allocation39 [shape = 's32[]', space=sflag, size = 0x4, offset = 0, fixed_abs, tag = 'sflag constant byte address 0x0 - dummy sync flag']
  #allocation40 [shape = 's32[]', space=sflag, size = 0x4, offset = 0, fixed_abs, tag = 'sflag constant byte address 0x0 - dummy sync flag']
  #allocation41 [shape = 's32[]', space=sflag, size = 0x4, offset = 0, fixed_abs, tag = 'sflag constant byte address 0x0 - dummy sync flag']
  #allocation42 [shape = 's32[]', space=sflag, size = 0x4, offset = 0, fixed_abs, tag = 'sflag constant byte address 0x0 - dummy sync flag']
  #allocation43 [shape = 's32[]', space=sflag, size = 0x4, offset = 0, fixed_abs, tag = 'sflag constant byte address 0x0 - dummy sync flag']
  #allocation44 [shape = 's32[]', space=sflag, size = 0x4, offset = 0, fixed_abs, tag = 'sflag constant byte address 0x0 - dummy sync flag']
  #allocation45 [shape = 's32[]', space=sflag, size = 0x4, offset = 0, fixed_abs, tag = 'sflag constant byte address 0x0 - dummy sync flag']
  #allocation46 [shape = 's32[]', space=sflag, size = 0x4, offset = 0, fixed_abs, tag = 'sflag constant byte address 0x0 - dummy sync flag']
  #allocation47 [shape = 's32[]', space=sflag, size = 0x4, offset = 0, fixed_abs, tag = 'sflag constant byte address 0x0 - dummy sync flag']
  #allocation48 [shape = 's32[]', space=sflag, size = 0x4, offset = 0, fixed_abs, tag = 'sflag constant byte address 0x0 - dummy sync flag']
  #allocation49 [shape = 's32[]', space=sflag, size = 0x4, offset = 0, fixed_abs, tag = 'sflag constant byte address 0x0 - dummy sync flag']
  #allocation50 [shape = 's32[]', space=sflag, size = 0x4, offset = 0, fixed_abs, tag = 'sflag constant byte address 0x0 - dummy sync flag']
  #allocation51 [shape = 's32[]', space=sflag, size = 0x4, offset = 0, fixed_abs, tag = 'sflag constant byte address 0x0 - dummy sync flag']
  #allocation52 [shape = 's32[]', space=sflag, size = 0x4, offset = 0, fixed_abs, tag = 'sflag constant byte address 0x0 - dummy sync flag']
  #allocation53 [shape = 's32[]', space=sflag, size = 0x4, offset = 0, fixed_abs, tag = 'sflag constant byte address 0x0 - dummy sync flag']
  #allocation54 [shape = 's32[]', space=sflag, size = 0x4, offset = 0, fixed_abs, tag = 'sflag constant byte address 0x0 - dummy sync flag']
  #allocation55 [shape = 's32[]', space=sflag, size = 0x4, offset = 0, fixed_abs, tag = 'sflag constant byte address 0x0 - dummy sync flag']
  #allocation56 [shape = 's32[]', space=sflag, size = 0x4, offset = 0, fixed_abs, tag = 'sflag constant byte address 0x0 - dummy sync flag']
  #allocation57 [shape = 's32[]', space=sflag, size = 0x4, offset = 0, fixed_abs, tag = 'sflag constant byte address 0x0 - dummy sync flag']
  #allocation58 [shape = 's32[]', space=sflag, size = 0x4, offset = 0, fixed_abs, tag = 'sflag constant byte address 0x0 - dummy sync flag']
  #allocation59 [shape = 's32[]', space=sflag, size = 0x4, offset = 0, fixed_abs, tag = 'sflag constant byte address 0x0 - dummy sync flag']
  #allocation60 [shape = 's32[]', space=sflag, size = 0x4, offset = 0, fixed_abs, tag = 'sflag constant byte address 0x0 - dummy sync flag']
  #allocation61 [shape = 's32[]', space=sflag, size = 0x4, offset = 0, fixed_abs, tag = 'sflag constant byte address 0x0 - dummy sync flag']
  #allocation62 [shape = 's32[]', space=sflag, size = 0x4, offset = 0, fixed_abs, tag = 'sflag constant byte address 0x0 - dummy sync flag']
  #allocation63 [shape = 's32[]', space=sflag, size = 0x4, offset = 0, fixed_abs, tag = 'sflag constant byte address 0x0 - dummy sync flag']
  #allocation64 [shape = 's32[]', space=sflag, size = 0x4, offset = 0, fixed_abs, tag = 'sflag constant byte address 0x0 - dummy sync flag']
  #allocation65 [shape = 's32[]', space=sflag, size = 0x4, offset = 0, fixed_abs, tag = 'sflag constant byte address 0x0 - dummy sync flag']
  #allocation66 [shape = 's32[]', space=sflag, size = 0x4, offset = 0, fixed_abs, tag = 'sflag constant byte address 0x0 - dummy sync flag']
  #allocation67 [shape = 's32[]', space=sflag, size = 0x4, offset = 0, fixed_abs, tag = 'sflag constant byte address 0x0 - dummy sync flag']
  #allocation68 [shape = 's32[]', space=sflag, size = 0x4, offset = 0, fixed_abs, tag = 'sflag constant byte address 0x0 - dummy sync flag']
  #allocation69 [shape = 's32[]', space=sflag, size = 0x4, offset = 0, fixed_abs, tag = 'sflag constant byte address 0x0 - dummy sync flag']
  #allocation70 [shape = 's32[]', space=sflag, size = 0x4, offset = 0, fixed_abs, tag = 'sflag constant byte address 0x0 - dummy sync flag']
  #allocation71 [shape = 's32[]', space=sflag, size = 0x4, offset = 0, fixed_abs, tag = 'sflag constant byte address 0x0 - dummy sync flag']
  #allocation72 [shape = 's32[]', space=sflag, size = 0x4, offset = 0, fixed_abs, tag = 'sflag constant byte address 0x0 - dummy sync flag']
  #allocation73 [shape = 's32[]', space=sflag, size = 0x4, offset = 0, fixed_abs, tag = 'sflag constant byte address 0x0 - dummy sync flag']
  #allocation74 [shape = 's32[]', space=sflag, size = 0x4, offset = 0, fixed_abs, tag = 'sflag constant byte address 0x0 - dummy sync flag']
  #allocation75 [shape = 's32[]', space=sflag, size = 0x4, offset = 0, fixed_abs, tag = 'sflag constant byte address 0x0 - dummy sync flag']
  #allocation76 [shape = 's32[]', space=sflag, size = 0x4, offset = 0, fixed_abs, tag = 'sflag constant byte address 0x0 - dummy sync flag']
  #allocation77 [shape = 's32[]', space=sflag, size = 0x4, offset = 0, fixed_abs, tag = 'sflag constant byte address 0x0 - dummy sync flag']
  #allocation78 [shape = 's32[]', space=sflag, size = 0x4, offset = 0, fixed_abs, tag = 'sflag constant byte address 0x0 - dummy sync flag']
  #allocation79 [shape = 's32[]', space=sflag, size = 0x4, offset = 0, fixed_abs, tag = 'sflag constant byte address 0x0 - dummy sync flag']
  #allocation80 [shape = 's32[]', space=sflag, size = 0x4, offset = 0, fixed_abs, tag = 'sflag constant byte address 0x0 - dummy sync flag']
  #allocation81 [shape = 's32[]', space=sflag, size = 0x4, offset = 0, fixed_abs, tag = 'sflag constant byte address 0x0 - dummy sync flag']
  %s0 = inlined_call_operand.hbm [shape: s32[128], index: 0, kind: input, shape index: {}]
  %s1 = inlined_call_operand.hbm [shape: f32[30000,256], index: 1, kind: input, shape index: {}]
  %s2 = inlined_call_operand.hbm [shape: f32[256,256], index: 2, kind: input, shape index: {}]
  %s3 = inlined_call_operand.hbm [shape: f32[1,256], index: 3, kind: input, shape index: {}]
  %s4 = inlined_call_operand.hbm [shape: f32[256,256], index: 4, kind: input, shape index: {}]
  %s5 = inlined_call_operand.hbm [shape: f32[1,256], index: 5, kind: input, shape index: {}]
  %s6 = inlined_call_operand.hbm [shape: f32[256,128], index: 6, kind: input, shape index: {}]
  %s7 = inlined_call_operand.hbm [shape: f32[1,128], index: 7, kind: input, shape index: {}]
  %s8 = inlined_call_operand.hbm [shape: f32[16,128], index: 8, kind: output, shape index: {}]
  %s9 = sld [smem:[#allocation0]]
  $region104: #{tpu_custom_call.1} parent=0
    _
  %s11 = ssub.s32 1, %s9
  %s12 = scalar_select 0, %s11, %s9
  %s14 = sshll.u32 %s0, 4
  %s15 = int_to_ptr.hbm [resolvable:$true] %s14
  %17 = dma.hbm_to_smem %s15, 16, [#allocation5], [#allocation4]
  %19 = dma.done [#allocation4], 16
  %20 = sfence
  $region1: #{tpu_custom_call.1} parent=0
    #allocation6 [shape = 'u8[262144]{0}', space=vmem, size = 0x40000, scoped, tag = 'input window, operand 2, single buffered']
    #allocation7 [shape = 's32[2]{0}', space=sflag, size = 0x8, scoped, tag = 'scoped memory for tpu_custom_call.1']
    #allocation8 [shape = 's32[2]{0}', space=sflag, size = 0x8, scoped, tag = 'scoped memory for tpu_custom_call.1']
    #allocation9 [shape = 'u8[1024]{0}', space=vmem, size = 0x400, scoped, tag = 'input window, operand 3, single buffered']
    #allocation10 [shape = 's32[1]{0}', space=sflag, size = 0x4, scoped, tag = 'scoped memory for tpu_custom_call.1']
    #allocation11 [shape = 'u8[262144]{0}', space=vmem, size = 0x40000, scoped, tag = 'input window, operand 4, single buffered']
    #allocation12 [shape = 'u8[1024]{0}', space=vmem, size = 0x400, scoped, tag = 'input window, operand 5, single buffered']
    #allocation13 [shape = 's32[1]{0}', space=sflag, size = 0x4, scoped, tag = 'scoped memory for tpu_custom_call.1']
    #allocation14 [shape = 'u8[131072]{0}', space=vmem, size = 0x20000, scoped, tag = 'input window, operand 6, single buffered']
    #allocation15 [shape = 'u8[512]{0}', space=vmem, size = 0x400, scoped, tag = 'input window, operand 7, single buffered']
    #allocation16 [shape = 's32[1]{0}', space=sflag, size = 0x4, scoped, tag = 'scoped memory for tpu_custom_call.1']
    #allocation17 [shape = 'u8[8192]{0}', space=vmem, size = 0x2000, scoped, tag = 'output window, operand 0']
    %21 = vsyncpa [#allocation7], 0
    %22 = vsyncpa [#allocation10], 0
    %23 = vsyncpa [#allocation13], 0
    %24 = vsyncpa [#allocation16], 0
    %25 = vsyncpa [#allocation8], 0
    %s26 = scalar_lea.sflag [#allocation8], 1
    %27 = vsyncpa %s26, 0
    loop: start=0, step=1, limit=4
    $region2: #{tpu_custom_call.1} parent=1 // loop_pre_header
      _
    $region3: #{tpu_custom_call.1} parent=1 // loop_header
      %s29 = sphi 0, %s33
      %p30 = scmp.ge.s32.totalorder %s29, 4
      %s37 = sphi 0, %s37
      %s39 = sphi 0, %s37
      %s40 = sphi 0, %s39
      %s54 = sphi 0, %s40
      %s58 = sphi 0, %s58
      %s60 = sphi 0, %s58
      %s61 = sphi 0, %s60
      %s75 = sphi 0, %s61
      %s79 = sphi 0, %s79
      %s81 = sphi 0, %s79
      %s82 = sphi 0, %s81
      %s96 = sphi 0, %s82
      %s100 = sphi 0, %s100
      %s102 = sphi 0, %s100
      %s103 = sphi 0, %s102
      %s117 = sphi 0, %s103
      %s121 = sphi 0, %s121
      %s123 = sphi 0, %s121
      %s124 = sphi 0, %s123
      %s138 = sphi 0, %s124
      %s142 = sphi 0, %s142
      %s144 = sphi 0, %s142
      %s145 = sphi 0, %s144
      %s159 = sphi 0, %s145
      %s165 = sphi 0, %s167
      %s168 = sphi 0, %s165
      %s169 = sphi 0, %s168
      %s185 = sphi 0, %s169
    $region4: #{tpu_custom_call.1} parent=1 // loop_header_branch
      %32 = sbr.rel (%p30) target = $region8
    $region5: #{tpu_custom_call.1} parent=1 // loop_body
      %s34 = ssub.s32 %s29, 1
      %s35 = ssub.s32 %s29, 2
      %s36 = sadd.s32 %s29, 1
      %s38 = sadd.s32 %s37, 1
      %p41 = scmp.eq.s32.totalorder %s29, 1
      %p42 = scmp.ne.s32.totalorder %s37, %s39
      %p43 = scmp.eq.s32.totalorder %s29, 0
      %p44 = por %p42, %p43
      %p45 = scmp.ne.s32.totalorder %s37, %s39
      %p46 = scmp.eq.s32.totalorder %s34, 1
      %p47 = por %p45, %p46
      %p48 = scmp.ne.s32.totalorder %s39, %s40
      %p49 = scmp.eq.s32.totalorder %s34, 0
      %p50 = por %p48, %p49
      %p51 = scmp.ne.s32.totalorder %s39, %s40
      %p52 = scmp.eq.s32.totalorder %s35, 1
      %p53 = por %p51, %p52
      %p55 = scmp.ne.s32.totalorder %s40, %s54
      %p56 = scmp.eq.s32.totalorder %s35, 0
      %p57 = por %p55, %p56
      %s59 = sadd.s32 %s58, 1
      %p62 = scmp.eq.s32.totalorder %s29, 1
      %p63 = scmp.ne.s32.totalorder %s58, %s60
      %p64 = scmp.eq.s32.totalorder %s29, 0
      %p65 = por %p63, %p64
      %p66 = scmp.ne.s32.totalorder %s58, %s60
      %p67 = scmp.eq.s32.totalorder %s34, 1
      %p68 = por %p66, %p67
      %p69 = scmp.ne.s32.totalorder %s60, %s61
      %p70 = scmp.eq.s32.totalorder %s34, 0
      %p71 = por %p69, %p70
      %p72 = scmp.ne.s32.totalorder %s60, %s61
      %p73 = scmp.eq.s32.totalorder %s35, 1
      %p74 = por %p72, %p73
      %p76 = scmp.ne.s32.totalorder %s61, %s75
      %p77 = scmp.eq.s32.totalorder %s35, 0
      %p78 = por %p76, %p77
      %s80 = sadd.s32 %s79, 1
      %p83 = scmp.eq.s32.totalorder %s29, 1
      %p84 = scmp.ne.s32.totalorder %s79, %s81
      %p85 = scmp.eq.s32.totalorder %s29, 0
      %p86 = por %p84, %p85
      %p87 = scmp.ne.s32.totalorder %s79, %s81
      %p88 = scmp.eq.s32.totalorder %s34, 1
      %p89 = por %p87, %p88
      %p90 = scmp.ne.s32.totalorder %s81, %s82
      %p91 = scmp.eq.s32.totalorder %s34, 0
      %p92 = por %p90, %p91
      %p93 = scmp.ne.s32.totalorder %s81, %s82
      %p94 = scmp.eq.s32.totalorder %s35, 1
      %p95 = por %p93, %p94
      %p97 = scmp.ne.s32.totalorder %s82, %s96
      %p98 = scmp.eq.s32.totalorder %s35, 0
      %p99 = por %p97, %p98
      %s101 = sadd.s32 %s100, 1
      %p104 = scmp.eq.s32.totalorder %s29, 1
      %p105 = scmp.ne.s32.totalorder %s100, %s102
      %p106 = scmp.eq.s32.totalorder %s29, 0
      %p107 = por %p105, %p106
      %p108 = scmp.ne.s32.totalorder %s100, %s102
      %p109 = scmp.eq.s32.totalorder %s34, 1
      %p110 = por %p108, %p109
      %p111 = scmp.ne.s32.totalorder %s102, %s103
      %p112 = scmp.eq.s32.totalorder %s34, 0
      %p113 = por %p111, %p112
      %p114 = scmp.ne.s32.totalorder %s102, %s103
      %p115 = scmp.eq.s32.totalorder %s35, 1
      %p116 = por %p114, %p115
      %p118 = scmp.ne.s32.totalorder %s103, %s117
      %p119 = scmp.eq.s32.totalorder %s35, 0
      %p120 = por %p118, %p119
      %s122 = sadd.s32 %s121, 1
      %p125 = scmp.eq.s32.totalorder %s29, 1
      %p126 = scmp.ne.s32.totalorder %s121, %s123
      %p127 = scmp.eq.s32.totalorder %s29, 0
      %p128 = por %p126, %p127
      %p129 = scmp.ne.s32.totalorder %s121, %s123
      %p130 = scmp.eq.s32.totalorder %s34, 1
      %p131 = por %p129, %p130
      %p132 = scmp.ne.s32.totalorder %s123, %s124
      %p133 = scmp.eq.s32.totalorder %s34, 0
      %p134 = por %p132, %p133
      %p135 = scmp.ne.s32.totalorder %s123, %s124
      %p136 = scmp.eq.s32.totalorder %s35, 1
      %p137 = por %p135, %p136
      %p139 = scmp.ne.s32.totalorder %s124, %s138
      %p140 = scmp.eq.s32.totalorder %s35, 0
      %p141 = por %p139, %p140
      %s143 = sadd.s32 %s142, 1
      %p146 = scmp.eq.s32.totalorder %s29, 1
      %p147 = scmp.ne.s32.totalorder %s142, %s144
      %p148 = scmp.eq.s32.totalorder %s29, 0
      %p149 = por %p147, %p148
      %p150 = scmp.ne.s32.totalorder %s142, %s144
      %p151 = scmp.eq.s32.totalorder %s34, 1
      %p152 = por %p150, %p151
      %p153 = scmp.ne.s32.totalorder %s144, %s145
      %p154 = scmp.eq.s32.totalorder %s34, 0
      %p155 = por %p153, %p154
      %p156 = scmp.ne.s32.totalorder %s144, %s145
      %p157 = scmp.eq.s32.totalorder %s35, 1
      %p158 = por %p156, %p157
      %p160 = scmp.ne.s32.totalorder %s145, %s159
      %p161 = scmp.eq.s32.totalorder %s35, 0
      %p162 = por %p160, %p161
      %s163 = ssub.s32 %s29, %s36
      %p164 = scmp.eq.s32.totalorder %s163, 0
      %s166 = sadd.s32 %s165, 1
      %s167 = scalar_select %p164, %s165, %s166
      %p170 = pneg %p164
      %p171 = scmp.eq.s32.totalorder %s29, 1
      %p172 = por %p170, %p171
      %p173 = scmp.ne.s32.totalorder %s165, %s168
      %p174 = scmp.eq.s32.totalorder %s29, 0
      %p175 = por %p173, %p174
      %p176 = scmp.ne.s32.totalorder %s165, %s168
      %p177 = scmp.eq.s32.totalorder %s34, 1
      %p178 = por %p176, %p177
      %p179 = scmp.ne.s32.totalorder %s168, %s169
      %p180 = scmp.eq.s32.totalorder %s34, 0
      %p181 = por %p179, %p180
      %p182 = scmp.ne.s32.totalorder %s168, %s169
      %p183 = scmp.eq.s32.totalorder %s35, 1
      %p184 = por %p182, %p183
      %p186 = scmp.ne.s32.totalorder %s169, %s185
      %p187 = scmp.eq.s32.totalorder %s35, 0
      %p188 = por %p186, %p187
      %p189 = scmp.le.s32.totalorder 1, %s29
      %p190 = scmp.lt.s32.totalorder %s29, 3
      %p191 = pnand %p189, %p190
      %p192 = pneg %p191
      // Predicated region
      $region9: #{tpu_custom_call.1} parent=5 // pred_check
        _
      $region10: #{tpu_custom_call.1} parent=5 // pred_check_branch
        %194 = sbr.rel (%p191) target = $region12
      $region11: #{tpu_custom_call.1} parent=5 // pred_region
        %s195 = ssub.s32 %s29, 1
        // Predicated region
        $region13: #{tpu_custom_call.1} parent=11 // pred_check
          %p196 = pneg %p50
        $region14: #{tpu_custom_call.1} parent=11 // pred_check_branch
          %198 = sbr.rel (%p196) target = $region16
        $region15: #{tpu_custom_call.1} parent=11 // pred_region
          %200 = vsyncadd [#allocation7], 0
          %s201 = sshll.u32 %s2, 4
          %s202 = int_to_ptr.hbm [resolvable:$true] %s201
          %s203 = sshll.u32 [#allocation6], 4
          %s204 = int_to_ptr.vmem [resolvable:$true] %s203
          %209 = dma.hbm_to_vmem [thread:$0]  %s202, 8192, %s204, [#allocation7], 256, 256, 16
        $region16: #{tpu_custom_call.1} parent=11 // pred_fallthru
          _
        // Predicated region
        $region17: #{tpu_custom_call.1} parent=11 // pred_check
          %p210 = pneg %p71
        $region18: #{tpu_custom_call.1} parent=11 // pred_check_branch
          %212 = sbr.rel (%p210) target = $region20
        $region19: #{tpu_custom_call.1} parent=11 // pred_region
          %214 = vsyncadd [#allocation10], 0
          %s216 = sshll.u32 %s3, 4
          %s217 = int_to_ptr.hbm [resolvable:$true] %s216
          %s218 = sshll.u32 [#allocation9], 4
          %s219 = int_to_ptr.vmem [resolvable:$true] %s218
          %221 = dma.hbm_to_vmem [thread:$0]  %s217, 32, %s219, [#allocation10]
        $region20: #{tpu_custom_call.1} parent=11 // pred_fallthru
          _
        // Predicated region
        $region21: #{tpu_custom_call.1} parent=11 // pred_check
          %p222 = pneg %p92
        $region22: #{tpu_custom_call.1} parent=11 // pred_check_branch
          %224 = sbr.rel (%p222) target = $region24
        $region23: #{tpu_custom_call.1} parent=11 // pred_region
          %226 = vsyncadd [#allocation10], 0
          %s227 = sshll.u32 %s4, 4
          %s228 = int_to_ptr.hbm [resolvable:$true] %s227
          %s229 = sshll.u32 [#allocation11], 4
          %s230 = int_to_ptr.vmem [resolvable:$true] %s229
          %235 = dma.hbm_to_vmem [thread:$0]  %s228, 8192, %s230, [#allocation10], 256, 256, 16
        $region24: #{tpu_custom_call.1} parent=11 // pred_fallthru
          _
        // Predicated region
        $region25: #{tpu_custom_call.1} parent=11 // pred_check
          %p236 = pneg %p113
        $region26: #{tpu_custom_call.1} parent=11 // pred_check_branch
          %238 = sbr.rel (%p236) target = $region28
        $region27: #{tpu_custom_call.1} parent=11 // pred_region
          %240 = vsyncadd [#allocation13], 0
          %s242 = sshll.u32 %s5, 4
          %s243 = int_to_ptr.hbm [resolvable:$true] %s242
          %s244 = sshll.u32 [#allocation12], 4
          %s245 = int_to_ptr.vmem [resolvable:$true] %s244
          %247 = dma.hbm_to_vmem [thread:$0]  %s243, 32, %s245, [#allocation13]
        $region28: #{tpu_custom_call.1} parent=11 // pred_fallthru
          _
        // Predicated region
        $region29: #{tpu_custom_call.1} parent=11 // pred_check
          %p248 = pneg %p134
        $region30: #{tpu_custom_call.1} parent=11 // pred_check_branch
          %250 = sbr.rel (%p248) target = $region32
        $region31: #{tpu_custom_call.1} parent=11 // pred_region
          %252 = vsyncadd [#allocation13], 0
          %s253 = sshll.u32 %s6, 4
          %s254 = int_to_ptr.hbm [resolvable:$true] %s253
          %s255 = sshll.u32 [#allocation14], 4
          %s256 = int_to_ptr.vmem [resolvable:$true] %s255
          %261 = dma.hbm_to_vmem [thread:$0]  %s254, 4096, %s256, [#allocation13], 128, 128, 8
        $region32: #{tpu_custom_call.1} parent=11 // pred_fallthru
          _
        // Predicated region
        $region33: #{tpu_custom_call.1} parent=11 // pred_check
          %p262 = pneg %p155
        $region34: #{tpu_custom_call.1} parent=11 // pred_check_branch
          %264 = sbr.rel (%p262) target = $region36
        $region35: #{tpu_custom_call.1} parent=11 // pred_region
          %266 = vsyncadd [#allocation16], 0
          %s268 = sshll.u32 %s7, 4
          %s269 = int_to_ptr.hbm [resolvable:$true] %s268
          %s270 = sshll.u32 [#allocation15], 4
          %s271 = int_to_ptr.vmem [resolvable:$true] %s270
          %273 = dma.hbm_to_vmem [thread:$0]  %s269, 16, %s271, [#allocation16]
        $region36: #{tpu_custom_call.1} parent=11 // pred_fallthru
          _
      $region12: #{tpu_custom_call.1} parent=5 // pred_fallthru
        _
      %p274 = scmp.lt.s32.totalorder %s29, 2
      // Predicated region
      $region37: #{tpu_custom_call.1} parent=5 // pred_check
        %p275 = pneg %p274
      $region38: #{tpu_custom_call.1} parent=5 // pred_check_branch
        %277 = sbr.rel (%p275) target = $region40
      $region39: #{tpu_custom_call.1} parent=5 // pred_region
        _
      $region40: #{tpu_custom_call.1} parent=5 // pred_fallthru
        _
      %p278 = scmp.le.s32.totalorder 1, %s29
      %p279 = scmp.lt.s32.totalorder %s29, 3
      %p280 = pnand %p278, %p279
      %p281 = pneg %p280
      // Predicated region
      $region41: #{tpu_custom_call.1} parent=5 // pred_check
        _
      $region42: #{tpu_custom_call.1} parent=5 // pred_check_branch
        %283 = sbr.rel (%p280) target = $region44
      $region43: #{tpu_custom_call.1} parent=5 // pred_region
        %s284 = ssub.s32 %s29, 1
        // Predicated region
        $region45: #{tpu_custom_call.1} parent=43 // pred_check
          %p285 = pneg %p50
        $region46: #{tpu_custom_call.1} parent=43 // pred_check_branch
          %287 = sbr.rel (%p285) target = $region48
        $region47: #{tpu_custom_call.1} parent=43 // pred_region
          %289 = dma.done [#allocation7], 8192
        $region48: #{tpu_custom_call.1} parent=43 // pred_fallthru
          _
        // Predicated region
        $region49: #{tpu_custom_call.1} parent=43 // pred_check
          %p290 = pneg %p71
        $region50: #{tpu_custom_call.1} parent=43 // pred_check_branch
          %292 = sbr.rel (%p290) target = $region52
        $region51: #{tpu_custom_call.1} parent=43 // pred_region
          %294 = dma.done [#allocation10], 32
        $region52: #{tpu_custom_call.1} parent=43 // pred_fallthru
          _
        // Predicated region
        $region53: #{tpu_custom_call.1} parent=43 // pred_check
          %p295 = pneg %p92
        $region54: #{tpu_custom_call.1} parent=43 // pred_check_branch
          %297 = sbr.rel (%p295) target = $region56
        $region55: #{tpu_custom_call.1} parent=43 // pred_region
          %299 = dma.done [#allocation10], 8192
        $region56: #{tpu_custom_call.1} parent=43 // pred_fallthru
          _
        // Predicated region
        $region57: #{tpu_custom_call.1} parent=43 // pred_check
          %p300 = pneg %p113
        $region58: #{tpu_custom_call.1} parent=43 // pred_check_branch
          %302 = sbr.rel (%p300) target = $region60
        $region59: #{tpu_custom_call.1} parent=43 // pred_region
          %304 = dma.done [#allocation13], 32
        $region60: #{tpu_custom_call.1} parent=43 // pred_fallthru
          _
        // Predicated region
        $region61: #{tpu_custom_call.1} parent=43 // pred_check
          %p305 = pneg %p134
        $region62: #{tpu_custom_call.1} parent=43 // pred_check_branch
          %307 = sbr.rel (%p305) target = $region64
        $region63: #{tpu_custom_call.1} parent=43 // pred_region
          %309 = dma.done [#allocation13], 4096
        $region64: #{tpu_custom_call.1} parent=43 // pred_fallthru
          _
        // Predicated region
        $region65: #{tpu_custom_call.1} parent=43 // pred_check
          %p310 = pneg %p155
        $region66: #{tpu_custom_call.1} parent=43 // pred_check_branch
          %312 = sbr.rel (%p310) target = $region68
        $region67: #{tpu_custom_call.1} parent=43 // pred_region
          %314 = dma.done [#allocation16], 16
        $region68: #{tpu_custom_call.1} parent=43 // pred_fallthru
          _
        %p315 = pneg %p50
        %p316 = pneg %p47
        %p317 = pneg %p71
        %p318 = pneg %p68
        %p319 = pneg %p92
        %p320 = pneg %p89
        %p321 = pneg %p113
        %p322 = pneg %p110
        %p323 = pneg %p134
        %p324 = pneg %p131
        %p325 = pneg %p155
        %p326 = pneg %p152
        %p327 = pneg %p181
        %p328 = pneg %p178
        %s329 = sand.u32 %s168, 1
        %s330 = scalar_lea.sflag [#allocation8], %s329
        %s331 = sand.u32 %s168, 1
        %s332 = smul.addr %s331, 8
        %s333 = scalar_lea.vmem [#allocation17], %s332
        %s334 = smul.u32 %s34, 64
        %s335 = sld [smem:[#allocation5 + %s334]]
        %s336 = sshrl.u32 %s335, 3
        %s337 = sand.u32 %s335, 7
        %s338 = smul.u32 %s336, 16
        %s339 = sadd.s32 %s337, %s338
        %s340 = scalar_lea.hbm %s1, %s339
        %s341 = sshll.u32 %s340, 4
        %s342 = int_to_ptr.hbm [resolvable:$true] %s341
        %s343 = sshll.u32 [#allocation2], 4
        %s344 = int_to_ptr.vmem [resolvable:$true] %s343
        %348 = dma.hbm_to_vmem [thread:$0]  %s342, 32, %s344, [#allocation3], 128, 128, 1
        %s349 = sadd.s32 %s334, 8
        %s350 = sld [smem:[#allocation5 + %s349]]
        %s351 = sshrl.u32 %s350, 3
        %s352 = sand.u32 %s350, 7
        %s353 = smul.u32 %s351, 16
        %s354 = sadd.s32 %s352, %s353
        %s355 = scalar_lea.hbm %s1, %s354
        %s356 = scalar_lea.vmem [#allocation2], 1
        %s357 = scalar_lea.sflag [#allocation3], 1
        %s358 = sshll.u32 %s355, 4
        %s359 = int_to_ptr.hbm [resolvable:$true] %s358
        %s360 = sshll.u32 %s356, 4
        %s361 = int_to_ptr.vmem [resolvable:$true] %s360
        %365 = dma.hbm_to_vmem [thread:$0]  %s359, 32, %s361, %s357, 128, 128, 1
        %s366 = sadd.s32 %s334, 16
        %s367 = sld [smem:[#allocation5 + %s366]]
        %s368 = sshrl.u32 %s367, 3
        %s369 = sand.u32 %s367, 7
        %s370 = smul.u32 %s368, 16
        %s371 = sadd.s32 %s369, %s370
        %s372 = scalar_lea.hbm %s1, %s371
        %s373 = scalar_lea.vmem [#allocation2], 2
        %s374 = scalar_lea.sflag [#allocation3], 2
        %s375 = sshll.u32 %s372, 4
        %s376 = int_to_ptr.hbm [resolvable:$true] %s375
        %s377 = sshll.u32 %s373, 4
        %s378 = int_to_ptr.vmem [resolvable:$true] %s377
        %382 = dma.hbm_to_vmem [thread:$0]  %s376, 32, %s378, %s374, 128, 128, 1
        %s383 = sadd.s32 %s334, 24
        %s384 = sld [smem:[#allocation5 + %s383]]
        %s385 = sshrl.u32 %s384, 3
        %s386 = sand.u32 %s384, 7
        %s387 = smul.u32 %s385, 16
        %s388 = sadd.s32 %s386, %s387
        %s389 = scalar_lea.hbm %s1, %s388
        %s390 = scalar_lea.vmem [#allocation2], 3
        %s391 = scalar_lea.sflag [#allocation3], 3
        %s392 = sshll.u32 %s389, 4
        %s393 = int_to_ptr.hbm [resolvable:$true] %s392
        %s394 = sshll.u32 %s390, 4
        %s395 = int_to_ptr.vmem [resolvable:$true] %s394
        %399 = dma.hbm_to_vmem [thread:$0]  %s393, 32, %s395, %s391, 128, 128, 1
        %s400 = sadd.s32 %s334, 32
        %s401 = sld [smem:[#allocation5 + %s400]]
        %s402 = sshrl.u32 %s401, 3
        %s403 = sand.u32 %s401, 7
        %s404 = smul.u32 %s402, 16
        %s405 = sadd.s32 %s403, %s404
        %s406 = scalar_lea.hbm %s1, %s405
        %s407 = scalar_lea.vmem [#allocation2], 4
        %s408 = scalar_lea.sflag [#allocation3], 4
        %s409 = sshll.u32 %s406, 4
        %s410 = int_to_ptr.hbm [resolvable:$true] %s409
        %s411 = sshll.u32 %s407, 4
        %s412 = int_to_ptr.vmem [resolvable:$true] %s411
        %416 = dma.hbm_to_vmem [thread:$0]  %s410, 32, %s412, %s408, 128, 128, 1
        %s417 = sadd.s32 %s334, 40
        %s418 = sld [smem:[#allocation5 + %s417]]
        %s419 = sshrl.u32 %s418, 3
        %s420 = sand.u32 %s418, 7
        %s421 = smul.u32 %s419, 16
        %s422 = sadd.s32 %s420, %s421
        %s423 = scalar_lea.hbm %s1, %s422
        %s424 = scalar_lea.vmem [#allocation2], 5
        %s425 = scalar_lea.sflag [#allocation3], 5
        %s426 = sshll.u32 %s423, 4
        %s427 = int_to_ptr.hbm [resolvable:$true] %s426
        %s428 = sshll.u32 %s424, 4
        %s429 = int_to_ptr.vmem [resolvable:$true] %s428
        %433 = dma.hbm_to_vmem [thread:$0]  %s427, 32, %s429, %s425, 128, 128, 1
        %s434 = sadd.s32 %s334, 48
        %s435 = sld [smem:[#allocation5 + %s434]]
        %s436 = sshrl.u32 %s435, 3
        %s437 = sand.u32 %s435, 7
        %s438 = smul.u32 %s436, 16
        %s439 = sadd.s32 %s437, %s438
        %s440 = scalar_lea.hbm %s1, %s439
        %s441 = scalar_lea.vmem [#allocation2], 6
        %s442 = scalar_lea.sflag [#allocation3], 6
        %s443 = sshll.u32 %s440, 4
        %s444 = int_to_ptr.hbm [resolvable:$true] %s443
        %s445 = sshll.u32 %s441, 4
        %s446 = int_to_ptr.vmem [resolvable:$true] %s445
        %450 = dma.hbm_to_vmem [thread:$0]  %s444, 32, %s446, %s442, 128, 128, 1
        %s451 = sadd.s32 %s334, 56
        %s452 = sld [smem:[#allocation5 + %s451]]
        %s453 = sshrl.u32 %s452, 3
        %s454 = sand.u32 %s452, 7
        %s455 = smul.u32 %s453, 16
        %s456 = sadd.s32 %s454, %s455
        %s457 = scalar_lea.hbm %s1, %s456
        %s458 = scalar_lea.vmem [#allocation2], 7
        %s459 = scalar_lea.sflag [#allocation3], 7
        %s460 = sshll.u32 %s457, 4
        %s461 = int_to_ptr.hbm [resolvable:$true] %s460
        %s462 = sshll.u32 %s458, 4
        %s463 = int_to_ptr.vmem [resolvable:$true] %s462
        %467 = dma.hbm_to_vmem [thread:$0]  %s461, 32, %s463, %s459, 128, 128, 1
        %s468 = sadd.s32 %s334, 1
        %s469 = sld [smem:[#allocation5 + %s468]]
        %s470 = sshrl.u32 %s469, 3
        %s471 = sand.u32 %s469, 7
        %s472 = smul.u32 %s470, 16
        %s473 = sadd.s32 %s471, %s472
        %s474 = scalar_lea.hbm %s1, %s473
        %s475 = scalar_lea.vmem [#allocation2], 16
        %s476 = scalar_lea.sflag [#allocation3], 8
        %s477 = sshll.u32 %s474, 4
        %s478 = int_to_ptr.hbm [resolvable:$true] %s477
        %s479 = sshll.u32 %s475, 4
        %s480 = int_to_ptr.vmem [resolvable:$true] %s479
        %484 = dma.hbm_to_vmem [thread:$0]  %s478, 32, %s480, %s476, 128, 128, 1
        %s485 = sadd.s32 %s334, 9
        %s486 = sld [smem:[#allocation5 + %s485]]
        %s487 = sshrl.u32 %s486, 3
        %s488 = sand.u32 %s486, 7
        %s489 = smul.u32 %s487, 16
        %s490 = sadd.s32 %s488, %s489
        %s491 = scalar_lea.hbm %s1, %s490
        %s492 = scalar_lea.vmem [#allocation2], 17
        %s493 = scalar_lea.sflag [#allocation3], 9
        %s494 = sshll.u32 %s491, 4
        %s495 = int_to_ptr.hbm [resolvable:$true] %s494
        %s496 = sshll.u32 %s492, 4
        %s497 = int_to_ptr.vmem [resolvable:$true] %s496
        %501 = dma.hbm_to_vmem [thread:$0]  %s495, 32, %s497, %s493, 128, 128, 1
        %s502 = sadd.s32 %s334, 17
        %s503 = sld [smem:[#allocation5 + %s502]]
        %s504 = sshrl.u32 %s503, 3
        %s505 = sand.u32 %s503, 7
        %s506 = smul.u32 %s504, 16
        %s507 = sadd.s32 %s505, %s506
        %s508 = scalar_lea.hbm %s1, %s507
        %s509 = scalar_lea.vmem [#allocation2], 18
        %s510 = scalar_lea.sflag [#allocation3], 10
        %s511 = sshll.u32 %s508, 4
        %s512 = int_to_ptr.hbm [resolvable:$true] %s511
        %s513 = sshll.u32 %s509, 4
        %s514 = int_to_ptr.vmem [resolvable:$true] %s513
        %518 = dma.hbm_to_vmem [thread:$0]  %s512, 32, %s514, %s510, 128, 128, 1
        %s519 = sadd.s32 %s334, 25
        %s520 = sld [smem:[#allocation5 + %s519]]
        %s521 = sshrl.u32 %s520, 3
        %s522 = sand.u32 %s520, 7
        %s523 = smul.u32 %s521, 16
        %s524 = sadd.s32 %s522, %s523
        %s525 = scalar_lea.hbm %s1, %s524
        %s526 = scalar_lea.vmem [#allocation2], 19
        %s527 = scalar_lea.sflag [#allocation3], 11
        %s528 = sshll.u32 %s525, 4
        %s529 = int_to_ptr.hbm [resolvable:$true] %s528
        %s530 = sshll.u32 %s526, 4
        %s531 = int_to_ptr.vmem [resolvable:$true] %s530
        %535 = dma.hbm_to_vmem [thread:$0]  %s529, 32, %s531, %s527, 128, 128, 1
        %s536 = sadd.s32 %s334, 33
        %s537 = sld [smem:[#allocation5 + %s536]]
        %s538 = sshrl.u32 %s537, 3
        %s539 = sand.u32 %s537, 7
        %s540 = smul.u32 %s538, 16
        %s541 = sadd.s32 %s539, %s540
        %s542 = scalar_lea.hbm %s1, %s541
        %s543 = scalar_lea.vmem [#allocation2], 20
        %s544 = scalar_lea.sflag [#allocation3], 12
        %s545 = sshll.u32 %s542, 4
        %s546 = int_to_ptr.hbm [resolvable:$true] %s545
        %s547 = sshll.u32 %s543, 4
        %s548 = int_to_ptr.vmem [resolvable:$true] %s547
        %552 = dma.hbm_to_vmem [thread:$0]  %s546, 32, %s548, %s544, 128, 128, 1
        %s553 = sadd.s32 %s334, 41
        %s554 = sld [smem:[#allocation5 + %s553]]
        %s555 = sshrl.u32 %s554, 3
        %s556 = sand.u32 %s554, 7
        %s557 = smul.u32 %s555, 16
        %s558 = sadd.s32 %s556, %s557
        %s559 = scalar_lea.hbm %s1, %s558
        %s560 = scalar_lea.vmem [#allocation2], 21
        %s561 = scalar_lea.sflag [#allocation3], 13
        %s562 = sshll.u32 %s559, 4
        %s563 = int_to_ptr.hbm [resolvable:$true] %s562
        %s564 = sshll.u32 %s560, 4
        %s565 = int_to_ptr.vmem [resolvable:$true] %s564
        %569 = dma.hbm_to_vmem [thread:$0]  %s563, 32, %s565, %s561, 128, 128, 1
        %s570 = sadd.s32 %s334, 49
        %s571 = sld [smem:[#allocation5 + %s570]]
        %s572 = sshrl.u32 %s571, 3
        %s573 = sand.u32 %s571, 7
        %s574 = smul.u32 %s572, 16
        %s575 = sadd.s32 %s573, %s574
        %s576 = scalar_lea.hbm %s1, %s575
        %s577 = scalar_lea.vmem [#allocation2], 22
        %s578 = scalar_lea.sflag [#allocation3], 14
        %s579 = sshll.u32 %s576, 4
        %s580 = int_to_ptr.hbm [resolvable:$true] %s579
        %s581 = sshll.u32 %s577, 4
        %s582 = int_to_ptr.vmem [resolvable:$true] %s581
        %586 = dma.hbm_to_vmem [thread:$0]  %s580, 32, %s582, %s578, 128, 128, 1
        %s587 = sadd.s32 %s334, 57
        %s588 = sld [smem:[#allocation5 + %s587]]
        %s589 = sshrl.u32 %s588, 3
        %s590 = sand.u32 %s588, 7
        %s591 = smul.u32 %s589, 16
        %s592 = sadd.s32 %s590, %s591
        %s593 = scalar_lea.hbm %s1, %s592
        %s594 = scalar_lea.vmem [#allocation2], 23
        %s595 = scalar_lea.sflag [#allocation3], 15
        %s596 = sshll.u32 %s593, 4
        %s597 = int_to_ptr.hbm [resolvable:$true] %s596
        %s598 = sshll.u32 %s594, 4
        %s599 = int_to_ptr.vmem [resolvable:$true] %s598
        %603 = dma.hbm_to_vmem [thread:$0]  %s597, 32, %s599, %s595, 128, 128, 1
        %s604 = sadd.s32 %s334, 2
        %s605 = sld [smem:[#allocation5 + %s604]]
        %s606 = sshrl.u32 %s605, 3
        %s607 = sand.u32 %s605, 7
        %s608 = smul.u32 %s606, 16
        %s609 = sadd.s32 %s607, %s608
        %s610 = scalar_lea.hbm %s1, %s609
        %s611 = scalar_lea.vmem [#allocation2], 32
        %s612 = scalar_lea.sflag [#allocation3], 16
        %s613 = sshll.u32 %s610, 4
        %s614 = int_to_ptr.hbm [resolvable:$true] %s613
        %s615 = sshll.u32 %s611, 4
        %s616 = int_to_ptr.vmem [resolvable:$true] %s615
        %620 = dma.hbm_to_vmem [thread:$0]  %s614, 32, %s616, %s612, 128, 128, 1
        %s621 = sadd.s32 %s334, 10
        %s622 = sld [smem:[#allocation5 + %s621]]
        %s623 = sshrl.u32 %s622, 3
        %s624 = sand.u32 %s622, 7
        %s625 = smul.u32 %s623, 16
        %s626 = sadd.s32 %s624, %s625
        %s627 = scalar_lea.hbm %s1, %s626
        %s628 = scalar_lea.vmem [#allocation2], 33
        %s629 = scalar_lea.sflag [#allocation3], 17
        %s630 = sshll.u32 %s627, 4
        %s631 = int_to_ptr.hbm [resolvable:$true] %s630
        %s632 = sshll.u32 %s628, 4
        %s633 = int_to_ptr.vmem [resolvable:$true] %s632
        %637 = dma.hbm_to_vmem [thread:$0]  %s631, 32, %s633, %s629, 128, 128, 1
        %s638 = sadd.s32 %s334, 18
        %s639 = sld [smem:[#allocation5 + %s638]]
        %s640 = sshrl.u32 %s639, 3
        %s641 = sand.u32 %s639, 7
        %s642 = smul.u32 %s640, 16
        %s643 = sadd.s32 %s641, %s642
        %s644 = scalar_lea.hbm %s1, %s643
        %s645 = scalar_lea.vmem [#allocation2], 34
        %s646 = scalar_lea.sflag [#allocation3], 18
        %s647 = sshll.u32 %s644, 4
        %s648 = int_to_ptr.hbm [resolvable:$true] %s647
        %s649 = sshll.u32 %s645, 4
        %s650 = int_to_ptr.vmem [resolvable:$true] %s649
        %654 = dma.hbm_to_vmem [thread:$0]  %s648, 32, %s650, %s646, 128, 128, 1
        %s655 = sadd.s32 %s334, 26
        %s656 = sld [smem:[#allocation5 + %s655]]
        %s657 = sshrl.u32 %s656, 3
        %s658 = sand.u32 %s656, 7
        %s659 = smul.u32 %s657, 16
        %s660 = sadd.s32 %s658, %s659
        %s661 = scalar_lea.hbm %s1, %s660
        %s662 = scalar_lea.vmem [#allocation2], 35
        %s663 = scalar_lea.sflag [#allocation3], 19
        %s664 = sshll.u32 %s661, 4
        %s665 = int_to_ptr.hbm [resolvable:$true] %s664
        %s666 = sshll.u32 %s662, 4
        %s667 = int_to_ptr.vmem [resolvable:$true] %s666
        %671 = dma.hbm_to_vmem [thread:$0]  %s665, 32, %s667, %s663, 128, 128, 1
        %s672 = sadd.s32 %s334, 34
        %s673 = sld [smem:[#allocation5 + %s672]]
        %s674 = sshrl.u32 %s673, 3
        %s675 = sand.u32 %s673, 7
        %s676 = smul.u32 %s674, 16
        %s677 = sadd.s32 %s675, %s676
        %s678 = scalar_lea.hbm %s1, %s677
        %s679 = scalar_lea.vmem [#allocation2], 36
        %s680 = scalar_lea.sflag [#allocation3], 20
        %s681 = sshll.u32 %s678, 4
        %s682 = int_to_ptr.hbm [resolvable:$true] %s681
        %s683 = sshll.u32 %s679, 4
        %s684 = int_to_ptr.vmem [resolvable:$true] %s683
        %688 = dma.hbm_to_vmem [thread:$0]  %s682, 32, %s684, %s680, 128, 128, 1
        %s689 = sadd.s32 %s334, 42
        %s690 = sld [smem:[#allocation5 + %s689]]
        %s691 = sshrl.u32 %s690, 3
        %s692 = sand.u32 %s690, 7
        %s693 = smul.u32 %s691, 16
        %s694 = sadd.s32 %s692, %s693
        %s695 = scalar_lea.hbm %s1, %s694
        %s696 = scalar_lea.vmem [#allocation2], 37
        %s697 = scalar_lea.sflag [#allocation3], 21
        %s698 = sshll.u32 %s695, 4
        %s699 = int_to_ptr.hbm [resolvable:$true] %s698
        %s700 = sshll.u32 %s696, 4
        %s701 = int_to_ptr.vmem [resolvable:$true] %s700
        %705 = dma.hbm_to_vmem [thread:$0]  %s699, 32, %s701, %s697, 128, 128, 1
        %s706 = sadd.s32 %s334, 50
        %s707 = sld [smem:[#allocation5 + %s706]]
        %s708 = sshrl.u32 %s707, 3
        %s709 = sand.u32 %s707, 7
        %s710 = smul.u32 %s708, 16
        %s711 = sadd.s32 %s709, %s710
        %s712 = scalar_lea.hbm %s1, %s711
        %s713 = scalar_lea.vmem [#allocation2], 38
        %s714 = scalar_lea.sflag [#allocation3], 22
        %s715 = sshll.u32 %s712, 4
        %s716 = int_to_ptr.hbm [resolvable:$true] %s715
        %s717 = sshll.u32 %s713, 4
        %s718 = int_to_ptr.vmem [resolvable:$true] %s717
        %722 = dma.hbm_to_vmem [thread:$0]  %s716, 32, %s718, %s714, 128, 128, 1
        %s723 = sadd.s32 %s334, 58
        %s724 = sld [smem:[#allocation5 + %s723]]
        %s725 = sshrl.u32 %s724, 3
        %s726 = sand.u32 %s724, 7
        %s727 = smul.u32 %s725, 16
        %s728 = sadd.s32 %s726, %s727
        %s729 = scalar_lea.hbm %s1, %s728
        %s730 = scalar_lea.vmem [#allocation2], 39
        %s731 = scalar_lea.sflag [#allocation3], 23
        %s732 = sshll.u32 %s729, 4
        %s733 = int_to_ptr.hbm [resolvable:$true] %s732
        %s734 = sshll.u32 %s730, 4
        %s735 = int_to_ptr.vmem [resolvable:$true] %s734
        %739 = dma.hbm_to_vmem [thread:$0]  %s733, 32, %s735, %s731, 128, 128, 1
        %s740 = sadd.s32 %s334, 3
        %s741 = sld [smem:[#allocation5 + %s740]]
        %s742 = sshrl.u32 %s741, 3
        %s743 = sand.u32 %s741, 7
        %s744 = smul.u32 %s742, 16
        %s745 = sadd.s32 %s743, %s744
        %s746 = scalar_lea.hbm %s1, %s745
        %s747 = scalar_lea.vmem [#allocation2], 48
        %s748 = scalar_lea.sflag [#allocation3], 24
        %s749 = sshll.u32 %s746, 4
        %s750 = int_to_ptr.hbm [resolvable:$true] %s749
        %s751 = sshll.u32 %s747, 4
        %s752 = int_to_ptr.vmem [resolvable:$true] %s751
        %756 = dma.hbm_to_vmem [thread:$0]  %s750, 32, %s752, %s748, 128, 128, 1
        %s757 = sadd.s32 %s334, 11
        %s758 = sld [smem:[#allocation5 + %s757]]
        %s759 = sshrl.u32 %s758, 3
        %s760 = sand.u32 %s758, 7
        %s761 = smul.u32 %s759, 16
        %s762 = sadd.s32 %s760, %s761
        %s763 = scalar_lea.hbm %s1, %s762
        %s764 = scalar_lea.vmem [#allocation2], 49
        %s765 = scalar_lea.sflag [#allocation3], 25
        %s766 = sshll.u32 %s763, 4
        %s767 = int_to_ptr.hbm [resolvable:$true] %s766
        %s768 = sshll.u32 %s764, 4
        %s769 = int_to_ptr.vmem [resolvable:$true] %s768
        %773 = dma.hbm_to_vmem [thread:$0]  %s767, 32, %s769, %s765, 128, 128, 1
        %s774 = sadd.s32 %s334, 19
        %s775 = sld [smem:[#allocation5 + %s774]]
        %s776 = sshrl.u32 %s775, 3
        %s777 = sand.u32 %s775, 7
        %s778 = smul.u32 %s776, 16
        %s779 = sadd.s32 %s777, %s778
        %s780 = scalar_lea.hbm %s1, %s779
        %s781 = scalar_lea.vmem [#allocation2], 50
        %s782 = scalar_lea.sflag [#allocation3], 26
        %s783 = sshll.u32 %s780, 4
        %s784 = int_to_ptr.hbm [resolvable:$true] %s783
        %s785 = sshll.u32 %s781, 4
        %s786 = int_to_ptr.vmem [resolvable:$true] %s785
        %790 = dma.hbm_to_vmem [thread:$0]  %s784, 32, %s786, %s782, 128, 128, 1
        %s791 = sadd.s32 %s334, 27
        %s792 = sld [smem:[#allocation5 + %s791]]
        %s793 = sshrl.u32 %s792, 3
        %s794 = sand.u32 %s792, 7
        %s795 = smul.u32 %s793, 16
        %s796 = sadd.s32 %s794, %s795
        %s797 = scalar_lea.hbm %s1, %s796
        %s798 = scalar_lea.vmem [#allocation2], 51
        %s799 = scalar_lea.sflag [#allocation3], 27
        %s800 = sshll.u32 %s797, 4
        %s801 = int_to_ptr.hbm [resolvable:$true] %s800
        %s802 = sshll.u32 %s798, 4
        %s803 = int_to_ptr.vmem [resolvable:$true] %s802
        %807 = dma.hbm_to_vmem [thread:$0]  %s801, 32, %s803, %s799, 128, 128, 1
        %s808 = sadd.s32 %s334, 35
        %s809 = sld [smem:[#allocation5 + %s808]]
        %s810 = sshrl.u32 %s809, 3
        %s811 = sand.u32 %s809, 7
        %s812 = smul.u32 %s810, 16
        %s813 = sadd.s32 %s811, %s812
        %s814 = scalar_lea.hbm %s1, %s813
        %s815 = scalar_lea.vmem [#allocation2], 52
        %s816 = scalar_lea.sflag [#allocation3], 28
        %s817 = sshll.u32 %s814, 4
        %s818 = int_to_ptr.hbm [resolvable:$true] %s817
        %s819 = sshll.u32 %s815, 4
        %s820 = int_to_ptr.vmem [resolvable:$true] %s819
        %824 = dma.hbm_to_vmem [thread:$0]  %s818, 32, %s820, %s816, 128, 128, 1
        %s825 = sadd.s32 %s334, 43
        %s826 = sld [smem:[#allocation5 + %s825]]
        %s827 = sshrl.u32 %s826, 3
        %s828 = sand.u32 %s826, 7
        %s829 = smul.u32 %s827, 16
        %s830 = sadd.s32 %s828, %s829
        %s831 = scalar_lea.hbm %s1, %s830
        %s832 = scalar_lea.vmem [#allocation2], 53
        %s833 = scalar_lea.sflag [#allocation3], 29
        %s834 = sshll.u32 %s831, 4
        %s835 = int_to_ptr.hbm [resolvable:$true] %s834
        %s836 = sshll.u32 %s832, 4
        %s837 = int_to_ptr.vmem [resolvable:$true] %s836
        %841 = dma.hbm_to_vmem [thread:$0]  %s835, 32, %s837, %s833, 128, 128, 1
        %s842 = sadd.s32 %s334, 51
        %s843 = sld [smem:[#allocation5 + %s842]]
        %s844 = sshrl.u32 %s843, 3
        %s845 = sand.u32 %s843, 7
        %s846 = smul.u32 %s844, 16
        %s847 = sadd.s32 %s845, %s846
        %s848 = scalar_lea.hbm %s1, %s847
        %s849 = scalar_lea.vmem [#allocation2], 54
        %s850 = scalar_lea.sflag [#allocation3], 30
        %s851 = sshll.u32 %s848, 4
        %s852 = int_to_ptr.hbm [resolvable:$true] %s851
        %s853 = sshll.u32 %s849, 4
        %s854 = int_to_ptr.vmem [resolvable:$true] %s853
        %858 = dma.hbm_to_vmem [thread:$0]  %s852, 32, %s854, %s850, 128, 128, 1
        %s859 = sadd.s32 %s334, 59
        %s860 = sld [smem:[#allocation5 + %s859]]
        %s861 = sshrl.u32 %s860, 3
        %s862 = sand.u32 %s860, 7
        %s863 = smul.u32 %s861, 16
        %s864 = sadd.s32 %s862, %s863
        %s865 = scalar_lea.hbm %s1, %s864
        %s866 = scalar_lea.vmem [#allocation2], 55
        %s867 = scalar_lea.sflag [#allocation3], 31
        %s868 = sshll.u32 %s865, 4
        %s869 = int_to_ptr.hbm [resolvable:$true] %s868
        %s870 = sshll.u32 %s866, 4
        %s871 = int_to_ptr.vmem [resolvable:$true] %s870
        %875 = dma.hbm_to_vmem [thread:$0]  %s869, 32, %s871, %s867, 128, 128, 1
        loop: start=0, step=1, limit=2
        $region69: #{tpu_custom_call.1} parent=43 // loop_pre_header
          _
        $region70: #{tpu_custom_call.1} parent=43 // loop_header
          %s877 = sphi 0, %s881
          %p878 = scmp.ge.s32.totalorder %s877, 2
          %v882 = vphi 0.0, %v1367
          %v883 = vphi 0.0, %v1368
        $region71: #{tpu_custom_call.1} parent=43 // loop_header_branch
          %880 = sbr.rel (%p878) target = $region75
        $region72: #{tpu_custom_call.1} parent=43 // loop_body
          %s884 = smul.u32 %s877, 4
          %s885 = sadd.s32 %s884, 4
          %p886 = scmp.lt.s32.totalorder %s885, 7
          %s887 = scalar_select %p886, %s885, 7
          %s888 = sadd.s32 %s334, %s887
          %s889 = sld [smem:[#allocation5 + %s888]]
          %s890 = sadd.s32 %s349, %s887
          %s891 = sld [smem:[#allocation5 + %s890]]
          %s892 = sadd.s32 %s366, %s887
          %s893 = sld [smem:[#allocation5 + %s892]]
          %s894 = sadd.s32 %s383, %s887
          %s895 = sld [smem:[#allocation5 + %s894]]
          %s896 = sadd.s32 %s400, %s887
          %s897 = sld [smem:[#allocation5 + %s896]]
          %s898 = sadd.s32 %s417, %s887
          %s899 = sld [smem:[#allocation5 + %s898]]
          %s900 = sadd.s32 %s434, %s887
          %s901 = sld [smem:[#allocation5 + %s900]]
          %s902 = sadd.s32 %s451, %s887
          %s903 = sld [smem:[#allocation5 + %s902]]
          %s904 = smul.u32 1, 2
          %s905 = sshll.u32 %s904, 4
          %906 = dma.done [#allocation3], %s905
          %s907 = sshll.u32 %s904, 4
          %908 = dma.done %s357, %s907
          %s909 = sshll.u32 %s904, 4
          %910 = dma.done %s374, %s909
          %s911 = sshll.u32 %s904, 4
          %912 = dma.done %s391, %s911
          %s913 = sshll.u32 %s904, 4
          %914 = dma.done %s408, %s913
          %s915 = sshll.u32 %s904, 4
          %916 = dma.done %s425, %s915
          %s917 = sshll.u32 %s904, 4
          %918 = dma.done %s442, %s917
          %s919 = sshll.u32 %s904, 4
          %920 = dma.done %s459, %s919
          %v921 = vld [vmem:[#allocation2] sm:$0xff]
          %v922 = vld [vmem:[#allocation2 + $0x8] sm:$0xff]
          %v923 = vadd.f32 %v882, %v921
          %v924 = vadd.f32 %v883, %v922
          %p925 = scmp.lt.s32.totalorder %s885, 8
          // Predicated region
          $region76: #{tpu_custom_call.1} parent=72 // pred_check
            %p926 = pneg %p925
          $region77: #{tpu_custom_call.1} parent=72 // pred_check_branch
            %928 = sbr.rel (%p926) target = $region79
          $region78: #{tpu_custom_call.1} parent=72 // pred_region
            %s929 = sshrl.u32 %s889, 3
            %s930 = sand.u32 %s889, 7
            %s931 = smul.u32 %s929, 16
            %s932 = sadd.s32 %s930, %s931
            %s933 = scalar_lea.hbm %s1, %s932
            %s934 = sshll.u32 %s933, 4
            %s935 = int_to_ptr.hbm [resolvable:$true] %s934
            %s936 = sshll.u32 [#allocation2], 4
            %s937 = int_to_ptr.vmem [resolvable:$true] %s936
            %941 = dma.hbm_to_vmem [thread:$0]  %s935, 32, %s937, [#allocation3], 128, 128, 1
            %s942 = sshrl.u32 %s891, 3
            %s943 = sand.u32 %s891, 7
            %s944 = smul.u32 %s942, 16
            %s945 = sadd.s32 %s943, %s944
            %s946 = scalar_lea.hbm %s1, %s945
            %s947 = sshll.u32 %s946, 4
            %s948 = int_to_ptr.hbm [resolvable:$true] %s947
            %s949 = sshll.u32 %s356, 4
            %s950 = int_to_ptr.vmem [resolvable:$true] %s949
            %954 = dma.hbm_to_vmem [thread:$0]  %s948, 32, %s950, %s357, 128, 128, 1
            %s955 = sshrl.u32 %s893, 3
            %s956 = sand.u32 %s893, 7
            %s957 = smul.u32 %s955, 16
            %s958 = sadd.s32 %s956, %s957
            %s959 = scalar_lea.hbm %s1, %s958
            %s960 = sshll.u32 %s959, 4
            %s961 = int_to_ptr.hbm [resolvable:$true] %s960
            %s962 = sshll.u32 %s373, 4
            %s963 = int_to_ptr.vmem [resolvable:$true] %s962
            %967 = dma.hbm_to_vmem [thread:$0]  %s961, 32, %s963, %s374, 128, 128, 1
            %s968 = sshrl.u32 %s895, 3
            %s969 = sand.u32 %s895, 7
            %s970 = smul.u32 %s968, 16
            %s971 = sadd.s32 %s969, %s970
            %s972 = scalar_lea.hbm %s1, %s971
            %s973 = sshll.u32 %s972, 4
            %s974 = int_to_ptr.hbm [resolvable:$true] %s973
            %s975 = sshll.u32 %s390, 4
            %s976 = int_to_ptr.vmem [resolvable:$true] %s975
            %980 = dma.hbm_to_vmem [thread:$0]  %s974, 32, %s976, %s391, 128, 128, 1
            %s981 = sshrl.u32 %s897, 3
            %s982 = sand.u32 %s897, 7
            %s983 = smul.u32 %s981, 16
            %s984 = sadd.s32 %s982, %s983
            %s985 = scalar_lea.hbm %s1, %s984
            %s986 = sshll.u32 %s985, 4
            %s987 = int_to_ptr.hbm [resolvable:$true] %s986
            %s988 = sshll.u32 %s407, 4
            %s989 = int_to_ptr.vmem [resolvable:$true] %s988
            %993 = dma.hbm_to_vmem [thread:$0]  %s987, 32, %s989, %s408, 128, 128, 1
            %s994 = sshrl.u32 %s899, 3
            %s995 = sand.u32 %s899, 7
            %s996 = smul.u32 %s994, 16
            %s997 = sadd.s32 %s995, %s996
            %s998 = scalar_lea.hbm %s1, %s997
            %s999 = sshll.u32 %s998, 4
            %s1000 = int_to_ptr.hbm [resolvable:$true] %s999
            %s1001 = sshll.u32 %s424, 4
            %s1002 = int_to_ptr.vmem [resolvable:$true] %s1001
            %1006 = dma.hbm_to_vmem [thread:$0]  %s1000, 32, %s1002, %s425, 128, 128, 1
            %s1007 = sshrl.u32 %s901, 3
            %s1008 = sand.u32 %s901, 7
            %s1009 = smul.u32 %s1007, 16
            %s1010 = sadd.s32 %s1008, %s1009
            %s1011 = scalar_lea.hbm %s1, %s1010
            %s1012 = sshll.u32 %s1011, 4
            %s1013 = int_to_ptr.hbm [resolvable:$true] %s1012
            %s1014 = sshll.u32 %s441, 4
            %s1015 = int_to_ptr.vmem [resolvable:$true] %s1014
            %1019 = dma.hbm_to_vmem [thread:$0]  %s1013, 32, %s1015, %s442, 128, 128, 1
            %s1020 = sshrl.u32 %s903, 3
            %s1021 = sand.u32 %s903, 7
            %s1022 = smul.u32 %s1020, 16
            %s1023 = sadd.s32 %s1021, %s1022
            %s1024 = scalar_lea.hbm %s1, %s1023
            %s1025 = sshll.u32 %s1024, 4
            %s1026 = int_to_ptr.hbm [resolvable:$true] %s1025
            %s1027 = sshll.u32 %s458, 4
            %s1028 = int_to_ptr.vmem [resolvable:$true] %s1027
            %1032 = dma.hbm_to_vmem [thread:$0]  %s1026, 32, %s1028, %s459, 128, 128, 1
          $region79: #{tpu_custom_call.1} parent=72 // pred_fallthru
            _
          %s1033 = sadd.s32 %s884, 5
          %p1034 = scmp.lt.s32.totalorder %s1033, 7
          %s1035 = scalar_select %p1034, %s1033, 7
          %s1036 = sadd.s32 %s334, %s1035
          %s1037 = sld [smem:[#allocation5 + %s1036]]
          %s1038 = sadd.s32 %s349, %s1035
          %s1039 = sld [smem:[#allocation5 + %s1038]]
          %s1040 = sadd.s32 %s366, %s1035
          %s1041 = sld [smem:[#allocation5 + %s1040]]
          %s1042 = sadd.s32 %s383, %s1035
          %s1043 = sld [smem:[#allocation5 + %s1042]]
          %s1044 = sadd.s32 %s400, %s1035
          %s1045 = sld [smem:[#allocation5 + %s1044]]
          %s1046 = sadd.s32 %s417, %s1035
          %s1047 = sld [smem:[#allocation5 + %s1046]]
          %s1048 = sadd.s32 %s434, %s1035
          %s1049 = sld [smem:[#allocation5 + %s1048]]
          %s1050 = sadd.s32 %s451, %s1035
          %s1051 = sld [smem:[#allocation5 + %s1050]]
          %s1052 = sshll.u32 %s904, 4
          %1053 = dma.done %s476, %s1052
          %s1054 = sshll.u32 %s904, 4
          %1055 = dma.done %s493, %s1054
          %s1056 = sshll.u32 %s904, 4
          %1057 = dma.done %s510, %s1056
          %s1058 = sshll.u32 %s904, 4
          %1059 = dma.done %s527, %s1058
          %s1060 = sshll.u32 %s904, 4
          %1061 = dma.done %s544, %s1060
          %s1062 = sshll.u32 %s904, 4
          %1063 = dma.done %s561, %s1062
          %s1064 = sshll.u32 %s904, 4
          %1065 = dma.done %s578, %s1064
          %s1066 = sshll.u32 %s904, 4
          %1067 = dma.done %s595, %s1066
          %s1068 = scalar_lea.vmem [#allocation2], 16
          %v1069 = vld [vmem:[%s1068] sm:$0xff]
          %v1070 = vld [vmem:[%s1068 + $0x8] sm:$0xff]
          %v1071 = vadd.f32 %v923, %v1069
          %v1072 = vadd.f32 %v924, %v1070
          %p1073 = scmp.lt.s32.totalorder %s1033, 8
          // Predicated region
          $region80: #{tpu_custom_call.1} parent=72 // pred_check
            %p1074 = pneg %p1073
          $region81: #{tpu_custom_call.1} parent=72 // pred_check_branch
            %1076 = sbr.rel (%p1074) target = $region83
          $region82: #{tpu_custom_call.1} parent=72 // pred_region
            %s1077 = sshrl.u32 %s1037, 3
            %s1078 = sand.u32 %s1037, 7
            %s1079 = smul.u32 %s1077, 16
            %s1080 = sadd.s32 %s1078, %s1079
            %s1081 = scalar_lea.hbm %s1, %s1080
            %s1082 = sshll.u32 %s1081, 4
            %s1083 = int_to_ptr.hbm [resolvable:$true] %s1082
            %s1084 = sshll.u32 %s475, 4
            %s1085 = int_to_ptr.vmem [resolvable:$true] %s1084
            %1089 = dma.hbm_to_vmem [thread:$0]  %s1083, 32, %s1085, %s476, 128, 128, 1
            %s1090 = sshrl.u32 %s1039, 3
            %s1091 = sand.u32 %s1039, 7
            %s1092 = smul.u32 %s1090, 16
            %s1093 = sadd.s32 %s1091, %s1092
            %s1094 = scalar_lea.hbm %s1, %s1093
            %s1095 = sshll.u32 %s1094, 4
            %s1096 = int_to_ptr.hbm [resolvable:$true] %s1095
            %s1097 = sshll.u32 %s492, 4
            %s1098 = int_to_ptr.vmem [resolvable:$true] %s1097
            %1102 = dma.hbm_to_vmem [thread:$0]  %s1096, 32, %s1098, %s493, 128, 128, 1
            %s1103 = sshrl.u32 %s1041, 3
            %s1104 = sand.u32 %s1041, 7
            %s1105 = smul.u32 %s1103, 16
            %s1106 = sadd.s32 %s1104, %s1105
            %s1107 = scalar_lea.hbm %s1, %s1106
            %s1108 = sshll.u32 %s1107, 4
            %s1109 = int_to_ptr.hbm [resolvable:$true] %s1108
            %s1110 = sshll.u32 %s509, 4
            %s1111 = int_to_ptr.vmem [resolvable:$true] %s1110
            %1115 = dma.hbm_to_vmem [thread:$0]  %s1109, 32, %s1111, %s510, 128, 128, 1
            %s1116 = sshrl.u32 %s1043, 3
            %s1117 = sand.u32 %s1043, 7
            %s1118 = smul.u32 %s1116, 16
            %s1119 = sadd.s32 %s1117, %s1118
            %s1120 = scalar_lea.hbm %s1, %s1119
            %s1121 = sshll.u32 %s1120, 4
            %s1122 = int_to_ptr.hbm [resolvable:$true] %s1121
            %s1123 = sshll.u32 %s526, 4
            %s1124 = int_to_ptr.vmem [resolvable:$true] %s1123
            %1128 = dma.hbm_to_vmem [thread:$0]  %s1122, 32, %s1124, %s527, 128, 128, 1
            %s1129 = sshrl.u32 %s1045, 3
            %s1130 = sand.u32 %s1045, 7
            %s1131 = smul.u32 %s1129, 16
            %s1132 = sadd.s32 %s1130, %s1131
            %s1133 = scalar_lea.hbm %s1, %s1132
            %s1134 = sshll.u32 %s1133, 4
            %s1135 = int_to_ptr.hbm [resolvable:$true] %s1134
            %s1136 = sshll.u32 %s543, 4
            %s1137 = int_to_ptr.vmem [resolvable:$true] %s1136
            %1141 = dma.hbm_to_vmem [thread:$0]  %s1135, 32, %s1137, %s544, 128, 128, 1
            %s1142 = sshrl.u32 %s1047, 3
            %s1143 = sand.u32 %s1047, 7
            %s1144 = smul.u32 %s1142, 16
            %s1145 = sadd.s32 %s1143, %s1144
            %s1146 = scalar_lea.hbm %s1, %s1145
            %s1147 = sshll.u32 %s1146, 4
            %s1148 = int_to_ptr.hbm [resolvable:$true] %s1147
            %s1149 = sshll.u32 %s560, 4
            %s1150 = int_to_ptr.vmem [resolvable:$true] %s1149
            %1154 = dma.hbm_to_vmem [thread:$0]  %s1148, 32, %s1150, %s561, 128, 128, 1
            %s1155 = sshrl.u32 %s1049, 3
            %s1156 = sand.u32 %s1049, 7
            %s1157 = smul.u32 %s1155, 16
            %s1158 = sadd.s32 %s1156, %s1157
            %s1159 = scalar_lea.hbm %s1, %s1158
            %s1160 = sshll.u32 %s1159, 4
            %s1161 = int_to_ptr.hbm [resolvable:$true] %s1160
            %s1162 = sshll.u32 %s577, 4
            %s1163 = int_to_ptr.vmem [resolvable:$true] %s1162
            %1167 = dma.hbm_to_vmem [thread:$0]  %s1161, 32, %s1163, %s578, 128, 128, 1
            %s1168 = sshrl.u32 %s1051, 3
            %s1169 = sand.u32 %s1051, 7
            %s1170 = smul.u32 %s1168, 16
            %s1171 = sadd.s32 %s1169, %s1170
            %s1172 = scalar_lea.hbm %s1, %s1171
            %s1173 = sshll.u32 %s1172, 4
            %s1174 = int_to_ptr.hbm [resolvable:$true] %s1173
            %s1175 = sshll.u32 %s594, 4
            %s1176 = int_to_ptr.vmem [resolvable:$true] %s1175
            %1180 = dma.hbm_to_vmem [thread:$0]  %s1174, 32, %s1176, %s595, 128, 128, 1
          $region83: #{tpu_custom_call.1} parent=72 // pred_fallthru
            _
          %s1181 = sadd.s32 %s884, 6
          %p1182 = scmp.lt.s32.totalorder %s1181, 7
          %s1183 = scalar_select %p1182, %s1181, 7
          %s1184 = sadd.s32 %s334, %s1183
          %s1185 = sld [smem:[#allocation5 + %s1184]]
          %s1186 = sadd.s32 %s349, %s1183
          %s1187 = sld [smem:[#allocation5 + %s1186]]
          %s1188 = sadd.s32 %s366, %s1183
          %s1189 = sld [smem:[#allocation5 + %s1188]]
          %s1190 = sadd.s32 %s383, %s1183
          %s1191 = sld [smem:[#allocation5 + %s1190]]
          %s1192 = sadd.s32 %s400, %s1183
          %s1193 = sld [smem:[#allocation5 + %s1192]]
          %s1194 = sadd.s32 %s417, %s1183
          %s1195 = sld [smem:[#allocation5 + %s1194]]
          %s1196 = sadd.s32 %s434, %s1183
          %s1197 = sld [smem:[#allocation5 + %s1196]]
          %s1198 = sadd.s32 %s451, %s1183
          %s1199 = sld [smem:[#allocation5 + %s1198]]
          %s1200 = sshll.u32 %s904, 4
          %1201 = dma.done %s612, %s1200
          %s1202 = sshll.u32 %s904, 4
          %1203 = dma.done %s629, %s1202
          %s1204 = sshll.u32 %s904, 4
          %1205 = dma.done %s646, %s1204
          %s1206 = sshll.u32 %s904, 4
          %1207 = dma.done %s663, %s1206
          %s1208 = sshll.u32 %s904, 4
          %1209 = dma.done %s680, %s1208
          %s1210 = sshll.u32 %s904, 4
          %1211 = dma.done %s697, %s1210
          %s1212 = sshll.u32 %s904, 4
          %1213 = dma.done %s714, %s1212
          %s1214 = sshll.u32 %s904, 4
          %1215 = dma.done %s731, %s1214
          %s1216 = scalar_lea.vmem [#allocation2], 32
          %v1217 = vld [vmem:[%s1216] sm:$0xff]
          %v1218 = vld [vmem:[%s1216 + $0x8] sm:$0xff]
          %v1219 = vadd.f32 %v1071, %v1217
          %v1220 = vadd.f32 %v1072, %v1218
          %p1221 = scmp.lt.s32.totalorder %s1181, 8
          // Predicated region
          $region84: #{tpu_custom_call.1} parent=72 // pred_check
            %p1222 = pneg %p1221
          $region85: #{tpu_custom_call.1} parent=72 // pred_check_branch
            %1224 = sbr.rel (%p1222) target = $region87
          $region86: #{tpu_custom_call.1} parent=72 // pred_region
            %s1225 = sshrl.u32 %s1185, 3
            %s1226 = sand.u32 %s1185, 7
            %s1227 = smul.u32 %s1225, 16
            %s1228 = sadd.s32 %s1226, %s1227
            %s1229 = scalar_lea.hbm %s1, %s1228
            %s1230 = sshll.u32 %s1229, 4
            %s1231 = int_to_ptr.hbm [resolvable:$true] %s1230
            %s1232 = sshll.u32 %s611, 4
            %s1233 = int_to_ptr.vmem [resolvable:$true] %s1232
            %1237 = dma.hbm_to_vmem [thread:$0]  %s1231, 32, %s1233, %s612, 128, 128, 1
            %s1238 = sshrl.u32 %s1187, 3
            %s1239 = sand.u32 %s1187, 7
            %s1240 = smul.u32 %s1238, 16
            %s1241 = sadd.s32 %s1239, %s1240
            %s1242 = scalar_lea.hbm %s1, %s1241
            %s1243 = sshll.u32 %s1242, 4
            %s1244 = int_to_ptr.hbm [resolvable:$true] %s1243
            %s1245 = sshll.u32 %s628, 4
            %s1246 = int_to_ptr.vmem [resolvable:$true] %s1245
            %1250 = dma.hbm_to_vmem [thread:$0]  %s1244, 32, %s1246, %s629, 128, 128, 1
            %s1251 = sshrl.u32 %s1189, 3
            %s1252 = sand.u32 %s1189, 7
            %s1253 = smul.u32 %s1251, 16
            %s1254 = sadd.s32 %s1252, %s1253
            %s1255 = scalar_lea.hbm %s1, %s1254
            %s1256 = sshll.u32 %s1255, 4
            %s1257 = int_to_ptr.hbm [resolvable:$true] %s1256
            %s1258 = sshll.u32 %s645, 4
            %s1259 = int_to_ptr.vmem [resolvable:$true] %s1258
            %1263 = dma.hbm_to_vmem [thread:$0]  %s1257, 32, %s1259, %s646, 128, 128, 1
            %s1264 = sshrl.u32 %s1191, 3
            %s1265 = sand.u32 %s1191, 7
            %s1266 = smul.u32 %s1264, 16
            %s1267 = sadd.s32 %s1265, %s1266
            %s1268 = scalar_lea.hbm %s1, %s1267
            %s1269 = sshll.u32 %s1268, 4
            %s1270 = int_to_ptr.hbm [resolvable:$true] %s1269
            %s1271 = sshll.u32 %s662, 4
            %s1272 = int_to_ptr.vmem [resolvable:$true] %s1271
            %1276 = dma.hbm_to_vmem [thread:$0]  %s1270, 32, %s1272, %s663, 128, 128, 1
            %s1277 = sshrl.u32 %s1193, 3
            %s1278 = sand.u32 %s1193, 7
            %s1279 = smul.u32 %s1277, 16
            %s1280 = sadd.s32 %s1278, %s1279
            %s1281 = scalar_lea.hbm %s1, %s1280
            %s1282 = sshll.u32 %s1281, 4
            %s1283 = int_to_ptr.hbm [resolvable:$true] %s1282
            %s1284 = sshll.u32 %s679, 4
            %s1285 = int_to_ptr.vmem [resolvable:$true] %s1284
            %1289 = dma.hbm_to_vmem [thread:$0]  %s1283, 32, %s1285, %s680, 128, 128, 1
            %s1290 = sshrl.u32 %s1195, 3
            %s1291 = sand.u32 %s1195, 7
            %s1292 = smul.u32 %s1290, 16
            %s1293 = sadd.s32 %s1291, %s1292
            %s1294 = scalar_lea.hbm %s1, %s1293
            %s1295 = sshll.u32 %s1294, 4
            %s1296 = int_to_ptr.hbm [resolvable:$true] %s1295
            %s1297 = sshll.u32 %s696, 4
            %s1298 = int_to_ptr.vmem [resolvable:$true] %s1297
            %1302 = dma.hbm_to_vmem [thread:$0]  %s1296, 32, %s1298, %s697, 128, 128, 1
            %s1303 = sshrl.u32 %s1197, 3
            %s1304 = sand.u32 %s1197, 7
            %s1305 = smul.u32 %s1303, 16
            %s1306 = sadd.s32 %s1304, %s1305
            %s1307 = scalar_lea.hbm %s1, %s1306
            %s1308 = sshll.u32 %s1307, 4
            %s1309 = int_to_ptr.hbm [resolvable:$true] %s1308
            %s1310 = sshll.u32 %s713, 4
            %s1311 = int_to_ptr.vmem [resolvable:$true] %s1310
            %1315 = dma.hbm_to_vmem [thread:$0]  %s1309, 32, %s1311, %s714, 128, 128, 1
            %s1316 = sshrl.u32 %s1199, 3
            %s1317 = sand.u32 %s1199, 7
            %s1318 = smul.u32 %s1316, 16
            %s1319 = sadd.s32 %s1317, %s1318
            %s1320 = scalar_lea.hbm %s1, %s1319
            %s1321 = sshll.u32 %s1320, 4
            %s1322 = int_to_ptr.hbm [resolvable:$true] %s1321
            %s1323 = sshll.u32 %s730, 4
            %s1324 = int_to_ptr.vmem [resolvable:$true] %s1323
            %1328 = dma.hbm_to_vmem [thread:$0]  %s1322, 32, %s1324, %s731, 128, 128, 1
          $region87: #{tpu_custom_call.1} parent=72 // pred_fallthru
            _
          %s1329 = sadd.s32 %s884, 7
          %p1330 = scmp.lt.s32.totalorder %s1329, 7
          %s1331 = scalar_select %p1330, %s1329, 7
          %s1332 = sadd.s32 %s334, %s1331
          %s1333 = sld [smem:[#allocation5 + %s1332]]
          %s1334 = sadd.s32 %s349, %s1331
          %s1335 = sld [smem:[#allocation5 + %s1334]]
          %s1336 = sadd.s32 %s366, %s1331
          %s1337 = sld [smem:[#allocation5 + %s1336]]
          %s1338 = sadd.s32 %s383, %s1331
          %s1339 = sld [smem:[#allocation5 + %s1338]]
          %s1340 = sadd.s32 %s400, %s1331
          %s1341 = sld [smem:[#allocation5 + %s1340]]
          %s1342 = sadd.s32 %s417, %s1331
          %s1343 = sld [smem:[#allocation5 + %s1342]]
          %s1344 = sadd.s32 %s434, %s1331
          %s1345 = sld [smem:[#allocation5 + %s1344]]
          %s1346 = sadd.s32 %s451, %s1331
          %s1347 = sld [smem:[#allocation5 + %s1346]]
          %s1348 = sshll.u32 %s904, 4
          %1349 = dma.done %s748, %s1348
          %s1350 = sshll.u32 %s904, 4
          %1351 = dma.done %s765, %s1350
          %s1352 = sshll.u32 %s904, 4
          %1353 = dma.done %s782, %s1352
          %s1354 = sshll.u32 %s904, 4
          %1355 = dma.done %s799, %s1354
          %s1356 = sshll.u32 %s904, 4
          %1357 = dma.done %s816, %s1356
          %s1358 = sshll.u32 %s904, 4
          %1359 = dma.done %s833, %s1358
          %s1360 = sshll.u32 %s904, 4
          %1361 = dma.done %s850, %s1360
          %s1362 = sshll.u32 %s904, 4
          %1363 = dma.done %s867, %s1362
          %s1364 = scalar_lea.vmem [#allocation2], 48
          %v1365 = vld [vmem:[%s1364] sm:$0xff]
          %v1366 = vld [vmem:[%s1364 + $0x8] sm:$0xff]
          %v1367 = vadd.f32 %v1219, %v1365
          %v1368 = vadd.f32 %v1220, %v1366
          %p1369 = scmp.lt.s32.totalorder %s1329, 8
          // Predicated region
          $region88: #{tpu_custom_call.1} parent=72 // pred_check
            %p1370 = pneg %p1369
          $region89: #{tpu_custom_call.1} parent=72 // pred_check_branch
            %1372 = sbr.rel (%p1370) target = $region91
          $region90: #{tpu_custom_call.1} parent=72 // pred_region
            %s1373 = sshrl.u32 %s1333, 3
            %s1374 = sand.u32 %s1333, 7
            %s1375 = smul.u32 %s1373, 16
            %s1376 = sadd.s32 %s1374, %s1375
            %s1377 = scalar_lea.hbm %s1, %s1376
            %s1378 = sshll.u32 %s1377, 4
            %s1379 = int_to_ptr.hbm [resolvable:$true] %s1378
            %s1380 = sshll.u32 %s747, 4
            %s1381 = int_to_ptr.vmem [resolvable:$true] %s1380
            %1385 = dma.hbm_to_vmem [thread:$0]  %s1379, 32, %s1381, %s748, 128, 128, 1
            %s1386 = sshrl.u32 %s1335, 3
            %s1387 = sand.u32 %s1335, 7
            %s1388 = smul.u32 %s1386, 16
            %s1389 = sadd.s32 %s1387, %s1388
            %s1390 = scalar_lea.hbm %s1, %s1389
            %s1391 = sshll.u32 %s1390, 4
            %s1392 = int_to_ptr.hbm [resolvable:$true] %s1391
            %s1393 = sshll.u32 %s764, 4
            %s1394 = int_to_ptr.vmem [resolvable:$true] %s1393
            %1398 = dma.hbm_to_vmem [thread:$0]  %s1392, 32, %s1394, %s765, 128, 128, 1
            %s1399 = sshrl.u32 %s1337, 3
            %s1400 = sand.u32 %s1337, 7
            %s1401 = smul.u32 %s1399, 16
            %s1402 = sadd.s32 %s1400, %s1401
            %s1403 = scalar_lea.hbm %s1, %s1402
            %s1404 = sshll.u32 %s1403, 4
            %s1405 = int_to_ptr.hbm [resolvable:$true] %s1404
            %s1406 = sshll.u32 %s781, 4
            %s1407 = int_to_ptr.vmem [resolvable:$true] %s1406
            %1411 = dma.hbm_to_vmem [thread:$0]  %s1405, 32, %s1407, %s782, 128, 128, 1
            %s1412 = sshrl.u32 %s1339, 3
            %s1413 = sand.u32 %s1339, 7
            %s1414 = smul.u32 %s1412, 16
            %s1415 = sadd.s32 %s1413, %s1414
            %s1416 = scalar_lea.hbm %s1, %s1415
            %s1417 = sshll.u32 %s1416, 4
            %s1418 = int_to_ptr.hbm [resolvable:$true] %s1417
            %s1419 = sshll.u32 %s798, 4
            %s1420 = int_to_ptr.vmem [resolvable:$true] %s1419
            %1424 = dma.hbm_to_vmem [thread:$0]  %s1418, 32, %s1420, %s799, 128, 128, 1
            %s1425 = sshrl.u32 %s1341, 3
            %s1426 = sand.u32 %s1341, 7
            %s1427 = smul.u32 %s1425, 16
            %s1428 = sadd.s32 %s1426, %s1427
            %s1429 = scalar_lea.hbm %s1, %s1428
            %s1430 = sshll.u32 %s1429, 4
            %s1431 = int_to_ptr.hbm [resolvable:$true] %s1430
            %s1432 = sshll.u32 %s815, 4
            %s1433 = int_to_ptr.vmem [resolvable:$true] %s1432
            %1437 = dma.hbm_to_vmem [thread:$0]  %s1431, 32, %s1433, %s816, 128, 128, 1
            %s1438 = sshrl.u32 %s1343, 3
            %s1439 = sand.u32 %s1343, 7
            %s1440 = smul.u32 %s1438, 16
            %s1441 = sadd.s32 %s1439, %s1440
            %s1442 = scalar_lea.hbm %s1, %s1441
            %s1443 = sshll.u32 %s1442, 4
            %s1444 = int_to_ptr.hbm [resolvable:$true] %s1443
            %s1445 = sshll.u32 %s832, 4
            %s1446 = int_to_ptr.vmem [resolvable:$true] %s1445
            %1450 = dma.hbm_to_vmem [thread:$0]  %s1444, 32, %s1446, %s833, 128, 128, 1
            %s1451 = sshrl.u32 %s1345, 3
            %s1452 = sand.u32 %s1345, 7
            %s1453 = smul.u32 %s1451, 16
            %s1454 = sadd.s32 %s1452, %s1453
            %s1455 = scalar_lea.hbm %s1, %s1454
            %s1456 = sshll.u32 %s1455, 4
            %s1457 = int_to_ptr.hbm [resolvable:$true] %s1456
            %s1458 = sshll.u32 %s849, 4
            %s1459 = int_to_ptr.vmem [resolvable:$true] %s1458
            %1463 = dma.hbm_to_vmem [thread:$0]  %s1457, 32, %s1459, %s850, 128, 128, 1
            %s1464 = sshrl.u32 %s1347, 3
            %s1465 = sand.u32 %s1347, 7
            %s1466 = smul.u32 %s1464, 16
            %s1467 = sadd.s32 %s1465, %s1466
            %s1468 = scalar_lea.hbm %s1, %s1467
            %s1469 = sshll.u32 %s1468, 4
            %s1470 = int_to_ptr.hbm [resolvable:$true] %s1469
            %s1471 = sshll.u32 %s866, 4
            %s1472 = int_to_ptr.vmem [resolvable:$true] %s1471
            %1476 = dma.hbm_to_vmem [thread:$0]  %s1470, 32, %s1472, %s867, 128, 128, 1
          $region91: #{tpu_custom_call.1} parent=72 // pred_fallthru
            _
        $region73: #{tpu_custom_call.1} parent=43 // loop_footer
          %s881 = sadd.s32 1, %s877
        $region74: #{tpu_custom_call.1} parent=43 // loop_footer_branch
          %876 = sbr.rel target = $region70
        $region75: #{tpu_custom_call.1} parent=43 // loop_exit
          _
        %v1477 = vmul.f32 %v882, 0.125
        %v1478 = vmul.f32 %v883, 0.125
        %v1479 = vld [vmem:[#allocation6] sm:$0xff]
        %v1480 = vld [vmem:[#allocation6 + $0x8] sm:$0xff]
        %v1481 = vld [vmem:[#allocation6 + $0x10] sm:$0xff]
        %v1482 = vld [vmem:[#allocation6 + $0x18] sm:$0xff]
        %v1483 = vld [vmem:[#allocation6 + $0x20] sm:$0xff]
        %v1484 = vld [vmem:[#allocation6 + $0x28] sm:$0xff]
        %v1485 = vld [vmem:[#allocation6 + $0x30] sm:$0xff]
        %v1486 = vld [vmem:[#allocation6 + $0x38] sm:$0xff]
        %v1487 = vld [vmem:[#allocation6 + $0x40] sm:$0xff]
        %v1488 = vld [vmem:[#allocation6 + $0x48] sm:$0xff]
        %v1489 = vld [vmem:[#allocation6 + $0x50] sm:$0xff]
        %v1490 = vld [vmem:[#allocation6 + $0x58] sm:$0xff]
        %v1491 = vld [vmem:[#allocation6 + $0x60] sm:$0xff]
        %v1492 = vld [vmem:[#allocation6 + $0x68] sm:$0xff]
        %v1493 = vld [vmem:[#allocation6 + $0x70] sm:$0xff]
        %v1494 = vld [vmem:[#allocation6 + $0x78] sm:$0xff]
        %v1495 = vld [vmem:[#allocation6 + $0x80] sm:$0xff]
        %v1496 = vld [vmem:[#allocation6 + $0x88] sm:$0xff]
        %v1497 = vld [vmem:[#allocation6 + $0x90] sm:$0xff]
        %v1498 = vld [vmem:[#allocation6 + $0x98] sm:$0xff]
        %v1499 = vld [vmem:[#allocation6 + $0xa0] sm:$0xff]
        %v1500 = vld [vmem:[#allocation6 + $0xa8] sm:$0xff]
        %v1501 = vld [vmem:[#allocation6 + $0xb0] sm:$0xff]
        %v1502 = vld [vmem:[#allocation6 + $0xb8] sm:$0xff]
        %v1503 = vld [vmem:[#allocation6 + $0xc0] sm:$0xff]
        %v1504 = vld [vmem:[#allocation6 + $0xc8] sm:$0xff]
        %v1505 = vld [vmem:[#allocation6 + $0xd0] sm:$0xff]
        %v1506 = vld [vmem:[#allocation6 + $0xd8] sm:$0xff]
        %v1507 = vld [vmem:[#allocation6 + $0xe0] sm:$0xff]
        %v1508 = vld [vmem:[#allocation6 + $0xe8] sm:$0xff]
        %v1509 = vld [vmem:[#allocation6 + $0xf0] sm:$0xff]
        %v1510 = vld [vmem:[#allocation6 + $0xf8] sm:$0xff]
        %v1511 = vld [vmem:[#allocation6 + $0x100] sm:$0xff]
        %v1512 = vld [vmem:[#allocation6 + $0x108] sm:$0xff]
        %v1513 = vld [vmem:[#allocation6 + $0x110] sm:$0xff]
        %v1514 = vld [vmem:[#allocation6 + $0x118] sm:$0xff]
        %v1515 = vld [vmem:[#allocation6 + $0x120] sm:$0xff]
        %v1516 = vld [vmem:[#allocation6 + $0x128] sm:$0xff]
        %v1517 = vld [vmem:[#allocation6 + $0x130] sm:$0xff]
        %v1518 = vld [vmem:[#allocation6 + $0x138] sm:$0xff]
        %v1519 = vld [vmem:[#allocation6 + $0x140] sm:$0xff]
        %v1520 = vld [vmem:[#allocation6 + $0x148] sm:$0xff]
        %v1521 = vld [vmem:[#allocation6 + $0x150] sm:$0xff]
        %v1522 = vld [vmem:[#allocation6 + $0x158] sm:$0xff]
        %v1523 = vld [vmem:[#allocation6 + $0x160] sm:$0xff]
        %v1524 = vld [vmem:[#allocation6 + $0x168] sm:$0xff]
        %v1525 = vld [vmem:[#allocation6 + $0x170] sm:$0xff]
        %v1526 = vld [vmem:[#allocation6 + $0x178] sm:$0xff]
        %v1527 = vld [vmem:[#allocation6 + $0x180] sm:$0xff]
        %v1528 = vld [vmem:[#allocation6 + $0x188] sm:$0xff]
        %v1529 = vld [vmem:[#allocation6 + $0x190] sm:$0xff]
        %v1530 = vld [vmem:[#allocation6 + $0x198] sm:$0xff]
        %v1531 = vld [vmem:[#allocation6 + $0x1a0] sm:$0xff]
        %v1532 = vld [vmem:[#allocation6 + $0x1a8] sm:$0xff]
        %v1533 = vld [vmem:[#allocation6 + $0x1b0] sm:$0xff]
        %v1534 = vld [vmem:[#allocation6 + $0x1b8] sm:$0xff]
        %v1535 = vld [vmem:[#allocation6 + $0x1c0] sm:$0xff]
        %v1536 = vld [vmem:[#allocation6 + $0x1c8] sm:$0xff]
        %v1537 = vld [vmem:[#allocation6 + $0x1d0] sm:$0xff]
        %v1538 = vld [vmem:[#allocation6 + $0x1d8] sm:$0xff]
        %v1539 = vld [vmem:[#allocation6 + $0x1e0] sm:$0xff]
        %v1540 = vld [vmem:[#allocation6 + $0x1e8] sm:$0xff]
        %v1541 = vld [vmem:[#allocation6 + $0x1f0] sm:$0xff]
        %v1542 = vld [vmem:[#allocation6 + $0x1f8] sm:$0xff]
        %v1543 = vld [vmem:[#allocation9] sm:$0x3]
        %v1545 = vperm.slane %v1543, 0
        %v1546 = vperm.slane %v1543, 1
        %1549 = vmatpush.msra.mxu0 %v1509
        %1550 = vmatpush.msra.mxu0 %v1507
        %1551 = vmatpush.msra.mxu0 %v1505
        %1552 = vmatpush.msra.mxu0 %v1503
        %1553 = vmatpush.msra.mxu0 %v1501
        %1554 = vmatpush.msra.mxu0 %v1499
        %1555 = vmatpush.msra.mxu0 %v1497
        %1556 = vmatpush.msra.mxu0 %v1495
        %1557 = vmatpush.msra.mxu0 %v1493
        %1558 = vmatpush.msra.mxu0 %v1491
        %1559 = vmatpush.msra.mxu0 %v1489
        %1560 = vmatpush.msra.mxu0 %v1487
        %1561 = vmatpush.msra.mxu0 %v1485
        %1562 = vmatpush.msra.mxu0 %v1483
        %1563 = vmatpush.msra.mxu0 %v1481
        %1564 = vmatpush.msra.mxu0 %v1479
        %1565 = vmatmul.f32.gmra.mxu0 %v1477
        %v1566 = vpop.f32.mrf.mxu0
        %v1567 = vadd.f32 %v1545, %v1566
        %1568 = vdwg.mxu0
        %1569 = vmatpush.msra.mxu0 %v1541
        %1570 = vmatpush.msra.mxu0 %v1539
        %1571 = vmatpush.msra.mxu0 %v1537
        %1572 = vmatpush.msra.mxu0 %v1535
        %1573 = vmatpush.msra.mxu0 %v1533
        %1574 = vmatpush.msra.mxu0 %v1531
        %1575 = vmatpush.msra.mxu0 %v1529
        %1576 = vmatpush.msra.mxu0 %v1527
        %1577 = vmatpush.msra.mxu0 %v1525
        %1578 = vmatpush.msra.mxu0 %v1523
        %1579 = vmatpush.msra.mxu0 %v1521
        %1580 = vmatpush.msra.mxu0 %v1519
        %1581 = vmatpush.msra.mxu0 %v1517
        %1582 = vmatpush.msra.mxu0 %v1515
        %1583 = vmatpush.msra.mxu0 %v1513
        %1584 = vmatpush.msra.mxu0 %v1511
        %1585 = vmatmul.f32.gmra.mxu0 %v1478
        %v1586 = vpop.f32.mrf.mxu0
        %v1587 = vadd.f32 %v1567, %v1586
        %1588 = vdwg.mxu0
        %1589 = vmatpush.msra.mxu0 %v1510
        %1590 = vmatpush.msra.mxu0 %v1508
        %1591 = vmatpush.msra.mxu0 %v1506
        %1592 = vmatpush.msra.mxu0 %v1504
        %1593 = vmatpush.msra.mxu0 %v1502
        %1594 = vmatpush.msra.mxu0 %v1500
        %1595 = vmatpush.msra.mxu0 %v1498
        %1596 = vmatpush.msra.mxu0 %v1496
        %1597 = vmatpush.msra.mxu0 %v1494
        %1598 = vmatpush.msra.mxu0 %v1492
        %1599 = vmatpush.msra.mxu0 %v1490
        %1600 = vmatpush.msra.mxu0 %v1488
        %1601 = vmatpush.msra.mxu0 %v1486
        %1602 = vmatpush.msra.mxu0 %v1484
        %1603 = vmatpush.msra.mxu0 %v1482
        %1604 = vmatpush.msra.mxu0 %v1480
        %1605 = vmatmul.f32.gmra.mxu0 %v1477
        %v1606 = vpop.f32.mrf.mxu0
        %v1607 = vadd.f32 %v1546, %v1606
        %1608 = vdwg.mxu0
        %1609 = vmatpush.msra.mxu0 %v1542
        %1610 = vmatpush.msra.mxu0 %v1540
        %1611 = vmatpush.msra.mxu0 %v1538
        %1612 = vmatpush.msra.mxu0 %v1536
        %1613 = vmatpush.msra.mxu0 %v1534
        %1614 = vmatpush.msra.mxu0 %v1532
        %1615 = vmatpush.msra.mxu0 %v1530
        %1616 = vmatpush.msra.mxu0 %v1528
        %1617 = vmatpush.msra.mxu0 %v1526
        %1618 = vmatpush.msra.mxu0 %v1524
        %1619 = vmatpush.msra.mxu0 %v1522
        %1620 = vmatpush.msra.mxu0 %v1520
        %1621 = vmatpush.msra.mxu0 %v1518
        %1622 = vmatpush.msra.mxu0 %v1516
        %1623 = vmatpush.msra.mxu0 %v1514
        %1624 = vmatpush.msra.mxu0 %v1512
        %1625 = vmatmul.f32.gmra.mxu0 %v1478
        %v1626 = vpop.f32.mrf.mxu0
        %v1627 = vadd.f32 %v1607, %v1626
        %1628 = vdwg.mxu0
        %v1629 = vmax.f32 %v1587, 0.0
        %v1630 = vmax.f32 %v1627, 0.0
        %v1631 = vld [vmem:[#allocation11] sm:$0xff]
        %v1632 = vld [vmem:[#allocation11 + $0x8] sm:$0xff]
        %v1633 = vld [vmem:[#allocation11 + $0x10] sm:$0xff]
        %v1634 = vld [vmem:[#allocation11 + $0x18] sm:$0xff]
        %v1635 = vld [vmem:[#allocation11 + $0x20] sm:$0xff]
        %v1636 = vld [vmem:[#allocation11 + $0x28] sm:$0xff]
        %v1637 = vld [vmem:[#allocation11 + $0x30] sm:$0xff]
        %v1638 = vld [vmem:[#allocation11 + $0x38] sm:$0xff]
        %v1639 = vld [vmem:[#allocation11 + $0x40] sm:$0xff]
        %v1640 = vld [vmem:[#allocation11 + $0x48] sm:$0xff]
        %v1641 = vld [vmem:[#allocation11 + $0x50] sm:$0xff]
        %v1642 = vld [vmem:[#allocation11 + $0x58] sm:$0xff]
        %v1643 = vld [vmem:[#allocation11 + $0x60] sm:$0xff]
        %v1644 = vld [vmem:[#allocation11 + $0x68] sm:$0xff]
        %v1645 = vld [vmem:[#allocation11 + $0x70] sm:$0xff]
        %v1646 = vld [vmem:[#allocation11 + $0x78] sm:$0xff]
        %v1647 = vld [vmem:[#allocation11 + $0x80] sm:$0xff]
        %v1648 = vld [vmem:[#allocation11 + $0x88] sm:$0xff]
        %v1649 = vld [vmem:[#allocation11 + $0x90] sm:$0xff]
        %v1650 = vld [vmem:[#allocation11 + $0x98] sm:$0xff]
        %v1651 = vld [vmem:[#allocation11 + $0xa0] sm:$0xff]
        %v1652 = vld [vmem:[#allocation11 + $0xa8] sm:$0xff]
        %v1653 = vld [vmem:[#allocation11 + $0xb0] sm:$0xff]
        %v1654 = vld [vmem:[#allocation11 + $0xb8] sm:$0xff]
        %v1655 = vld [vmem:[#allocation11 + $0xc0] sm:$0xff]
        %v1656 = vld [vmem:[#allocation11 + $0xc8] sm:$0xff]
        %v1657 = vld [vmem:[#allocation11 + $0xd0] sm:$0xff]
        %v1658 = vld [vmem:[#allocation11 + $0xd8] sm:$0xff]
        %v1659 = vld [vmem:[#allocation11 + $0xe0] sm:$0xff]
        %v1660 = vld [vmem:[#allocation11 + $0xe8] sm:$0xff]
        %v1661 = vld [vmem:[#allocation11 + $0xf0] sm:$0xff]
        %v1662 = vld [vmem:[#allocation11 + $0xf8] sm:$0xff]
        %v1663 = vld [vmem:[#allocation11 + $0x100] sm:$0xff]
        %v1664 = vld [vmem:[#allocation11 + $0x108] sm:$0xff]
        %v1665 = vld [vmem:[#allocation11 + $0x110] sm:$0xff]
        %v1666 = vld [vmem:[#allocation11 + $0x118] sm:$0xff]
        %v1667 = vld [vmem:[#allocation11 + $0x120] sm:$0xff]
        %v1668 = vld [vmem:[#allocation11 + $0x128] sm:$0xff]
        %v1669 = vld [vmem:[#allocation11 + $0x130] sm:$0xff]
        %v1670 = vld [vmem:[#allocation11 + $0x138] sm:$0xff]
        %v1671 = vld [vmem:[#allocation11 + $0x140] sm:$0xff]
        %v1672 = vld [vmem:[#allocation11 + $0x148] sm:$0xff]
        %v1673 = vld [vmem:[#allocation11 + $0x150] sm:$0xff]
        %v1674 = vld [vmem:[#allocation11 + $0x158] sm:$0xff]
        %v1675 = vld [vmem:[#allocation11 + $0x160] sm:$0xff]
        %v1676 = vld [vmem:[#allocation11 + $0x168] sm:$0xff]
        %v1677 = vld [vmem:[#allocation11 + $0x170] sm:$0xff]
        %v1678 = vld [vmem:[#allocation11 + $0x178] sm:$0xff]
        %v1679 = vld [vmem:[#allocation11 + $0x180] sm:$0xff]
        %v1680 = vld [vmem:[#allocation11 + $0x188] sm:$0xff]
        %v1681 = vld [vmem:[#allocation11 + $0x190] sm:$0xff]
        %v1682 = vld [vmem:[#allocation11 + $0x198] sm:$0xff]
        %v1683 = vld [vmem:[#allocation11 + $0x1a0] sm:$0xff]
        %v1684 = vld [vmem:[#allocation11 + $0x1a8] sm:$0xff]
        %v1685 = vld [vmem:[#allocation11 + $0x1b0] sm:$0xff]
        %v1686 = vld [vmem:[#allocation11 + $0x1b8] sm:$0xff]
        %v1687 = vld [vmem:[#allocation11 + $0x1c0] sm:$0xff]
        %v1688 = vld [vmem:[#allocation11 + $0x1c8] sm:$0xff]
        %v1689 = vld [vmem:[#allocation11 + $0x1d0] sm:$0xff]
        %v1690 = vld [vmem:[#allocation11 + $0x1d8] sm:$0xff]
        %v1691 = vld [vmem:[#allocation11 + $0x1e0] sm:$0xff]
        %v1692 = vld [vmem:[#allocation11 + $0x1e8] sm:$0xff]
        %v1693 = vld [vmem:[#allocation11 + $0x1f0] sm:$0xff]
        %v1694 = vld [vmem:[#allocation11 + $0x1f8] sm:$0xff]
        %v1695 = vld [vmem:[#allocation12] sm:$0x3]
        %v1697 = vperm.slane %v1695, 0
        %v1698 = vperm.slane %v1695, 1
        %1701 = vmatpush.msra.mxu0 %v1661
        %1702 = vmatpush.msra.mxu0 %v1659
        %1703 = vmatpush.msra.mxu0 %v1657
        %1704 = vmatpush.msra.mxu0 %v1655
        %1705 = vmatpush.msra.mxu0 %v1653
        %1706 = vmatpush.msra.mxu0 %v1651
        %1707 = vmatpush.msra.mxu0 %v1649
        %1708 = vmatpush.msra.mxu0 %v1647
        %1709 = vmatpush.msra.mxu0 %v1645
        %1710 = vmatpush.msra.mxu0 %v1643
        %1711 = vmatpush.msra.mxu0 %v1641
        %1712 = vmatpush.msra.mxu0 %v1639
        %1713 = vmatpush.msra.mxu0 %v1637
        %1714 = vmatpush.msra.mxu0 %v1635
        %1715 = vmatpush.msra.mxu0 %v1633
        %1716 = vmatpush.msra.mxu0 %v1631
        %1717 = vmatmul.f32.gmra.mxu0 %v1629
        %v1718 = vpop.f32.mrf.mxu0
        %v1719 = vadd.f32 %v1697, %v1718
        %1720 = vdwg.mxu0
        %1721 = vmatpush.msra.mxu0 %v1693
        %1722 = vmatpush.msra.mxu0 %v1691
        %1723 = vmatpush.msra.mxu0 %v1689
        %1724 = vmatpush.msra.mxu0 %v1687
        %1725 = vmatpush.msra.mxu0 %v1685
        %1726 = vmatpush.msra.mxu0 %v1683
        %1727 = vmatpush.msra.mxu0 %v1681
        %1728 = vmatpush.msra.mxu0 %v1679
        %1729 = vmatpush.msra.mxu0 %v1677
        %1730 = vmatpush.msra.mxu0 %v1675
        %1731 = vmatpush.msra.mxu0 %v1673
        %1732 = vmatpush.msra.mxu0 %v1671
        %1733 = vmatpush.msra.mxu0 %v1669
        %1734 = vmatpush.msra.mxu0 %v1667
        %1735 = vmatpush.msra.mxu0 %v1665
        %1736 = vmatpush.msra.mxu0 %v1663
        %1737 = vmatmul.f32.gmra.mxu0 %v1630
        %v1738 = vpop.f32.mrf.mxu0
        %v1739 = vadd.f32 %v1719, %v1738
        %1740 = vdwg.mxu0
        %1741 = vmatpush.msra.mxu0 %v1662
        %1742 = vmatpush.msra.mxu0 %v1660
        %1743 = vmatpush.msra.mxu0 %v1658
        %1744 = vmatpush.msra.mxu0 %v1656
        %1745 = vmatpush.msra.mxu0 %v1654
        %1746 = vmatpush.msra.mxu0 %v1652
        %1747 = vmatpush.msra.mxu0 %v1650
        %1748 = vmatpush.msra.mxu0 %v1648
        %1749 = vmatpush.msra.mxu0 %v1646
        %1750 = vmatpush.msra.mxu0 %v1644
        %1751 = vmatpush.msra.mxu0 %v1642
        %1752 = vmatpush.msra.mxu0 %v1640
        %1753 = vmatpush.msra.mxu0 %v1638
        %1754 = vmatpush.msra.mxu0 %v1636
        %1755 = vmatpush.msra.mxu0 %v1634
        %1756 = vmatpush.msra.mxu0 %v1632
        %1757 = vmatmul.f32.gmra.mxu0 %v1629
        %v1758 = vpop.f32.mrf.mxu0
        %v1759 = vadd.f32 %v1698, %v1758
        %1760 = vdwg.mxu0
        %1761 = vmatpush.msra.mxu0 %v1694
        %1762 = vmatpush.msra.mxu0 %v1692
        %1763 = vmatpush.msra.mxu0 %v1690
        %1764 = vmatpush.msra.mxu0 %v1688
        %1765 = vmatpush.msra.mxu0 %v1686
        %1766 = vmatpush.msra.mxu0 %v1684
        %1767 = vmatpush.msra.mxu0 %v1682
        %1768 = vmatpush.msra.mxu0 %v1680
        %1769 = vmatpush.msra.mxu0 %v1678
        %1770 = vmatpush.msra.mxu0 %v1676
        %1771 = vmatpush.msra.mxu0 %v1674
        %1772 = vmatpush.msra.mxu0 %v1672
        %1773 = vmatpush.msra.mxu0 %v1670
        %1774 = vmatpush.msra.mxu0 %v1668
        %1775 = vmatpush.msra.mxu0 %v1666
        %1776 = vmatpush.msra.mxu0 %v1664
        %1777 = vmatmul.f32.gmra.mxu0 %v1630
        %v1778 = vpop.f32.mrf.mxu0
        %v1779 = vadd.f32 %v1759, %v1778
        %1780 = vdwg.mxu0
        %v1781 = vmax.f32 %v1739, 0.0
        %v1782 = vmax.f32 %v1779, 0.0
        %v1783 = vld [vmem:[#allocation14] sm:$0xff]
        %v1784 = vld [vmem:[#allocation14 + $0x8] sm:$0xff]
        %v1785 = vld [vmem:[#allocation14 + $0x10] sm:$0xff]
        %v1786 = vld [vmem:[#allocation14 + $0x18] sm:$0xff]
        %v1787 = vld [vmem:[#allocation14 + $0x20] sm:$0xff]
        %v1788 = vld [vmem:[#allocation14 + $0x28] sm:$0xff]
        %v1789 = vld [vmem:[#allocation14 + $0x30] sm:$0xff]
        %v1790 = vld [vmem:[#allocation14 + $0x38] sm:$0xff]
        %v1791 = vld [vmem:[#allocation14 + $0x40] sm:$0xff]
        %v1792 = vld [vmem:[#allocation14 + $0x48] sm:$0xff]
        %v1793 = vld [vmem:[#allocation14 + $0x50] sm:$0xff]
        %v1794 = vld [vmem:[#allocation14 + $0x58] sm:$0xff]
        %v1795 = vld [vmem:[#allocation14 + $0x60] sm:$0xff]
        %v1796 = vld [vmem:[#allocation14 + $0x68] sm:$0xff]
        %v1797 = vld [vmem:[#allocation14 + $0x70] sm:$0xff]
        %v1798 = vld [vmem:[#allocation14 + $0x78] sm:$0xff]
        %v1799 = vld [vmem:[#allocation14 + $0x80] sm:$0xff]
        %v1800 = vld [vmem:[#allocation14 + $0x88] sm:$0xff]
        %v1801 = vld [vmem:[#allocation14 + $0x90] sm:$0xff]
        %v1802 = vld [vmem:[#allocation14 + $0x98] sm:$0xff]
        %v1803 = vld [vmem:[#allocation14 + $0xa0] sm:$0xff]
        %v1804 = vld [vmem:[#allocation14 + $0xa8] sm:$0xff]
        %v1805 = vld [vmem:[#allocation14 + $0xb0] sm:$0xff]
        %v1806 = vld [vmem:[#allocation14 + $0xb8] sm:$0xff]
        %v1807 = vld [vmem:[#allocation14 + $0xc0] sm:$0xff]
        %v1808 = vld [vmem:[#allocation14 + $0xc8] sm:$0xff]
        %v1809 = vld [vmem:[#allocation14 + $0xd0] sm:$0xff]
        %v1810 = vld [vmem:[#allocation14 + $0xd8] sm:$0xff]
        %v1811 = vld [vmem:[#allocation14 + $0xe0] sm:$0xff]
        %v1812 = vld [vmem:[#allocation14 + $0xe8] sm:$0xff]
        %v1813 = vld [vmem:[#allocation14 + $0xf0] sm:$0xff]
        %v1814 = vld [vmem:[#allocation14 + $0xf8] sm:$0xff]
        %v1815 = vld [vmem:[#allocation15] sm:$0x1]
        %v1817 = vperm.slane %v1815, 0
        %1819 = vmatpush.msra.mxu0 %v1798
        %1820 = vmatpush.msra.mxu0 %v1797
        %1821 = vmatpush.msra.mxu0 %v1796
        %1822 = vmatpush.msra.mxu0 %v1795
        %1823 = vmatpush.msra.mxu0 %v1794
        %1824 = vmatpush.msra.mxu0 %v1793
        %1825 = vmatpush.msra.mxu0 %v1792
        %1826 = vmatpush.msra.mxu0 %v1791
        %1827 = vmatpush.msra.mxu0 %v1790
        %1828 = vmatpush.msra.mxu0 %v1789
        %1829 = vmatpush.msra.mxu0 %v1788
        %1830 = vmatpush.msra.mxu0 %v1787
        %1831 = vmatpush.msra.mxu0 %v1786
        %1832 = vmatpush.msra.mxu0 %v1785
        %1833 = vmatpush.msra.mxu0 %v1784
        %1834 = vmatpush.msra.mxu0 %v1783
        %1835 = vmatmul.f32.gmra.mxu0 %v1781
        %v1836 = vpop.f32.mrf.mxu0
        %v1837 = vadd.f32 %v1817, %v1836
        %1838 = vdwg.mxu0
        %1839 = vmatpush.msra.mxu0 %v1814
        %1840 = vmatpush.msra.mxu0 %v1813
        %1841 = vmatpush.msra.mxu0 %v1812
        %1842 = vmatpush.msra.mxu0 %v1811
        %1843 = vmatpush.msra.mxu0 %v1810
        %1844 = vmatpush.msra.mxu0 %v1809
        %1845 = vmatpush.msra.mxu0 %v1808
        %1846 = vmatpush.msra.mxu0 %v1807
        %1847 = vmatpush.msra.mxu0 %v1806
        %1848 = vmatpush.msra.mxu0 %v1805
        %1849 = vmatpush.msra.mxu0 %v1804
        %1850 = vmatpush.msra.mxu0 %v1803
        %1851 = vmatpush.msra.mxu0 %v1802
        %1852 = vmatpush.msra.mxu0 %v1801
        %1853 = vmatpush.msra.mxu0 %v1800
        %1854 = vmatpush.msra.mxu0 %v1799
        %1855 = vmatmul.f32.gmra.mxu0 %v1782
        %v1856 = vpop.f32.mrf.mxu0
        %v1857 = vadd.f32 %v1837, %v1856
        %1858 = vdwg.mxu0
        %v1859 = vmax.f32 %v1857, 0.0
        %v1860 = vlaneseq
        %v1861 = vand.u32 %v1860, 127
        %vm1862 = vcmp.lt.s32.totalorder %v1861, 2
        %v1863 = vsel %vm1862, %v1859, -1e+30
        %1864 = vmax.xlane.f32.xlu0 %v1863
        %v1865 = vpop.xlane.xlu0 %1864
        %v1866 = vsub.f32 %v1863, %v1865
        %v1867 = vmul.f32 %v1866, 1.442695
        %v1868 = vpow.pop %v1867
        %1869 = vadd.xlane.f32.xlu0 %v1868
        %v1870 = vpop.xlane.xlu0 %1869
        %v1871 = vrcp.pop %v1870
        %v1872 = vmul.f32 %v1870, %v1871
        %v1873 = vsub.f32 1.0, %v1872
        %v1874 = vmul.f32 %v1871, %v1873
        %v1875 = vadd.f32 %v1871, %v1874
        %vm1876 = vweird.f32 %v1870
        %vm1877 = vweird.f32 %v1871
        %vm1878 = vmor %vm1876, %vm1877
        %v1879 = vsel %vm1878, %v1871, %v1875
        %v1880 = vand.u32 2147483647, %v1870
        %vm1881 = vcmp.eq.f32.partialorder %v1880, 8.507059e+37
        %v1882 = vand.u32 %v1870, 2147483648
        %v1883 = vor.u32 1.1754944e-38, %v1882
        %v1884 = vsel %vm1881, %v1883, %v1879
        %v1885 = vmul.f32 %v1868, %v1884
        %1886 = vst [vmem:[%s333] sm:$0xff] %v1885
        %s1887 = sand.u32 %s168, 1
        %s1888 = scalar_lea.sflag [#allocation8], %s1887
        %s1889 = sand.u32 %s168, 1
        %s1890 = smul.addr %s1889, 8
        %s1891 = scalar_lea.vmem [#allocation17], %s1890
        // Predicated region
        $region92: #{tpu_custom_call.1} parent=43 // pred_check
          %p1892 = pneg %p178
        $region93: #{tpu_custom_call.1} parent=43 // pred_check_branch
          %1894 = sbr.rel (%p1892) target = $region95
        $region94: #{tpu_custom_call.1} parent=43 // pred_region
          %1896 = vsyncadd %s1888, 0
          %s1897 = smul.addr %s34, 8
          %s1898 = scalar_lea.hbm %s8, %s1897
          %s1900 = sshll.u32 %s1891, 4
          %s1901 = int_to_ptr.vmem [resolvable:$true] %s1900
          %s1902 = sshll.u32 %s1898, 4
          %s1903 = int_to_ptr.hbm [resolvable:$true] %s1902
          %1905 = dma.vmem_to_hbm [thread:$0]  %s1901, 128, %s1903, %s1888
        $region95: #{tpu_custom_call.1} parent=43 // pred_fallthru
          _
      $region44: #{tpu_custom_call.1} parent=5 // pred_fallthru
        _
      %p1906 = scmp.le.s32.totalorder 2, %s29
      // Predicated region
      $region96: #{tpu_custom_call.1} parent=5 // pred_check
        %p1907 = pneg %p1906
      $region97: #{tpu_custom_call.1} parent=5 // pred_check_branch
        %1909 = sbr.rel (%p1907) target = $region99
      $region98: #{tpu_custom_call.1} parent=5 // pred_region
        %s1910 = ssub.s32 %s29, 2
        // Predicated region
        $region100: #{tpu_custom_call.1} parent=98 // pred_check
          %p1911 = pneg %p184
        $region101: #{tpu_custom_call.1} parent=98 // pred_check_branch
          %1913 = sbr.rel (%p1911) target = $region103
        $region102: #{tpu_custom_call.1} parent=98 // pred_region
          %s1914 = sand.u32 %s169, 1
          %s1915 = scalar_lea.sflag [#allocation8], %s1914
          %s1916 = sand.u32 %s169, 1
          %s1917 = smul.addr %s1916, 8
          %s1918 = scalar_lea.vmem [#allocation17], %s1917
          %1920 = dma.done %s1915, 128
        $region103: #{tpu_custom_call.1} parent=98 // pred_fallthru
          _
      $region99: #{tpu_custom_call.1} parent=5 // pred_fallthru
        _
    $region6: #{tpu_custom_call.1} parent=1 // loop_footer
      %s33 = sadd.s32 1, %s29
    $region7: #{tpu_custom_call.1} parent=1 // loop_footer_branch
      %28 = sbr.rel target = $region3
    $region8: #{tpu_custom_call.1} parent=1 // loop_exit
      _
    %1921 = vsyncpa [#allocation7], 1
    %s1922 = scalar_lea.sflag [#allocation7], 1
    %1923 = vsyncpa %s1922, 1
    %1924 = vsyncpa [#allocation10], 1
    %1925 = vsyncpa [#allocation13], 1
    %1926 = vsyncpa [#allocation16], 1
    %1927 = vsyncpa [#allocation8], 1
    %s1928 = scalar_lea.sflag [#allocation8], 1
    %1929 = vsyncpa %s1928, 1
  %1930 = vsyncmov [#allocation3]
  %s1931 = vpop.sfrf %1930
  %p1932 = scmp.eq.s32.totalorder %s1931, 0
  %p1933 = pneg %p1932
  %1935 = shalt.err (%p1933)
  %s1936 = scalar_lea.sflag [#allocation3], 1
  %1937 = vsyncmov %s1936
  %s1938 = vpop.sfrf %1937
  %p1939 = scmp.eq.s32.totalorder %s1938, 0
  %p1940 = pneg %p1939
  %1942 = shalt.err (%p1940)
  %s1943 = scalar_lea.sflag [#allocation3], 2
  %1944 = vsyncmov %s1943
  %s1945 = vpop.sfrf %1944
  %p1946 = scmp.eq.s32.totalorder %s1945, 0
  %p1947 = pneg %p1946
  %1949 = shalt.err (%p1947)
  %s1950 = scalar_lea.sflag [#allocation3], 3
  %1951 = vsyncmov %s1950
  %s1952 = vpop.sfrf %1951
  %p1953 = scmp.eq.s32.totalorder %s1952, 0
  %p1954 = pneg %p1953
  %1956 = shalt.err (%p1954)
  %s1957 = scalar_lea.sflag [#allocation3], 4
  %1958 = vsyncmov %s1957
  %s1959 = vpop.sfrf %1958
  %p1960 = scmp.eq.s32.totalorder %s1959, 0
  %p1961 = pneg %p1960
  %1963 = shalt.err (%p1961)
  %s1964 = scalar_lea.sflag [#allocation3], 5
  %1965 = vsyncmov %s1964
  %s1966 = vpop.sfrf %1965
  %p1967 = scmp.eq.s32.totalorder %s1966, 0
  %p1968 = pneg %p1967
  %1970 = shalt.err (%p1968)
  %s1971 = scalar_lea.sflag [#allocation3], 6
  %1972 = vsyncmov %s1971
  %s1973 = vpop.sfrf %1972
  %p1974 = scmp.eq.s32.totalorder %s1973, 0
  %p1975 = pneg %p1974
  %1977 = shalt.err (%p1975)
  %s1978 = scalar_lea.sflag [#allocation3], 7
  %1979 = vsyncmov %s1978
  %s1980 = vpop.sfrf %1979
  %p1981 = scmp.eq.s32.totalorder %s1980, 0
  %p1982 = pneg %p1981
  %1984 = shalt.err (%p1982)
  %s1985 = scalar_lea.sflag [#allocation3], 8
  %1986 = vsyncmov %s1985
  %s1987 = vpop.sfrf %1986
  %p1988 = scmp.eq.s32.totalorder %s1987, 0
  %p1989 = pneg %p1988
  %1991 = shalt.err (%p1989)
  %s1992 = scalar_lea.sflag [#allocation3], 9
  %1993 = vsyncmov %s1992
  %s1994 = vpop.sfrf %1993
  %p1995 = scmp.eq.s32.totalorder %s1994, 0
  %p1996 = pneg %p1995
  %1998 = shalt.err (%p1996)
  %s1999 = scalar_lea.sflag [#allocation3], 10
  %2000 = vsyncmov %s1999
  %s2001 = vpop.sfrf %2000
  %p2002 = scmp.eq.s32.totalorder %s2001, 0
  %p2003 = pneg %p2002
  %2005 = shalt.err (%p2003)
  %s2006 = scalar_lea.sflag [#allocation3], 11
  %2007 = vsyncmov %s2006
  %s2008 = vpop.sfrf %2007
  %p2009 = scmp.eq.s32.totalorder %s2008, 0
  %p2010 = pneg %p2009
  %2012 = shalt.err (%p2010)
  %s2013 = scalar_lea.sflag [#allocation3], 12
  %2014 = vsyncmov %s2013
  %s2015 = vpop.sfrf %2014
  %p2016 = scmp.eq.s32.totalorder %s2015, 0
  %p2017 = pneg %p2016
  %2019 = shalt.err (%p2017)
  %s2020 = scalar_lea.sflag [#allocation3], 13
  %2021 = vsyncmov %s2020
  %s2022 = vpop.sfrf %2021
  %p2023 = scmp.eq.s32.totalorder %s2022, 0
  %p2024 = pneg %p2023
  %2026 = shalt.err (%p2024)
  %s2027 = scalar_lea.sflag [#allocation3], 14
  %2028 = vsyncmov %s2027
  %s2029 = vpop.sfrf %2028
  %p2030 = scmp.eq.s32.totalorder %s2029, 0
  %p2031 = pneg %p2030
  %2033 = shalt.err (%p2031)
  %s2034 = scalar_lea.sflag [#allocation3], 15
  %2035 = vsyncmov %s2034
  %s2036 = vpop.sfrf %2035
  %p2037 = scmp.eq.s32.totalorder %s2036, 0
  %p2038 = pneg %p2037
  %2040 = shalt.err (%p2038)
  %s2041 = scalar_lea.sflag [#allocation3], 16
  %2042 = vsyncmov %s2041
  %s2043 = vpop.sfrf %2042
  %p2044 = scmp.eq.s32.totalorder %s2043, 0
  %p2045 = pneg %p2044
  %2047 = shalt.err (%p2045)
  %s2048 = scalar_lea.sflag [#allocation3], 17
  %2049 = vsyncmov %s2048
  %s2050 = vpop.sfrf %2049
  %p2051 = scmp.eq.s32.totalorder %s2050, 0
  %p2052 = pneg %p2051
  %2054 = shalt.err (%p2052)
  %s2055 = scalar_lea.sflag [#allocation3], 18
  %2056 = vsyncmov %s2055
  %s2057 = vpop.sfrf %2056
  %p2058 = scmp.eq.s32.totalorder %s2057, 0
  %p2059 = pneg %p2058
  %2061 = shalt.err (%p2059)
  %s2062 = scalar_lea.sflag [#allocation3], 19
  %2063 = vsyncmov %s2062
  %s2064 = vpop.sfrf %2063
  %p2065 = scmp.eq.s32.totalorder %s2064, 0
  %p2066 = pneg %p2065
  %2068 = shalt.err (%p2066)
  %s2069 = scalar_lea.sflag [#allocation3], 20
  %2070 = vsyncmov %s2069
  %s2071 = vpop.sfrf %2070
  %p2072 = scmp.eq.s32.totalorder %s2071, 0
  %p2073 = pneg %p2072
  %2075 = shalt.err (%p2073)
  %s2076 = scalar_lea.sflag [#allocation3], 21
  %2077 = vsyncmov %s2076
  %s2078 = vpop.sfrf %2077
  %p2079 = scmp.eq.s32.totalorder %s2078, 0
  %p2080 = pneg %p2079
  %2082 = shalt.err (%p2080)
  %s2083 = scalar_lea.sflag [#allocation3], 22
  %2084 = vsyncmov %s2083
  %s2085 = vpop.sfrf %2084
  %p2086 = scmp.eq.s32.totalorder %s2085, 0
  %p2087 = pneg %p2086
  %2089 = shalt.err (%p2087)
  %s2090 = scalar_lea.sflag [#allocation3], 23
  %2091 = vsyncmov %s2090
  %s2092 = vpop.sfrf %2091
  %p2093 = scmp.eq.s32.totalorder %s2092, 0
  %p2094 = pneg %p2093
  %2096 = shalt.err (%p2094)
  %s2097 = scalar_lea.sflag [#allocation3], 24
  %2098 = vsyncmov %s2097
  %s2099 = vpop.sfrf %2098
  %p2100 = scmp.eq.s32.totalorder %s2099, 0
  %p2101 = pneg %p2100
  %2103 = shalt.err (%p2101)
  %s2104 = scalar_lea.sflag [#allocation3], 25
  %2105 = vsyncmov %s2104
  %s2106 = vpop.sfrf %2105
  %p2107 = scmp.eq.s32.totalorder %s2106, 0
  %p2108 = pneg %p2107
  %2110 = shalt.err (%p2108)
  %s2111 = scalar_lea.sflag [#allocation3], 26
  %2112 = vsyncmov %s2111
  %s2113 = vpop.sfrf %2112
  %p2114 = scmp.eq.s32.totalorder %s2113, 0
  %p2115 = pneg %p2114
  %2117 = shalt.err (%p2115)
  %s2118 = scalar_lea.sflag [#allocation3], 27
  %2119 = vsyncmov %s2118
  %s2120 = vpop.sfrf %2119
  %p2121 = scmp.eq.s32.totalorder %s2120, 0
  %p2122 = pneg %p2121
  %2124 = shalt.err (%p2122)
  %s2125 = scalar_lea.sflag [#allocation3], 28
  %2126 = vsyncmov %s2125
  %s2127 = vpop.sfrf %2126
  %p2128 = scmp.eq.s32.totalorder %s2127, 0
  %p2129 = pneg %p2128
  %2131 = shalt.err (%p2129)
  %s2132 = scalar_lea.sflag [#allocation3], 29
  %2133 = vsyncmov %s2132
  %s2134 = vpop.sfrf %2133
  %p2135 = scmp.eq.s32.totalorder %s2134, 0
  %p2136 = pneg %p2135
  %2138 = shalt.err (%p2136)
  %s2139 = scalar_lea.sflag [#allocation3], 30
  %2140 = vsyncmov %s2139
  %s2141 = vpop.sfrf %2140
  %p2142 = scmp.eq.s32.totalorder %s2141, 0
  %p2143 = pneg %p2142
  %2145 = shalt.err (%p2143)
  %s2146 = scalar_lea.sflag [#allocation3], 31
  %2147 = vsyncmov %s2146
  %s2148 = vpop.sfrf %2147
  %p2149 = scmp.eq.s32.totalorder %s2148, 0
  %p2150 = pneg %p2149
  %2152 = shalt.err (%p2150)

</llo_original>
